<compile_context>
chip_gen: v5e
topology: v5e:2x2
jax: 0.10.0
libtpu: 0.0.40
codegen_flags: <defaults>
</compile_context>

<pallas_src>
import functools

import jax
import jax.numpy as jnp
from jax.experimental import pallas as pl
from jax.experimental.pallas import tpu as pltpu

# Domain bounds used by the reference forward's input normalization.
X_MIN, X_MAX = -1.0, 1.0
Y_MIN, Y_MAX = -1.0, 1.0

LAYERS = [2, 80, 80, 80, 80, 80, 3]
HID = LAYERS[1]          # true hidden width (80)
H = 128                  # lane-padded hidden width
OUT_W = 8                # lane-padded output width (3 -> 8); block = full dim
N_HIDDEN_STACK = 4       # hidden layers 1..4 share one packed weight slab
SUB_ROWS = 256           # rows processed per inner sub-block (bounds live ranges)


def _pinn_kernel(x_ref, w0_ref, b_ref, wh_ref, w5_ref, o_ref, *, sub, nsub):
    w0 = w0_ref[...]                     # (2, H) f32, normalization pre-folded
    b = b_ref[...]                       # (6, H) f32 packed biases
    b_out = b[5:6, :OUT_W]               # (1, OUT_W) head bias

    def sub_block(s, carry):
        r0 = pl.multiple_of(s * sub, sub)
        x = x_ref[pl.ds(r0, sub), :]     # (sub, 2) f32

        # --- hidden layer 0: K=2 contraction on the VPU (outer product);
        #     input normalization already folded into w0/b0 by the wrapper ---
        z = x[:, 0:1] * w0[0:1, :] + x[:, 1:2] * w0[1:2, :] + b[0:1, :]
        u = jnp.tanh(z)                  # (sub, H) f32

        # --- hidden layers 1..4 (residual on 1..3): bf16 MXU matmul,
        #     f32 accumulation; tanh / residual math stays f32 ---
        for i in range(N_HIDDEN_STACK):
            z = jnp.dot(u.astype(jnp.bfloat16), wh_ref[i],
                        preferred_element_type=jnp.float32) + b[i + 1:i + 2, :]
            u_new = jnp.tanh(z)
            u = u_new + u if i < 3 else u_new

        # --- linear head: narrow (sub, OUT_W) result, narrow HBM writeback ---
        o_ref[pl.ds(r0, sub), :] = (
            jnp.dot(u.astype(jnp.bfloat16), w5_ref[...],
                    preferred_element_type=jnp.float32) + b_out)
        return carry

    jax.lax.fori_loop(0, nsub, sub_block, 0, unroll=True)


def _prep_params(params):
    """Fold normalization into layer 0, pad/pack, cast matmul weights to bf16."""
    w0, b0 = params[0]                             # (2, 80), (1, 80)
    # norm(x) = x * s + t (per input feature); fold into layer 0 exactly.
    s = jnp.array([2.0 / (X_MAX - X_MIN), 2.0 / (Y_MAX - Y_MIN)], jnp.float32)
    t = jnp.array([-2.0 * X_MIN / (X_MAX - X_MIN) - 1.0,
                   -2.0 * Y_MIN / (Y_MAX - Y_MIN) - 1.0], jnp.float32)
    w0f = s[:, None] * w0                          # (2, 80)
    b0f = b0 + t @ w0                              # (1, 80)

    w0p = jnp.zeros((2, H), jnp.float32).at[:, :HID].set(w0f)

    whp = jnp.zeros((N_HIDDEN_STACK, H, H), jnp.float32)
    bp = jnp.zeros((6, H), jnp.float32)
    bp = bp.at[0, :HID].set(b0f[0])
    for i in range(N_HIDDEN_STACK):
        w, bb = params[1 + i]
        whp = whp.at[i, :HID, :HID].set(w)
        bp = bp.at[1 + i, :HID].set(bb[0])
    whp = whp.astype(jnp.bfloat16)

    w5, b5 = params[5]                             # (80, 3), (1, 3)
    w5p = jnp.zeros((H, OUT_W), jnp.float32).at[:HID, :LAYERS[-1]].set(w5)
    w5p = w5p.astype(jnp.bfloat16)
    bp = bp.at[5, :LAYERS[-1]].set(b5[0])
    return w0p, bp, whp, w5p


def pinn_forward(x, params, *, tile_m=1024):
    """x: (N, 2) float32; params: list of (W, b) with W (in, out), b (1, out)."""
    n = x.shape[0]

    # Batch tile: large tiles amortize per-step pipeline overhead; the kernel
    # sub-blocks internally so activation live ranges stay bounded.  No forced
    # grid split (single-TC chips gain nothing from it).
    tile = min(tile_m, pl.cdiv(n, 8) * 8)
    if tile > SUB_ROWS:
        tile = pl.cdiv(tile, SUB_ROWS) * SUB_ROWS  # exact inner sub-blocking
    n_pad = pl.cdiv(n, tile) * tile
    if n_pad != n:
        x = jnp.pad(x, ((0, n_pad - n), (0, 0)))

    sub = min(SUB_ROWS, tile)
    nsub = tile // sub

    w0p, bp, whp, w5p = _prep_params(params)

    grid = (n_pad // tile,)
    in_specs = [
        pl.BlockSpec((tile, 2), lambda i: (i, 0)),                  # x tile
        pl.BlockSpec((2, H), lambda i: (0, 0)),                     # folded W0
        pl.BlockSpec((6, H), lambda i: (0, 0)),                     # packed biases
        pl.BlockSpec((N_HIDDEN_STACK, H, H), lambda i: (0, 0, 0)),  # hidden Ws
        pl.BlockSpec((H, OUT_W), lambda i: (0, 0)),                 # narrow head W
    ]
    out_specs = pl.BlockSpec((tile, OUT_W), lambda i: (i, 0))       # narrow out

    flops = 2 * n_pad * (2 * H + N_HIDDEN_STACK * H * H + H * OUT_W)
    transcendentals = (1 + N_HIDDEN_STACK) * n_pad * H
    bytes_accessed = (n_pad * 2 * 4 + n_pad * OUT_W * 4
                      + 2 * H * 4 + 6 * H * 4
                      + N_HIDDEN_STACK * H * H * 2 + H * OUT_W * 2)
    cost = pl.CostEstimate(flops=int(flops),
                           transcendentals=int(transcendentals),
                           bytes_accessed=int(bytes_accessed))

    kernel = functools.partial(_pinn_kernel, sub=sub, nsub=nsub)
    out = pl.pallas_call(
        kernel,
        out_shape=jax.ShapeDtypeStruct((n_pad, OUT_W), jnp.float32),
        grid_spec=pltpu.PrefetchScalarGridSpec(
            num_scalar_prefetch=0,
            grid=grid,
            in_specs=in_specs,
            out_specs=out_specs,
        ),
        compiler_params=pltpu.CompilerParams(
            dimension_semantics=("parallel",)),
        cost_estimate=cost,
    )(x, w0p, bp, whp, w5p)

    return out[:n, :LAYERS[-1]]


def init_params(key):
    """Deterministic xavier-normal weights, zero biases (matches __init__)."""
    params = []
    for i in range(len(LAYERS) - 1):
        fan_in, fan_out = LAYERS[i], LAYERS[i + 1]
        key, sub = jax.random.split(key)
        std = (2.0 / (fan_in + fan_out)) ** 0.5
        # torch Linear weight is (out, in); store transposed as (in, out).
        w = std * jax.random.normal(sub, (fan_in, fan_out), dtype=jnp.float32)
        b = jnp.zeros((1, fan_out), dtype=jnp.float32)
        params.append((w, b))
    return params


def pinn_reference_f32(x, params):
    """Pure-JAX exact-f32 reference mirroring the PyTorch forward."""
    mins = jnp.array([X_MIN, Y_MIN], dtype=jnp.float32)
    rng = jnp.array([X_MAX - X_MIN, Y_MAX - Y_MIN], dtype=jnp.float32)
    u = 2.0 * (x - mins) / rng - 1.0
    hp = jax.lax.Precision.HIGHEST
    n_hidden = len(params) - 1
    for i in range(n_hidden):
        w, b = params[i]
        u_new = jnp.tanh(jnp.dot(u, w, precision=hp) + b)
        if 0 < i < len(params) - 2 and u.shape[-1] == u_new.shape[-1]:
            u = u_new + u
        else:
            u = u_new
    w, b = params[-1]
    return jnp.dot(u, w, precision=hp) + b


if __name__ == "__main__":
    key = jax.random.PRNGKey(0)
    k_param, k_x = jax.random.split(key)

    params = init_params(k_param)

    # Batch of 2-D collocation points (exercises the padding path: 1000 -> 1024).
    N = 1000
    x = jax.random.uniform(k_x, (N, 2), dtype=jnp.float32,
                           minval=X_MIN, maxval=X_MAX)

    out = pinn_forward(x, params, tile_m=1024)
    out = jax.block_until_ready(out)
    assert out.shape == (N, LAYERS[-1])
    assert bool(jnp.all(jnp.isfinite(out)))

    # Check against the exact-f32 reference.  The kernel uses bf16 matmul
    # operands (f32 accumulation), which introduces ~1e-2-level deviations;
    # 1e-1 covers that with margin while still catching any structural bug.
    ref_f32 = pinn_reference_f32(x, params)
    max_err = float(jnp.max(jnp.abs(out - ref_f32)))
    assert max_err < 1e-1, f"mismatch vs f32 reference (max abs err {max_err})"

    print("KERNEL_OK")
</pallas_src>

<mosaic_0001>
module attributes {stable_mosaic.version = 11 : i64} {
  func.func @_pinn_kernel(%arg0: i32, %arg1: memref<1024x2xf32, #tpu.memory_space<vmem>>, %arg2: memref<2x128xf32, #tpu.memory_space<vmem>>, %arg3: memref<6x128xf32, #tpu.memory_space<vmem>>, %arg4: memref<4x128x128xbf16, #tpu.memory_space<vmem>>, %arg5: memref<128x8xbf16, #tpu.memory_space<vmem>>, %arg6: memref<1024x8xf32, #tpu.memory_space<vmem>>) attributes {dimension_semantics = [#tpu.dimension_semantics<parallel>], iteration_bounds = array<i64: 1>, scalar_prefetch = 0 : i64, scratch_operands = 0 : i64, tpu.core_type = #tpu.core_type<tc>, window_params = [{transform_indices = @transform_0, window_bounds = array<i64: 1024, 2>}, {pipeline_mode = #tpu.pipeline_mode<synchronous>, transform_indices = @transform_1, window_bounds = array<i64: 2, 128>}, {pipeline_mode = #tpu.pipeline_mode<synchronous>, transform_indices = @transform_2, window_bounds = array<i64: 6, 128>}, {pipeline_mode = #tpu.pipeline_mode<synchronous>, transform_indices = @transform_3, window_bounds = array<i64: 4, 128, 128>}, {pipeline_mode = #tpu.pipeline_mode<synchronous>, transform_indices = @transform_4, window_bounds = array<i64: 128, 8>}, {transform_indices = @transform_5, window_bounds = array<i64: 1024, 8>}]} {
    %c0 = arith.constant 0 : index
    %c0_0 = arith.constant 0 : index
    %0 = vector.load %arg2[%c0, %c0_0] : memref<2x128xf32, #tpu.memory_space<vmem>>, vector<2x128xf32>
    %c0_1 = arith.constant 0 : index
    %c0_2 = arith.constant 0 : index
    %1 = vector.load %arg3[%c0_1, %c0_2] : memref<6x128xf32, #tpu.memory_space<vmem>>, vector<6x128xf32>
    %2 = vector.extract_strided_slice %1 {offsets = [5, 0], sizes = [1, 8], strides = [1, 1]} : vector<6x128xf32> to vector<1x8xf32>
    %c0_i32 = arith.constant 0 : i32
    %c256_i32 = arith.constant 256 : i32
    %3 = arith.muli %c0_i32, %c256_i32 : i32
    %4 = tpu.assume_multiple %3, 256 : i32
    %5 = arith.index_cast %4 : i32 to index
    %c0_3 = arith.constant 0 : index
    %6 = vector.load %arg1[%5, %c0_3] : memref<1024x2xf32, #tpu.memory_space<vmem>>, vector<256x2xf32>
    %7 = vector.extract_strided_slice %6 {offsets = [0, 0], sizes = [256, 1], strides = [1, 1]} : vector<256x2xf32> to vector<256x1xf32>
    %8 = vector.extract_strided_slice %0 {offsets = [0, 0], sizes = [1, 128], strides = [1, 1]} : vector<2x128xf32> to vector<1x128xf32>
    %9 = vector.broadcast %7 : vector<256x1xf32> to vector<256x128xf32>
    %10 = vector.broadcast %8 : vector<1x128xf32> to vector<256x128xf32>
    %11 = arith.mulf %9, %10 : vector<256x128xf32>
    %12 = vector.extract_strided_slice %6 {offsets = [0, 1], sizes = [256, 1], strides = [1, 1]} : vector<256x2xf32> to vector<256x1xf32>
    %13 = vector.extract_strided_slice %0 {offsets = [1, 0], sizes = [1, 128], strides = [1, 1]} : vector<2x128xf32> to vector<1x128xf32>
    %14 = vector.broadcast %12 : vector<256x1xf32> to vector<256x128xf32>
    %15 = vector.broadcast %13 : vector<1x128xf32> to vector<256x128xf32>
    %16 = arith.mulf %14, %15 : vector<256x128xf32>
    %17 = arith.addf %11, %16 : vector<256x128xf32>
    %18 = vector.extract_strided_slice %1 {offsets = [0, 0], sizes = [1, 128], strides = [1, 1]} : vector<6x128xf32> to vector<1x128xf32>
    %19 = vector.broadcast %18 : vector<1x128xf32> to vector<256x128xf32>
    %20 = arith.addf %17, %19 : vector<256x128xf32>
    %21 = math.tanh %20 : vector<256x128xf32>
    %22 = arith.truncf %21 : vector<256x128xf32> to vector<256x128xbf16>
    %c0_4 = arith.constant 0 : index
    %c0_5 = arith.constant 0 : index
    %c0_6 = arith.constant 0 : index
    %23 = vector.load %arg4[%c0_4, %c0_5, %c0_6] : memref<4x128x128xbf16, #tpu.memory_space<vmem>>, vector<1x128x128xbf16>
    %24 = vector.shape_cast %23 : vector<1x128x128xbf16> to vector<128x128xbf16>
    %cst = arith.constant dense<0.000000e+00> : vector<256x128xf32>
    %25 = tpu.matmul %22, %24, %cst {dimension_numbers = #tpu.dot_dimension_numbers<[1], [0], [0], [1], [0, 0, 1, 1], [], []>} : vector<256x128xbf16>, vector<128x128xbf16>, vector<256x128xf32> -> vector<256x128xf32>
    %26 = vector.extract_strided_slice %1 {offsets = [1, 0], sizes = [1, 128], strides = [1, 1]} : vector<6x128xf32> to vector<1x128xf32>
    %27 = vector.broadcast %26 : vector<1x128xf32> to vector<256x128xf32>
    %28 = arith.addf %25, %27 : vector<256x128xf32>
    %29 = math.tanh %28 : vector<256x128xf32>
    %30 = arith.addf %29, %21 : vector<256x128xf32>
    %31 = arith.truncf %30 : vector<256x128xf32> to vector<256x128xbf16>
    %c1 = arith.constant 1 : index
    %c0_7 = arith.constant 0 : index
    %c0_8 = arith.constant 0 : index
    %32 = vector.load %arg4[%c1, %c0_7, %c0_8] : memref<4x128x128xbf16, #tpu.memory_space<vmem>>, vector<1x128x128xbf16>
    %33 = vector.shape_cast %32 : vector<1x128x128xbf16> to vector<128x128xbf16>
    %cst_9 = arith.constant dense<0.000000e+00> : vector<256x128xf32>
    %34 = tpu.matmul %31, %33, %cst_9 {dimension_numbers = #tpu.dot_dimension_numbers<[1], [0], [0], [1], [0, 0, 1, 1], [], []>} : vector<256x128xbf16>, vector<128x128xbf16>, vector<256x128xf32> -> vector<256x128xf32>
    %35 = vector.extract_strided_slice %1 {offsets = [2, 0], sizes = [1, 128], strides = [1, 1]} : vector<6x128xf32> to vector<1x128xf32>
    %36 = vector.broadcast %35 : vector<1x128xf32> to vector<256x128xf32>
    %37 = arith.addf %34, %36 : vector<256x128xf32>
    %38 = math.tanh %37 : vector<256x128xf32>
    %39 = arith.addf %38, %30 : vector<256x128xf32>
    %40 = arith.truncf %39 : vector<256x128xf32> to vector<256x128xbf16>
    %c2 = arith.constant 2 : index
    %c0_10 = arith.constant 0 : index
    %c0_11 = arith.constant 0 : index
    %41 = vector.load %arg4[%c2, %c0_10, %c0_11] : memref<4x128x128xbf16, #tpu.memory_space<vmem>>, vector<1x128x128xbf16>
    %42 = vector.shape_cast %41 : vector<1x128x128xbf16> to vector<128x128xbf16>
    %cst_12 = arith.constant dense<0.000000e+00> : vector<256x128xf32>
    %43 = tpu.matmul %40, %42, %cst_12 {dimension_numbers = #tpu.dot_dimension_numbers<[1], [0], [0], [1], [0, 0, 1, 1], [], []>} : vector<256x128xbf16>, vector<128x128xbf16>, vector<256x128xf32> -> vector<256x128xf32>
    %44 = vector.extract_strided_slice %1 {offsets = [3, 0], sizes = [1, 128], strides = [1, 1]} : vector<6x128xf32> to vector<1x128xf32>
    %45 = vector.broadcast %44 : vector<1x128xf32> to vector<256x128xf32>
    %46 = arith.addf %43, %45 : vector<256x128xf32>
    %47 = math.tanh %46 : vector<256x128xf32>
    %48 = arith.addf %47, %39 : vector<256x128xf32>
    %49 = arith.truncf %48 : vector<256x128xf32> to vector<256x128xbf16>
    %c3 = arith.constant 3 : index
    %c0_13 = arith.constant 0 : index
    %c0_14 = arith.constant 0 : index
    %50 = vector.load %arg4[%c3, %c0_13, %c0_14] : memref<4x128x128xbf16, #tpu.memory_space<vmem>>, vector<1x128x128xbf16>
    %51 = vector.shape_cast %50 : vector<1x128x128xbf16> to vector<128x128xbf16>
    %cst_15 = arith.constant dense<0.000000e+00> : vector<256x128xf32>
    %52 = tpu.matmul %49, %51, %cst_15 {dimension_numbers = #tpu.dot_dimension_numbers<[1], [0], [0], [1], [0, 0, 1, 1], [], []>} : vector<256x128xbf16>, vector<128x128xbf16>, vector<256x128xf32> -> vector<256x128xf32>
    %53 = vector.extract_strided_slice %1 {offsets = [4, 0], sizes = [1, 128], strides = [1, 1]} : vector<6x128xf32> to vector<1x128xf32>
    %54 = vector.broadcast %53 : vector<1x128xf32> to vector<256x128xf32>
    %55 = arith.addf %52, %54 : vector<256x128xf32>
    %56 = math.tanh %55 : vector<256x128xf32>
    %57 = arith.truncf %56 : vector<256x128xf32> to vector<256x128xbf16>
    %c0_16 = arith.constant 0 : index
    %c0_17 = arith.constant 0 : index
    %58 = vector.load %arg5[%c0_16, %c0_17] : memref<128x8xbf16, #tpu.memory_space<vmem>>, vector<128x8xbf16>
    %cst_18 = arith.constant dense<0.000000e+00> : vector<256x8xf32>
    %59 = tpu.matmul %57, %58, %cst_18 {dimension_numbers = #tpu.dot_dimension_numbers<[1], [0], [0], [1], [0, 0, 1, 1], [], []>} : vector<256x128xbf16>, vector<128x8xbf16>, vector<256x8xf32> -> vector<256x8xf32>
    %60 = vector.broadcast %2 : vector<1x8xf32> to vector<256x8xf32>
    %61 = arith.addf %59, %60 : vector<256x8xf32>
    %62 = arith.index_cast %4 : i32 to index
    %c0_19 = arith.constant 0 : index
    %63 = vector.load %arg6[%62, %c0_19] : memref<1024x8xf32, #tpu.memory_space<vmem>>, vector<256x8xf32>
    tpu.vector_store %arg6[%62, %c0_19], %61 {strides = array<i32>} : memref<1024x8xf32, #tpu.memory_space<vmem>>, vector<256x8xf32>,
    %c1_i32 = arith.constant 1 : i32
    %c256_i32_20 = arith.constant 256 : i32
    %64 = arith.muli %c1_i32, %c256_i32_20 : i32
    %65 = tpu.assume_multiple %64, 256 : i32
    %66 = arith.index_cast %65 : i32 to index
    %c0_21 = arith.constant 0 : index
    %67 = vector.load %arg1[%66, %c0_21] : memref<1024x2xf32, #tpu.memory_space<vmem>>, vector<256x2xf32>
    %68 = vector.extract_strided_slice %67 {offsets = [0, 0], sizes = [256, 1], strides = [1, 1]} : vector<256x2xf32> to vector<256x1xf32>
    %69 = vector.extract_strided_slice %0 {offsets = [0, 0], sizes = [1, 128], strides = [1, 1]} : vector<2x128xf32> to vector<1x128xf32>
    %70 = vector.broadcast %68 : vector<256x1xf32> to vector<256x128xf32>
    %71 = vector.broadcast %69 : vector<1x128xf32> to vector<256x128xf32>
    %72 = arith.mulf %70, %71 : vector<256x128xf32>
    %73 = vector.extract_strided_slice %67 {offsets = [0, 1], sizes = [256, 1], strides = [1, 1]} : vector<256x2xf32> to vector<256x1xf32>
    %74 = vector.extract_strided_slice %0 {offsets = [1, 0], sizes = [1, 128], strides = [1, 1]} : vector<2x128xf32> to vector<1x128xf32>
    %75 = vector.broadcast %73 : vector<256x1xf32> to vector<256x128xf32>
    %76 = vector.broadcast %74 : vector<1x128xf32> to vector<256x128xf32>
    %77 = arith.mulf %75, %76 : vector<256x128xf32>
    %78 = arith.addf %72, %77 : vector<256x128xf32>
    %79 = vector.extract_strided_slice %1 {offsets = [0, 0], sizes = [1, 128], strides = [1, 1]} : vector<6x128xf32> to vector<1x128xf32>
    %80 = vector.broadcast %79 : vector<1x128xf32> to vector<256x128xf32>
    %81 = arith.addf %78, %80 : vector<256x128xf32>
    %82 = math.tanh %81 : vector<256x128xf32>
    %83 = arith.truncf %82 : vector<256x128xf32> to vector<256x128xbf16>
    %c0_22 = arith.constant 0 : index
    %c0_23 = arith.constant 0 : index
    %c0_24 = arith.constant 0 : index
    %84 = vector.load %arg4[%c0_22, %c0_23, %c0_24] : memref<4x128x128xbf16, #tpu.memory_space<vmem>>, vector<1x128x128xbf16>
    %85 = vector.shape_cast %84 : vector<1x128x128xbf16> to vector<128x128xbf16>
    %cst_25 = arith.constant dense<0.000000e+00> : vector<256x128xf32>
    %86 = tpu.matmul %83, %85, %cst_25 {dimension_numbers = #tpu.dot_dimension_numbers<[1], [0], [0], [1], [0, 0, 1, 1], [], []>} : vector<256x128xbf16>, vector<128x128xbf16>, vector<256x128xf32> -> vector<256x128xf32>
    %87 = vector.extract_strided_slice %1 {offsets = [1, 0], sizes = [1, 128], strides = [1, 1]} : vector<6x128xf32> to vector<1x128xf32>
    %88 = vector.broadcast %87 : vector<1x128xf32> to vector<256x128xf32>
    %89 = arith.addf %86, %88 : vector<256x128xf32>
    %90 = math.tanh %89 : vector<256x128xf32>
    %91 = arith.addf %90, %82 : vector<256x128xf32>
    %92 = arith.truncf %91 : vector<256x128xf32> to vector<256x128xbf16>
    %c1_26 = arith.constant 1 : index
    %c0_27 = arith.constant 0 : index
    %c0_28 = arith.constant 0 : index
    %93 = vector.load %arg4[%c1_26, %c0_27, %c0_28] : memref<4x128x128xbf16, #tpu.memory_space<vmem>>, vector<1x128x128xbf16>
    %94 = vector.shape_cast %93 : vector<1x128x128xbf16> to vector<128x128xbf16>
    %cst_29 = arith.constant dense<0.000000e+00> : vector<256x128xf32>
    %95 = tpu.matmul %92, %94, %cst_29 {dimension_numbers = #tpu.dot_dimension_numbers<[1], [0], [0], [1], [0, 0, 1, 1], [], []>} : vector<256x128xbf16>, vector<128x128xbf16>, vector<256x128xf32> -> vector<256x128xf32>
    %96 = vector.extract_strided_slice %1 {offsets = [2, 0], sizes = [1, 128], strides = [1, 1]} : vector<6x128xf32> to vector<1x128xf32>
    %97 = vector.broadcast %96 : vector<1x128xf32> to vector<256x128xf32>
    %98 = arith.addf %95, %97 : vector<256x128xf32>
    %99 = math.tanh %98 : vector<256x128xf32>
    %100 = arith.addf %99, %91 : vector<256x128xf32>
    %101 = arith.truncf %100 : vector<256x128xf32> to vector<256x128xbf16>
    %c2_30 = arith.constant 2 : index
    %c0_31 = arith.constant 0 : index
    %c0_32 = arith.constant 0 : index
    %102 = vector.load %arg4[%c2_30, %c0_31, %c0_32] : memref<4x128x128xbf16, #tpu.memory_space<vmem>>, vector<1x128x128xbf16>
    %103 = vector.shape_cast %102 : vector<1x128x128xbf16> to vector<128x128xbf16>
    %cst_33 = arith.constant dense<0.000000e+00> : vector<256x128xf32>
    %104 = tpu.matmul %101, %103, %cst_33 {dimension_numbers = #tpu.dot_dimension_numbers<[1], [0], [0], [1], [0, 0, 1, 1], [], []>} : vector<256x128xbf16>, vector<128x128xbf16>, vector<256x128xf32> -> vector<256x128xf32>
    %105 = vector.extract_strided_slice %1 {offsets = [3, 0], sizes = [1, 128], strides = [1, 1]} : vector<6x128xf32> to vector<1x128xf32>
    %106 = vector.broadcast %105 : vector<1x128xf32> to vector<256x128xf32>
    %107 = arith.addf %104, %106 : vector<256x128xf32>
    %108 = math.tanh %107 : vector<256x128xf32>
    %109 = arith.addf %108, %100 : vector<256x128xf32>
    %110 = arith.truncf %109 : vector<256x128xf32> to vector<256x128xbf16>
    %c3_34 = arith.constant 3 : index
    %c0_35 = arith.constant 0 : index
    %c0_36 = arith.constant 0 : index
    %111 = vector.load %arg4[%c3_34, %c0_35, %c0_36] : memref<4x128x128xbf16, #tpu.memory_space<vmem>>, vector<1x128x128xbf16>
    %112 = vector.shape_cast %111 : vector<1x128x128xbf16> to vector<128x128xbf16>
    %cst_37 = arith.constant dense<0.000000e+00> : vector<256x128xf32>
    %113 = tpu.matmul %110, %112, %cst_37 {dimension_numbers = #tpu.dot_dimension_numbers<[1], [0], [0], [1], [0, 0, 1, 1], [], []>} : vector<256x128xbf16>, vector<128x128xbf16>, vector<256x128xf32> -> vector<256x128xf32>
    %114 = vector.extract_strided_slice %1 {offsets = [4, 0], sizes = [1, 128], strides = [1, 1]} : vector<6x128xf32> to vector<1x128xf32>
    %115 = vector.broadcast %114 : vector<1x128xf32> to vector<256x128xf32>
    %116 = arith.addf %113, %115 : vector<256x128xf32>
    %117 = math.tanh %116 : vector<256x128xf32>
    %118 = arith.truncf %117 : vector<256x128xf32> to vector<256x128xbf16>
    %c0_38 = arith.constant 0 : index
    %c0_39 = arith.constant 0 : index
    %119 = vector.load %arg5[%c0_38, %c0_39] : memref<128x8xbf16, #tpu.memory_space<vmem>>, vector<128x8xbf16>
    %cst_40 = arith.constant dense<0.000000e+00> : vector<256x8xf32>
    %120 = tpu.matmul %118, %119, %cst_40 {dimension_numbers = #tpu.dot_dimension_numbers<[1], [0], [0], [1], [0, 0, 1, 1], [], []>} : vector<256x128xbf16>, vector<128x8xbf16>, vector<256x8xf32> -> vector<256x8xf32>
    %121 = vector.broadcast %2 : vector<1x8xf32> to vector<256x8xf32>
    %122 = arith.addf %120, %121 : vector<256x8xf32>
    %123 = arith.index_cast %65 : i32 to index
    %c0_41 = arith.constant 0 : index
    %124 = vector.load %arg6[%123, %c0_41] : memref<1024x8xf32, #tpu.memory_space<vmem>>, vector<256x8xf32>
    tpu.vector_store %arg6[%123, %c0_41], %122 {strides = array<i32>} : memref<1024x8xf32, #tpu.memory_space<vmem>>, vector<256x8xf32>,
    %c2_i32 = arith.constant 2 : i32
    %c256_i32_42 = arith.constant 256 : i32
    %125 = arith.muli %c2_i32, %c256_i32_42 : i32
    %126 = tpu.assume_multiple %125, 256 : i32
    %127 = arith.index_cast %126 : i32 to index
    %c0_43 = arith.constant 0 : index
    %128 = vector.load %arg1[%127, %c0_43] : memref<1024x2xf32, #tpu.memory_space<vmem>>, vector<256x2xf32>
    %129 = vector.extract_strided_slice %128 {offsets = [0, 0], sizes = [256, 1], strides = [1, 1]} : vector<256x2xf32> to vector<256x1xf32>
    %130 = vector.extract_strided_slice %0 {offsets = [0, 0], sizes = [1, 128], strides = [1, 1]} : vector<2x128xf32> to vector<1x128xf32>
    %131 = vector.broadcast %129 : vector<256x1xf32> to vector<256x128xf32>
    %132 = vector.broadcast %130 : vector<1x128xf32> to vector<256x128xf32>
    %133 = arith.mulf %131, %132 : vector<256x128xf32>
    %134 = vector.extract_strided_slice %128 {offsets = [0, 1], sizes = [256, 1], strides = [1, 1]} : vector<256x2xf32> to vector<256x1xf32>
    %135 = vector.extract_strided_slice %0 {offsets = [1, 0], sizes = [1, 128], strides = [1, 1]} : vector<2x128xf32> to vector<1x128xf32>
    %136 = vector.broadcast %134 : vector<256x1xf32> to vector<256x128xf32>
    %137 = vector.broadcast %135 : vector<1x128xf32> to vector<256x128xf32>
    %138 = arith.mulf %136, %137 : vector<256x128xf32>
    %139 = arith.addf %133, %138 : vector<256x128xf32>
    %140 = vector.extract_strided_slice %1 {offsets = [0, 0], sizes = [1, 128], strides = [1, 1]} : vector<6x128xf32> to vector<1x128xf32>
    %141 = vector.broadcast %140 : vector<1x128xf32> to vector<256x128xf32>
    %142 = arith.addf %139, %141 : vector<256x128xf32>
    %143 = math.tanh %142 : vector<256x128xf32>
    %144 = arith.truncf %143 : vector<256x128xf32> to vector<256x128xbf16>
    %c0_44 = arith.constant 0 : index
    %c0_45 = arith.constant 0 : index
    %c0_46 = arith.constant 0 : index
    %145 = vector.load %arg4[%c0_44, %c0_45, %c0_46] : memref<4x128x128xbf16, #tpu.memory_space<vmem>>, vector<1x128x128xbf16>
    %146 = vector.shape_cast %145 : vector<1x128x128xbf16> to vector<128x128xbf16>
    %cst_47 = arith.constant dense<0.000000e+00> : vector<256x128xf32>
    %147 = tpu.matmul %144, %146, %cst_47 {dimension_numbers = #tpu.dot_dimension_numbers<[1], [0], [0], [1], [0, 0, 1, 1], [], []>} : vector<256x128xbf16>, vector<128x128xbf16>, vector<256x128xf32> -> vector<256x128xf32>
    %148 = vector.extract_strided_slice %1 {offsets = [1, 0], sizes = [1, 128], strides = [1, 1]} : vector<6x128xf32> to vector<1x128xf32>
    %149 = vector.broadcast %148 : vector<1x128xf32> to vector<256x128xf32>
    %150 = arith.addf %147, %149 : vector<256x128xf32>
    %151 = math.tanh %150 : vector<256x128xf32>
    %152 = arith.addf %151, %143 : vector<256x128xf32>
    %153 = arith.truncf %152 : vector<256x128xf32> to vector<256x128xbf16>
    %c1_48 = arith.constant 1 : index
    %c0_49 = arith.constant 0 : index
    %c0_50 = arith.constant 0 : index
    %154 = vector.load %arg4[%c1_48, %c0_49, %c0_50] : memref<4x128x128xbf16, #tpu.memory_space<vmem>>, vector<1x128x128xbf16>
    %155 = vector.shape_cast %154 : vector<1x128x128xbf16> to vector<128x128xbf16>
    %cst_51 = arith.constant dense<0.000000e+00> : vector<256x128xf32>
    %156 = tpu.matmul %153, %155, %cst_51 {dimension_numbers = #tpu.dot_dimension_numbers<[1], [0], [0], [1], [0, 0, 1, 1], [], []>} : vector<256x128xbf16>, vector<128x128xbf16>, vector<256x128xf32> -> vector<256x128xf32>
    %157 = vector.extract_strided_slice %1 {offsets = [2, 0], sizes = [1, 128], strides = [1, 1]} : vector<6x128xf32> to vector<1x128xf32>
    %158 = vector.broadcast %157 : vector<1x128xf32> to vector<256x128xf32>
    %159 = arith.addf %156, %158 : vector<256x128xf32>
    %160 = math.tanh %159 : vector<256x128xf32>
    %161 = arith.addf %160, %152 : vector<256x128xf32>
    %162 = arith.truncf %161 : vector<256x128xf32> to vector<256x128xbf16>
    %c2_52 = arith.constant 2 : index
    %c0_53 = arith.constant 0 : index
    %c0_54 = arith.constant 0 : index
    %163 = vector.load %arg4[%c2_52, %c0_53, %c0_54] : memref<4x128x128xbf16, #tpu.memory_space<vmem>>, vector<1x128x128xbf16>
    %164 = vector.shape_cast %163 : vector<1x128x128xbf16> to vector<128x128xbf16>
    %cst_55 = arith.constant dense<0.000000e+00> : vector<256x128xf32>
    %165 = tpu.matmul %162, %164, %cst_55 {dimension_numbers = #tpu.dot_dimension_numbers<[1], [0], [0], [1], [0, 0, 1, 1], [], []>} : vector<256x128xbf16>, vector<128x128xbf16>, vector<256x128xf32> -> vector<256x128xf32>
    %166 = vector.extract_strided_slice %1 {offsets = [3, 0], sizes = [1, 128], strides = [1, 1]} : vector<6x128xf32> to vector<1x128xf32>
    %167 = vector.broadcast %166 : vector<1x128xf32> to vector<256x128xf32>
    %168 = arith.addf %165, %167 : vector<256x128xf32>
    %169 = math.tanh %168 : vector<256x128xf32>
    %170 = arith.addf %169, %161 : vector<256x128xf32>
    %171 = arith.truncf %170 : vector<256x128xf32> to vector<256x128xbf16>
    %c3_56 = arith.constant 3 : index
    %c0_57 = arith.constant 0 : index
    %c0_58 = arith.constant 0 : index
    %172 = vector.load %arg4[%c3_56, %c0_57, %c0_58] : memref<4x128x128xbf16, #tpu.memory_space<vmem>>, vector<1x128x128xbf16>
    %173 = vector.shape_cast %172 : vector<1x128x128xbf16> to vector<128x128xbf16>
    %cst_59 = arith.constant dense<0.000000e+00> : vector<256x128xf32>
    %174 = tpu.matmul %171, %173, %cst_59 {dimension_numbers = #tpu.dot_dimension_numbers<[1], [0], [0], [1], [0, 0, 1, 1], [], []>} : vector<256x128xbf16>, vector<128x128xbf16>, vector<256x128xf32> -> vector<256x128xf32>
    %175 = vector.extract_strided_slice %1 {offsets = [4, 0], sizes = [1, 128], strides = [1, 1]} : vector<6x128xf32> to vector<1x128xf32>
    %176 = vector.broadcast %175 : vector<1x128xf32> to vector<256x128xf32>
    %177 = arith.addf %174, %176 : vector<256x128xf32>
    %178 = math.tanh %177 : vector<256x128xf32>
    %179 = arith.truncf %178 : vector<256x128xf32> to vector<256x128xbf16>
    %c0_60 = arith.constant 0 : index
    %c0_61 = arith.constant 0 : index
    %180 = vector.load %arg5[%c0_60, %c0_61] : memref<128x8xbf16, #tpu.memory_space<vmem>>, vector<128x8xbf16>
    %cst_62 = arith.constant dense<0.000000e+00> : vector<256x8xf32>
    %181 = tpu.matmul %179, %180, %cst_62 {dimension_numbers = #tpu.dot_dimension_numbers<[1], [0], [0], [1], [0, 0, 1, 1], [], []>} : vector<256x128xbf16>, vector<128x8xbf16>, vector<256x8xf32> -> vector<256x8xf32>
    %182 = vector.broadcast %2 : vector<1x8xf32> to vector<256x8xf32>
    %183 = arith.addf %181, %182 : vector<256x8xf32>
    %184 = arith.index_cast %126 : i32 to index
    %c0_63 = arith.constant 0 : index
    %185 = vector.load %arg6[%184, %c0_63] : memref<1024x8xf32, #tpu.memory_space<vmem>>, vector<256x8xf32>
    tpu.vector_store %arg6[%184, %c0_63], %183 {strides = array<i32>} : memref<1024x8xf32, #tpu.memory_space<vmem>>, vector<256x8xf32>,
    %c3_i32 = arith.constant 3 : i32
    %c256_i32_64 = arith.constant 256 : i32
    %186 = arith.muli %c3_i32, %c256_i32_64 : i32
    %187 = tpu.assume_multiple %186, 256 : i32
    %188 = arith.index_cast %187 : i32 to index
    %c0_65 = arith.constant 0 : index
    %189 = vector.load %arg1[%188, %c0_65] : memref<1024x2xf32, #tpu.memory_space<vmem>>, vector<256x2xf32>
    %190 = vector.extract_strided_slice %189 {offsets = [0, 0], sizes = [256, 1], strides = [1, 1]} : vector<256x2xf32> to vector<256x1xf32>
    %191 = vector.extract_strided_slice %0 {offsets = [0, 0], sizes = [1, 128], strides = [1, 1]} : vector<2x128xf32> to vector<1x128xf32>
    %192 = vector.broadcast %190 : vector<256x1xf32> to vector<256x128xf32>
    %193 = vector.broadcast %191 : vector<1x128xf32> to vector<256x128xf32>
    %194 = arith.mulf %192, %193 : vector<256x128xf32>
    %195 = vector.extract_strided_slice %189 {offsets = [0, 1], sizes = [256, 1], strides = [1, 1]} : vector<256x2xf32> to vector<256x1xf32>
    %196 = vector.extract_strided_slice %0 {offsets = [1, 0], sizes = [1, 128], strides = [1, 1]} : vector<2x128xf32> to vector<1x128xf32>
    %197 = vector.broadcast %195 : vector<256x1xf32> to vector<256x128xf32>
    %198 = vector.broadcast %196 : vector<1x128xf32> to vector<256x128xf32>
    %199 = arith.mulf %197, %198 : vector<256x128xf32>
    %200 = arith.addf %194, %199 : vector<256x128xf32>
    %201 = vector.extract_strided_slice %1 {offsets = [0, 0], sizes = [1, 128], strides = [1, 1]} : vector<6x128xf32> to vector<1x128xf32>
    %202 = vector.broadcast %201 : vector<1x128xf32> to vector<256x128xf32>
    %203 = arith.addf %200, %202 : vector<256x128xf32>
    %204 = math.tanh %203 : vector<256x128xf32>
    %205 = arith.truncf %204 : vector<256x128xf32> to vector<256x128xbf16>
    %c0_66 = arith.constant 0 : index
    %c0_67 = arith.constant 0 : index
    %c0_68 = arith.constant 0 : index
    %206 = vector.load %arg4[%c0_66, %c0_67, %c0_68] : memref<4x128x128xbf16, #tpu.memory_space<vmem>>, vector<1x128x128xbf16>
    %207 = vector.shape_cast %206 : vector<1x128x128xbf16> to vector<128x128xbf16>
    %cst_69 = arith.constant dense<0.000000e+00> : vector<256x128xf32>
    %208 = tpu.matmul %205, %207, %cst_69 {dimension_numbers = #tpu.dot_dimension_numbers<[1], [0], [0], [1], [0, 0, 1, 1], [], []>} : vector<256x128xbf16>, vector<128x128xbf16>, vector<256x128xf32> -> vector<256x128xf32>
    %209 = vector.extract_strided_slice %1 {offsets = [1, 0], sizes = [1, 128], strides = [1, 1]} : vector<6x128xf32> to vector<1x128xf32>
    %210 = vector.broadcast %209 : vector<1x128xf32> to vector<256x128xf32>
    %211 = arith.addf %208, %210 : vector<256x128xf32>
    %212 = math.tanh %211 : vector<256x128xf32>
    %213 = arith.addf %212, %204 : vector<256x128xf32>
    %214 = arith.truncf %213 : vector<256x128xf32> to vector<256x128xbf16>
    %c1_70 = arith.constant 1 : index
    %c0_71 = arith.constant 0 : index
    %c0_72 = arith.constant 0 : index
    %215 = vector.load %arg4[%c1_70, %c0_71, %c0_72] : memref<4x128x128xbf16, #tpu.memory_space<vmem>>, vector<1x128x128xbf16>
    %216 = vector.shape_cast %215 : vector<1x128x128xbf16> to vector<128x128xbf16>
    %cst_73 = arith.constant dense<0.000000e+00> : vector<256x128xf32>
    %217 = tpu.matmul %214, %216, %cst_73 {dimension_numbers = #tpu.dot_dimension_numbers<[1], [0], [0], [1], [0, 0, 1, 1], [], []>} : vector<256x128xbf16>, vector<128x128xbf16>, vector<256x128xf32> -> vector<256x128xf32>
    %218 = vector.extract_strided_slice %1 {offsets = [2, 0], sizes = [1, 128], strides = [1, 1]} : vector<6x128xf32> to vector<1x128xf32>
    %219 = vector.broadcast %218 : vector<1x128xf32> to vector<256x128xf32>
    %220 = arith.addf %217, %219 : vector<256x128xf32>
    %221 = math.tanh %220 : vector<256x128xf32>
    %222 = arith.addf %221, %213 : vector<256x128xf32>
    %223 = arith.truncf %222 : vector<256x128xf32> to vector<256x128xbf16>
    %c2_74 = arith.constant 2 : index
    %c0_75 = arith.constant 0 : index
    %c0_76 = arith.constant 0 : index
    %224 = vector.load %arg4[%c2_74, %c0_75, %c0_76] : memref<4x128x128xbf16, #tpu.memory_space<vmem>>, vector<1x128x128xbf16>
    %225 = vector.shape_cast %224 : vector<1x128x128xbf16> to vector<128x128xbf16>
    %cst_77 = arith.constant dense<0.000000e+00> : vector<256x128xf32>
    %226 = tpu.matmul %223, %225, %cst_77 {dimension_numbers = #tpu.dot_dimension_numbers<[1], [0], [0], [1], [0, 0, 1, 1], [], []>} : vector<256x128xbf16>, vector<128x128xbf16>, vector<256x128xf32> -> vector<256x128xf32>
    %227 = vector.extract_strided_slice %1 {offsets = [3, 0], sizes = [1, 128], strides = [1, 1]} : vector<6x128xf32> to vector<1x128xf32>
    %228 = vector.broadcast %227 : vector<1x128xf32> to vector<256x128xf32>
    %229 = arith.addf %226, %228 : vector<256x128xf32>
    %230 = math.tanh %229 : vector<256x128xf32>
    %231 = arith.addf %230, %222 : vector<256x128xf32>
    %232 = arith.truncf %231 : vector<256x128xf32> to vector<256x128xbf16>
    %c3_78 = arith.constant 3 : index
    %c0_79 = arith.constant 0 : index
    %c0_80 = arith.constant 0 : index
    %233 = vector.load %arg4[%c3_78, %c0_79, %c0_80] : memref<4x128x128xbf16, #tpu.memory_space<vmem>>, vector<1x128x128xbf16>
    %234 = vector.shape_cast %233 : vector<1x128x128xbf16> to vector<128x128xbf16>
    %cst_81 = arith.constant dense<0.000000e+00> : vector<256x128xf32>
    %235 = tpu.matmul %232, %234, %cst_81 {dimension_numbers = #tpu.dot_dimension_numbers<[1], [0], [0], [1], [0, 0, 1, 1], [], []>} : vector<256x128xbf16>, vector<128x128xbf16>, vector<256x128xf32> -> vector<256x128xf32>
    %236 = vector.extract_strided_slice %1 {offsets = [4, 0], sizes = [1, 128], strides = [1, 1]} : vector<6x128xf32> to vector<1x128xf32>
    %237 = vector.broadcast %236 : vector<1x128xf32> to vector<256x128xf32>
    %238 = arith.addf %235, %237 : vector<256x128xf32>
    %239 = math.tanh %238 : vector<256x128xf32>
    %240 = arith.truncf %239 : vector<256x128xf32> to vector<256x128xbf16>
    %c0_82 = arith.constant 0 : index
    %c0_83 = arith.constant 0 : index
    %241 = vector.load %arg5[%c0_82, %c0_83] : memref<128x8xbf16, #tpu.memory_space<vmem>>, vector<128x8xbf16>
    %cst_84 = arith.constant dense<0.000000e+00> : vector<256x8xf32>
    %242 = tpu.matmul %240, %241, %cst_84 {dimension_numbers = #tpu.dot_dimension_numbers<[1], [0], [0], [1], [0, 0, 1, 1], [], []>} : vector<256x128xbf16>, vector<128x8xbf16>, vector<256x8xf32> -> vector<256x8xf32>
    %243 = vector.broadcast %2 : vector<1x8xf32> to vector<256x8xf32>
    %244 = arith.addf %242, %243 : vector<256x8xf32>
    %245 = arith.index_cast %187 : i32 to index
    %c0_85 = arith.constant 0 : index
    %246 = vector.load %arg6[%245, %c0_85] : memref<1024x8xf32, #tpu.memory_space<vmem>>, vector<256x8xf32>
    tpu.vector_store %arg6[%245, %c0_85], %244 {strides = array<i32>} : memref<1024x8xf32, #tpu.memory_space<vmem>>, vector<256x8xf32>,
    %c4_i32 = arith.constant 4 : i32
    return
  }
  func.func @transform_0(%arg0: i32) -> (i32, i32) {
    %c0_i32 = arith.constant 0 : i32
    %c0_i32_0 = arith.constant 0 : i32
    return %arg0, %c0_i32 : i32, i32
  }
  func.func @transform_1(%arg0: i32) -> (i32, i32) {
    %c0_i32 = arith.constant 0 : i32
    %c0_i32_0 = arith.constant 0 : i32
    %c0_i32_1 = arith.constant 0 : i32
    return %c0_i32, %c0_i32_0 : i32, i32
  }
  func.func @transform_2(%arg0: i32) -> (i32, i32) {
    %c0_i32 = arith.constant 0 : i32
    %c0_i32_0 = arith.constant 0 : i32
    %c0_i32_1 = arith.constant 0 : i32
    return %c0_i32, %c0_i32_0 : i32, i32
  }
  func.func @transform_3(%arg0: i32) -> (i32, i32, i32) {
    %c0_i32 = arith.constant 0 : i32
    %c0_i32_0 = arith.constant 0 : i32
    %c0_i32_1 = arith.constant 0 : i32
    %c0_i32_2 = arith.constant 0 : i32
    return %c0_i32, %c0_i32_0, %c0_i32_1 : i32, i32, i32
  }
  func.func @transform_4(%arg0: i32) -> (i32, i32) {
    %c0_i32 = arith.constant 0 : i32
    %c0_i32_0 = arith.constant 0 : i32
    %c0_i32_1 = arith.constant 0 : i32
    return %c0_i32, %c0_i32_0 : i32, i32
  }
  func.func @transform_5(%arg0: i32) -> (i32, i32) {
    %c0_i32 = arith.constant 0 : i32
    %c0_i32_0 = arith.constant 0 : i32
    return %arg0, %c0_i32 : i32, i32
  }
}

</mosaic_0001>

<llo_original>
// kernel: tpu_custom_call.1
$region0: #{tpu_custom_call.1}
  #allocation0 [shape = 'u32[]', space=smem, size = 0x4, offset = 0x4, fixed_abs, tag = 'smem constant byte address 0x4 - core index']
  #allocation1 [shape = 'u32[72,128]{1,0:T(1,128)}', space=vmem, size = 0x9000, scoped, tag = 'internal scratch']
  %s0 = inlined_call_operand.vmem [shape: f32[1024,2], index: 0, kind: input, shape index: {}]
  %s1 = inlined_call_operand.vmem [shape: f32[2,128], index: 1, kind: input, shape index: {}]
  %s2 = inlined_call_operand.vmem [shape: f32[6,128], index: 2, kind: input, shape index: {}]
  %s3 = inlined_call_operand.vmem [shape: bf16[4,128,128], index: 3, kind: input, shape index: {}]
  %s4 = inlined_call_operand.vmem [shape: bf16[128,8], index: 4, kind: input, shape index: {}]
  %s5 = inlined_call_operand.vmem [shape: f32[1024,8], index: 5, kind: output, shape index: {}]
  %s6 = sld [smem:[#allocation0]]
  $region30: #{tpu_custom_call.1} parent=0
    _
  %s8 = ssub.s32 1, %s6
  %s9 = scalar_select 0, %s8, %s6
  // Predicated region
  $region2: #{tpu_custom_call.1} parent=0 // pred_check
    _
  $region3: #{tpu_custom_call.1} parent=0 // pred_check_branch
    %11 = sbr.rel (0) target = $region5
  $region4: #{tpu_custom_call.1} parent=0 // pred_region
    _
  $region5: #{tpu_custom_call.1} parent=0 // pred_fallthru
    _
  // Predicated region
  $region6: #{tpu_custom_call.1} parent=0 // pred_check
    _
  $region7: #{tpu_custom_call.1} parent=0 // pred_check_branch
    %13 = sbr.rel (0) target = $region9
  $region8: #{tpu_custom_call.1} parent=0 // pred_region
    _
  $region9: #{tpu_custom_call.1} parent=0 // pred_fallthru
    _
  // Predicated region
  $region10: #{tpu_custom_call.1} parent=0 // pred_check
    _
  $region11: #{tpu_custom_call.1} parent=0 // pred_check_branch
    %15 = sbr.rel (0) target = $region13
  $region12: #{tpu_custom_call.1} parent=0 // pred_region
    _
  $region13: #{tpu_custom_call.1} parent=0 // pred_fallthru
    _
  // Predicated region
  $region14: #{tpu_custom_call.1} parent=0 // pred_check
    _
  $region15: #{tpu_custom_call.1} parent=0 // pred_check_branch
    %17 = sbr.rel (0) target = $region17
  $region16: #{tpu_custom_call.1} parent=0 // pred_region
    _
  $region17: #{tpu_custom_call.1} parent=0 // pred_fallthru
    _
  // Predicated region
  $region18: #{tpu_custom_call.1} parent=0 // pred_check
    _
  $region19: #{tpu_custom_call.1} parent=0 // pred_check_branch
    %19 = sbr.rel (0) target = $region21
  $region20: #{tpu_custom_call.1} parent=0 // pred_region
    _
  $region21: #{tpu_custom_call.1} parent=0 // pred_fallthru
    _
  %v20 = vld [vmem:[%s1] sm:$0x3]
  %v21 = vld [vmem:[%s2] sm:$0x3f]
  %v22 = vld [vmem:[%s0] sm:$0xff]
  %v23 = vld [vmem:[%s0 + $0x8] sm:$0xff]
  %v24 = vld [vmem:[%s0 + $0x10] sm:$0xff]
  %v25 = vld [vmem:[%s0 + $0x18] sm:$0xff]
  %v26 = vld [vmem:[%s0 + $0x20] sm:$0xff]
  %v27 = vld [vmem:[%s0 + $0x28] sm:$0xff]
  %v28 = vld [vmem:[%s0 + $0x30] sm:$0xff]
  %v29 = vld [vmem:[%s0 + $0x38] sm:$0xff]
  %v30 = vld [vmem:[%s0 + $0x40] sm:$0xff]
  %v31 = vld [vmem:[%s0 + $0x48] sm:$0xff]
  %v32 = vld [vmem:[%s0 + $0x50] sm:$0xff]
  %v33 = vld [vmem:[%s0 + $0x58] sm:$0xff]
  %v34 = vld [vmem:[%s0 + $0x60] sm:$0xff]
  %v35 = vld [vmem:[%s0 + $0x68] sm:$0xff]
  %v36 = vld [vmem:[%s0 + $0x70] sm:$0xff]
  %v37 = vld [vmem:[%s0 + $0x78] sm:$0xff]
  %v38 = vld [vmem:[%s0 + $0x80] sm:$0xff]
  %v39 = vld [vmem:[%s0 + $0x88] sm:$0xff]
  %v40 = vld [vmem:[%s0 + $0x90] sm:$0xff]
  %v41 = vld [vmem:[%s0 + $0x98] sm:$0xff]
  %v42 = vld [vmem:[%s0 + $0xa0] sm:$0xff]
  %v43 = vld [vmem:[%s0 + $0xa8] sm:$0xff]
  %v44 = vld [vmem:[%s0 + $0xb0] sm:$0xff]
  %v45 = vld [vmem:[%s0 + $0xb8] sm:$0xff]
  %v46 = vld [vmem:[%s0 + $0xc0] sm:$0xff]
  %v47 = vld [vmem:[%s0 + $0xc8] sm:$0xff]
  %v48 = vld [vmem:[%s0 + $0xd0] sm:$0xff]
  %v49 = vld [vmem:[%s0 + $0xd8] sm:$0xff]
  %v50 = vld [vmem:[%s0 + $0xe0] sm:$0xff]
  %v51 = vld [vmem:[%s0 + $0xe8] sm:$0xff]
  %v52 = vld [vmem:[%s0 + $0xf0] sm:$0xff]
  %v53 = vld [vmem:[%s0 + $0xf8] sm:$0xff]
  %55 = vset.pattern.permute.xlu0 0
  %56 = vperm.xlu0 %55, %v22
  %v57 = vpop.permute.xlu0 %56
  %60 = vset.pattern.permute.xlu0 0
  %61 = vperm.xlu0 %60, %v23
  %v62 = vpop.permute.xlu0 %61
  %65 = vset.pattern.permute.xlu0 0
  %66 = vperm.xlu0 %65, %v24
  %v67 = vpop.permute.xlu0 %66
  %70 = vset.pattern.permute.xlu0 0
  %71 = vperm.xlu0 %70, %v25
  %v72 = vpop.permute.xlu0 %71
  %75 = vset.pattern.permute.xlu0 0
  %76 = vperm.xlu0 %75, %v26
  %v77 = vpop.permute.xlu0 %76
  %80 = vset.pattern.permute.xlu0 0
  %81 = vperm.xlu0 %80, %v27
  %v82 = vpop.permute.xlu0 %81
  %85 = vset.pattern.permute.xlu0 0
  %86 = vperm.xlu0 %85, %v28
  %v87 = vpop.permute.xlu0 %86
  %90 = vset.pattern.permute.xlu0 0
  %91 = vperm.xlu0 %90, %v29
  %v92 = vpop.permute.xlu0 %91
  %95 = vset.pattern.permute.xlu0 0
  %96 = vperm.xlu0 %95, %v30
  %v97 = vpop.permute.xlu0 %96
  %100 = vset.pattern.permute.xlu0 0
  %101 = vperm.xlu0 %100, %v31
  %v102 = vpop.permute.xlu0 %101
  %105 = vset.pattern.permute.xlu0 0
  %106 = vperm.xlu0 %105, %v32
  %v107 = vpop.permute.xlu0 %106
  %110 = vset.pattern.permute.xlu0 0
  %111 = vperm.xlu0 %110, %v33
  %v112 = vpop.permute.xlu0 %111
  %115 = vset.pattern.permute.xlu0 0
  %116 = vperm.xlu0 %115, %v34
  %v117 = vpop.permute.xlu0 %116
  %120 = vset.pattern.permute.xlu0 0
  %121 = vperm.xlu0 %120, %v35
  %v122 = vpop.permute.xlu0 %121
  %125 = vset.pattern.permute.xlu0 0
  %126 = vperm.xlu0 %125, %v36
  %v127 = vpop.permute.xlu0 %126
  %130 = vset.pattern.permute.xlu0 0
  %131 = vperm.xlu0 %130, %v37
  %v132 = vpop.permute.xlu0 %131
  %135 = vset.pattern.permute.xlu0 0
  %136 = vperm.xlu0 %135, %v38
  %v137 = vpop.permute.xlu0 %136
  %140 = vset.pattern.permute.xlu0 0
  %141 = vperm.xlu0 %140, %v39
  %v142 = vpop.permute.xlu0 %141
  %145 = vset.pattern.permute.xlu0 0
  %146 = vperm.xlu0 %145, %v40
  %v147 = vpop.permute.xlu0 %146
  %150 = vset.pattern.permute.xlu0 0
  %151 = vperm.xlu0 %150, %v41
  %v152 = vpop.permute.xlu0 %151
  %155 = vset.pattern.permute.xlu0 0
  %156 = vperm.xlu0 %155, %v42
  %v157 = vpop.permute.xlu0 %156
  %160 = vset.pattern.permute.xlu0 0
  %161 = vperm.xlu0 %160, %v43
  %v162 = vpop.permute.xlu0 %161
  %165 = vset.pattern.permute.xlu0 0
  %166 = vperm.xlu0 %165, %v44
  %v167 = vpop.permute.xlu0 %166
  %170 = vset.pattern.permute.xlu0 0
  %171 = vperm.xlu0 %170, %v45
  %v172 = vpop.permute.xlu0 %171
  %175 = vset.pattern.permute.xlu0 0
  %176 = vperm.xlu0 %175, %v46
  %v177 = vpop.permute.xlu0 %176
  %180 = vset.pattern.permute.xlu0 0
  %181 = vperm.xlu0 %180, %v47
  %v182 = vpop.permute.xlu0 %181
  %185 = vset.pattern.permute.xlu0 0
  %186 = vperm.xlu0 %185, %v48
  %v187 = vpop.permute.xlu0 %186
  %190 = vset.pattern.permute.xlu0 0
  %191 = vperm.xlu0 %190, %v49
  %v192 = vpop.permute.xlu0 %191
  %195 = vset.pattern.permute.xlu0 0
  %196 = vperm.xlu0 %195, %v50
  %v197 = vpop.permute.xlu0 %196
  %200 = vset.pattern.permute.xlu0 0
  %201 = vperm.xlu0 %200, %v51
  %v202 = vpop.permute.xlu0 %201
  %205 = vset.pattern.permute.xlu0 0
  %206 = vperm.xlu0 %205, %v52
  %v207 = vpop.permute.xlu0 %206
  %210 = vset.pattern.permute.xlu0 0
  %211 = vperm.xlu0 %210, %v53
  %v212 = vpop.permute.xlu0 %211
  %v214 = vperm.slane %v20, 0
  %v215 = vmul.f32 %v57, %v214
  %v216 = vmul.f32 %v62, %v214
  %v217 = vmul.f32 %v67, %v214
  %v218 = vmul.f32 %v72, %v214
  %v219 = vmul.f32 %v77, %v214
  %v220 = vmul.f32 %v82, %v214
  %v221 = vmul.f32 %v87, %v214
  %v222 = vmul.f32 %v92, %v214
  %v223 = vmul.f32 %v97, %v214
  %v224 = vmul.f32 %v102, %v214
  %v225 = vmul.f32 %v107, %v214
  %v226 = vmul.f32 %v112, %v214
  %v227 = vmul.f32 %v117, %v214
  %v228 = vmul.f32 %v122, %v214
  %v229 = vmul.f32 %v127, %v214
  %v230 = vmul.f32 %v132, %v214
  %v231 = vmul.f32 %v137, %v214
  %v232 = vmul.f32 %v142, %v214
  %v233 = vmul.f32 %v147, %v214
  %v234 = vmul.f32 %v152, %v214
  %v235 = vmul.f32 %v157, %v214
  %v236 = vmul.f32 %v162, %v214
  %v237 = vmul.f32 %v167, %v214
  %v238 = vmul.f32 %v172, %v214
  %v239 = vmul.f32 %v177, %v214
  %v240 = vmul.f32 %v182, %v214
  %v241 = vmul.f32 %v187, %v214
  %v242 = vmul.f32 %v192, %v214
  %v243 = vmul.f32 %v197, %v214
  %v244 = vmul.f32 %v202, %v214
  %v245 = vmul.f32 %v207, %v214
  %v246 = vmul.f32 %v212, %v214
  %247 = vset.pattern.permute.xlu0 1
  %248 = vperm.xlu0 %247, %v22
  %v249 = vpop.permute.xlu0 %248
  %251 = vset.pattern.permute.xlu0 1
  %252 = vperm.xlu0 %251, %v23
  %v253 = vpop.permute.xlu0 %252
  %255 = vset.pattern.permute.xlu0 1
  %256 = vperm.xlu0 %255, %v24
  %v257 = vpop.permute.xlu0 %256
  %259 = vset.pattern.permute.xlu0 1
  %260 = vperm.xlu0 %259, %v25
  %v261 = vpop.permute.xlu0 %260
  %263 = vset.pattern.permute.xlu0 1
  %264 = vperm.xlu0 %263, %v26
  %v265 = vpop.permute.xlu0 %264
  %267 = vset.pattern.permute.xlu0 1
  %268 = vperm.xlu0 %267, %v27
  %v269 = vpop.permute.xlu0 %268
  %271 = vset.pattern.permute.xlu0 1
  %272 = vperm.xlu0 %271, %v28
  %v273 = vpop.permute.xlu0 %272
  %275 = vset.pattern.permute.xlu0 1
  %276 = vperm.xlu0 %275, %v29
  %v277 = vpop.permute.xlu0 %276
  %279 = vset.pattern.permute.xlu0 1
  %280 = vperm.xlu0 %279, %v30
  %v281 = vpop.permute.xlu0 %280
  %283 = vset.pattern.permute.xlu0 1
  %284 = vperm.xlu0 %283, %v31
  %v285 = vpop.permute.xlu0 %284
  %287 = vset.pattern.permute.xlu0 1
  %288 = vperm.xlu0 %287, %v32
  %v289 = vpop.permute.xlu0 %288
  %291 = vset.pattern.permute.xlu0 1
  %292 = vperm.xlu0 %291, %v33
  %v293 = vpop.permute.xlu0 %292
  %295 = vset.pattern.permute.xlu0 1
  %296 = vperm.xlu0 %295, %v34
  %v297 = vpop.permute.xlu0 %296
  %299 = vset.pattern.permute.xlu0 1
  %300 = vperm.xlu0 %299, %v35
  %v301 = vpop.permute.xlu0 %300
  %303 = vset.pattern.permute.xlu0 1
  %304 = vperm.xlu0 %303, %v36
  %v305 = vpop.permute.xlu0 %304
  %307 = vset.pattern.permute.xlu0 1
  %308 = vperm.xlu0 %307, %v37
  %v309 = vpop.permute.xlu0 %308
  %311 = vset.pattern.permute.xlu0 1
  %312 = vperm.xlu0 %311, %v38
  %v313 = vpop.permute.xlu0 %312
  %315 = vset.pattern.permute.xlu0 1
  %316 = vperm.xlu0 %315, %v39
  %v317 = vpop.permute.xlu0 %316
  %319 = vset.pattern.permute.xlu0 1
  %320 = vperm.xlu0 %319, %v40
  %v321 = vpop.permute.xlu0 %320
  %323 = vset.pattern.permute.xlu0 1
  %324 = vperm.xlu0 %323, %v41
  %v325 = vpop.permute.xlu0 %324
  %327 = vset.pattern.permute.xlu0 1
  %328 = vperm.xlu0 %327, %v42
  %v329 = vpop.permute.xlu0 %328
  %331 = vset.pattern.permute.xlu0 1
  %332 = vperm.xlu0 %331, %v43
  %v333 = vpop.permute.xlu0 %332
  %335 = vset.pattern.permute.xlu0 1
  %336 = vperm.xlu0 %335, %v44
  %v337 = vpop.permute.xlu0 %336
  %339 = vset.pattern.permute.xlu0 1
  %340 = vperm.xlu0 %339, %v45
  %v341 = vpop.permute.xlu0 %340
  %343 = vset.pattern.permute.xlu0 1
  %344 = vperm.xlu0 %343, %v46
  %v345 = vpop.permute.xlu0 %344
  %347 = vset.pattern.permute.xlu0 1
  %348 = vperm.xlu0 %347, %v47
  %v349 = vpop.permute.xlu0 %348
  %351 = vset.pattern.permute.xlu0 1
  %352 = vperm.xlu0 %351, %v48
  %v353 = vpop.permute.xlu0 %352
  %355 = vset.pattern.permute.xlu0 1
  %356 = vperm.xlu0 %355, %v49
  %v357 = vpop.permute.xlu0 %356
  %359 = vset.pattern.permute.xlu0 1
  %360 = vperm.xlu0 %359, %v50
  %v361 = vpop.permute.xlu0 %360
  %363 = vset.pattern.permute.xlu0 1
  %364 = vperm.xlu0 %363, %v51
  %v365 = vpop.permute.xlu0 %364
  %367 = vset.pattern.permute.xlu0 1
  %368 = vperm.xlu0 %367, %v52
  %v369 = vpop.permute.xlu0 %368
  %371 = vset.pattern.permute.xlu0 1
  %372 = vperm.xlu0 %371, %v53
  %v373 = vpop.permute.xlu0 %372
  %v375 = vperm.slane %v20, 1
  %v376 = vmul.f32 %v249, %v375
  %v377 = vmul.f32 %v253, %v375
  %v378 = vmul.f32 %v257, %v375
  %v379 = vmul.f32 %v261, %v375
  %v380 = vmul.f32 %v265, %v375
  %v381 = vmul.f32 %v269, %v375
  %v382 = vmul.f32 %v273, %v375
  %v383 = vmul.f32 %v277, %v375
  %v384 = vmul.f32 %v281, %v375
  %v385 = vmul.f32 %v285, %v375
  %v386 = vmul.f32 %v289, %v375
  %v387 = vmul.f32 %v293, %v375
  %v388 = vmul.f32 %v297, %v375
  %v389 = vmul.f32 %v301, %v375
  %v390 = vmul.f32 %v305, %v375
  %v391 = vmul.f32 %v309, %v375
  %v392 = vmul.f32 %v313, %v375
  %v393 = vmul.f32 %v317, %v375
  %v394 = vmul.f32 %v321, %v375
  %v395 = vmul.f32 %v325, %v375
  %v396 = vmul.f32 %v329, %v375
  %v397 = vmul.f32 %v333, %v375
  %v398 = vmul.f32 %v337, %v375
  %v399 = vmul.f32 %v341, %v375
  %v400 = vmul.f32 %v345, %v375
  %v401 = vmul.f32 %v349, %v375
  %v402 = vmul.f32 %v353, %v375
  %v403 = vmul.f32 %v357, %v375
  %v404 = vmul.f32 %v361, %v375
  %v405 = vmul.f32 %v365, %v375
  %v406 = vmul.f32 %v369, %v375
  %v407 = vmul.f32 %v373, %v375
  %v408 = vadd.f32 %v215, %v376
  %v409 = vadd.f32 %v216, %v377
  %v410 = vadd.f32 %v217, %v378
  %v411 = vadd.f32 %v218, %v379
  %v412 = vadd.f32 %v219, %v380
  %v413 = vadd.f32 %v220, %v381
  %v414 = vadd.f32 %v221, %v382
  %v415 = vadd.f32 %v222, %v383
  %v416 = vadd.f32 %v223, %v384
  %v417 = vadd.f32 %v224, %v385
  %v418 = vadd.f32 %v225, %v386
  %v419 = vadd.f32 %v226, %v387
  %v420 = vadd.f32 %v227, %v388
  %v421 = vadd.f32 %v228, %v389
  %v422 = vadd.f32 %v229, %v390
  %v423 = vadd.f32 %v230, %v391
  %v424 = vadd.f32 %v231, %v392
  %v425 = vadd.f32 %v232, %v393
  %v426 = vadd.f32 %v233, %v394
  %v427 = vadd.f32 %v234, %v395
  %v428 = vadd.f32 %v235, %v396
  %v429 = vadd.f32 %v236, %v397
  %v430 = vadd.f32 %v237, %v398
  %v431 = vadd.f32 %v238, %v399
  %v432 = vadd.f32 %v239, %v400
  %v433 = vadd.f32 %v240, %v401
  %v434 = vadd.f32 %v241, %v402
  %v435 = vadd.f32 %v242, %v403
  %v436 = vadd.f32 %v243, %v404
  %v437 = vadd.f32 %v244, %v405
  %v438 = vadd.f32 %v245, %v406
  %v439 = vadd.f32 %v246, %v407
  %v440 = vperm.slane %v21, 0
  %v441 = vadd.f32 %v408, %v440
  %v442 = vadd.f32 %v409, %v440
  %v443 = vadd.f32 %v410, %v440
  %v444 = vadd.f32 %v411, %v440
  %v445 = vadd.f32 %v412, %v440
  %v446 = vadd.f32 %v413, %v440
  %v447 = vadd.f32 %v414, %v440
  %v448 = vadd.f32 %v415, %v440
  %v449 = vadd.f32 %v416, %v440
  %v450 = vadd.f32 %v417, %v440
  %v451 = vadd.f32 %v418, %v440
  %v452 = vadd.f32 %v419, %v440
  %v453 = vadd.f32 %v420, %v440
  %v454 = vadd.f32 %v421, %v440
  %v455 = vadd.f32 %v422, %v440
  %v456 = vadd.f32 %v423, %v440
  %v457 = vadd.f32 %v424, %v440
  %v458 = vadd.f32 %v425, %v440
  %v459 = vadd.f32 %v426, %v440
  %v460 = vadd.f32 %v427, %v440
  %v461 = vadd.f32 %v428, %v440
  %v462 = vadd.f32 %v429, %v440
  %v463 = vadd.f32 %v430, %v440
  %v464 = vadd.f32 %v431, %v440
  %v465 = vadd.f32 %v432, %v440
  %v466 = vadd.f32 %v433, %v440
  %v467 = vadd.f32 %v434, %v440
  %v468 = vadd.f32 %v435, %v440
  %v469 = vadd.f32 %v436, %v440
  %v470 = vadd.f32 %v437, %v440
  %v471 = vadd.f32 %v438, %v440
  %v472 = vadd.f32 %v439, %v440
  %v473 = vtanh.pop %v441
  %v474 = vtanh.pop %v442
  %v475 = vtanh.pop %v443
  %v476 = vtanh.pop %v444
  %v477 = vtanh.pop %v445
  %v478 = vtanh.pop %v446
  %v479 = vtanh.pop %v447
  %v480 = vtanh.pop %v448
  %v481 = vtanh.pop %v449
  %v482 = vtanh.pop %v450
  %v483 = vtanh.pop %v451
  %v484 = vtanh.pop %v452
  %v485 = vtanh.pop %v453
  %v486 = vtanh.pop %v454
  %v487 = vtanh.pop %v455
  %v488 = vtanh.pop %v456
  %v489 = vtanh.pop %v457
  %v490 = vtanh.pop %v458
  %v491 = vtanh.pop %v459
  %v492 = vtanh.pop %v460
  %v493 = vtanh.pop %v461
  %v494 = vtanh.pop %v462
  %v495 = vtanh.pop %v463
  %v496 = vtanh.pop %v464
  %v497 = vtanh.pop %v465
  %v498 = vtanh.pop %v466
  %v499 = vtanh.pop %v467
  %v500 = vtanh.pop %v468
  %v501 = vtanh.pop %v469
  %v502 = vtanh.pop %v470
  %v503 = vtanh.pop %v471
  %v504 = vtanh.pop %v472
  %v505 = vpack.c.bf16 %v474, %v473
  %v506 = vpack.c.bf16 %v476, %v475
  %v507 = vpack.c.bf16 %v478, %v477
  %v508 = vpack.c.bf16 %v480, %v479
  %v509 = vpack.c.bf16 %v482, %v481
  %v510 = vpack.c.bf16 %v484, %v483
  %v511 = vpack.c.bf16 %v486, %v485
  %v512 = vpack.c.bf16 %v488, %v487
  %v513 = vpack.c.bf16 %v490, %v489
  %v514 = vpack.c.bf16 %v492, %v491
  %v515 = vpack.c.bf16 %v494, %v493
  %v516 = vpack.c.bf16 %v496, %v495
  %v517 = vpack.c.bf16 %v498, %v497
  %v518 = vpack.c.bf16 %v500, %v499
  %v519 = vpack.c.bf16 %v502, %v501
  %v520 = vpack.c.bf16 %v504, %v503
  %v521 = vld [vmem:[%s3] sm:$0xf]
  %v522 = vld [vmem:[%s3 + $0x4] sm:$0xf]
  %v523 = vld [vmem:[%s3 + $0x8] sm:$0xf]
  %v524 = vld [vmem:[%s3 + $0xc] sm:$0xf]
  %v525 = vld [vmem:[%s3 + $0x10] sm:$0xf]
  %v526 = vld [vmem:[%s3 + $0x14] sm:$0xf]
  %v527 = vld [vmem:[%s3 + $0x18] sm:$0xf]
  %v528 = vld [vmem:[%s3 + $0x1c] sm:$0xf]
  %v529 = vld [vmem:[%s3 + $0x20] sm:$0xf]
  %v530 = vld [vmem:[%s3 + $0x24] sm:$0xf]
  %v531 = vld [vmem:[%s3 + $0x28] sm:$0xf]
  %v532 = vld [vmem:[%s3 + $0x2c] sm:$0xf]
  %v533 = vld [vmem:[%s3 + $0x30] sm:$0xf]
  %v534 = vld [vmem:[%s3 + $0x34] sm:$0xf]
  %v535 = vld [vmem:[%s3 + $0x38] sm:$0xf]
  %v536 = vld [vmem:[%s3 + $0x3c] sm:$0xf]
  %v537 = vperm.slane %v21, 1
  %v554 = vunpack.c.l.b16 %v521
  %v555 = vunpack.c.l.b16 %v522
  %v556 = vunpack.c.l.b16 %v523
  %v557 = vunpack.c.l.b16 %v524
  %v558 = vunpack.c.l.b16 %v525
  %v559 = vunpack.c.l.b16 %v526
  %v560 = vunpack.c.l.b16 %v527
  %v561 = vunpack.c.l.b16 %v528
  %v562 = vunpack.c.l.b16 %v529
  %v563 = vunpack.c.l.b16 %v530
  %v564 = vunpack.c.l.b16 %v531
  %v565 = vunpack.c.l.b16 %v532
  %v566 = vunpack.c.l.b16 %v533
  %v567 = vunpack.c.l.b16 %v534
  %v568 = vunpack.c.l.b16 %v535
  %v569 = vunpack.c.l.b16 %v536
  %v570 = vpack.c.b16 %v555, %v554
  %v571 = vpack.c.b16 %v557, %v556
  %v572 = vpack.c.b16 %v559, %v558
  %v573 = vpack.c.b16 %v561, %v560
  %v574 = vpack.c.b16 %v563, %v562
  %v575 = vpack.c.b16 %v565, %v564
  %v576 = vpack.c.b16 %v567, %v566
  %v577 = vpack.c.b16 %v569, %v568
  %586 = vmatpush.bf16.msra.mxu0 %v577
  %587 = vmatpush.bf16.msra.mxu0 %v576
  %588 = vmatpush.bf16.msra.mxu0 %v575
  %589 = vmatpush.bf16.msra.mxu0 %v574
  %590 = vmatpush.bf16.msra.mxu0 %v573
  %591 = vmatpush.bf16.msra.mxu0 %v572
  %592 = vmatpush.bf16.msra.mxu0 %v571
  %593 = vmatpush.bf16.msra.mxu0 %v570
  %594 = vmatmul.bf16.gmra.mxu0 %v505
  %v595 = vpop.f32.mrf.mxu0
  %v596 = vadd.f32 %v537, %v595
  %v597 = vpop.f32.mrf.mxu0
  %v598 = vadd.f32 %v537, %v597
  %599 = vmatmul.bf16.gmra.mxu0 %v506
  %v600 = vpop.f32.mrf.mxu0
  %v601 = vadd.f32 %v537, %v600
  %v602 = vpop.f32.mrf.mxu0
  %v603 = vadd.f32 %v537, %v602
  %604 = vmatmul.bf16.gmra.mxu0 %v507
  %v605 = vpop.f32.mrf.mxu0
  %v606 = vadd.f32 %v537, %v605
  %v607 = vpop.f32.mrf.mxu0
  %v608 = vadd.f32 %v537, %v607
  %609 = vmatmul.bf16.gmra.mxu0 %v508
  %v610 = vpop.f32.mrf.mxu0
  %v611 = vadd.f32 %v537, %v610
  %v612 = vpop.f32.mrf.mxu0
  %v613 = vadd.f32 %v537, %v612
  %614 = vmatmul.bf16.gmra.mxu0 %v509
  %v615 = vpop.f32.mrf.mxu0
  %v616 = vadd.f32 %v537, %v615
  %v617 = vpop.f32.mrf.mxu0
  %v618 = vadd.f32 %v537, %v617
  %619 = vmatmul.bf16.gmra.mxu0 %v510
  %v620 = vpop.f32.mrf.mxu0
  %v621 = vadd.f32 %v537, %v620
  %v622 = vpop.f32.mrf.mxu0
  %v623 = vadd.f32 %v537, %v622
  %624 = vmatmul.bf16.gmra.mxu0 %v511
  %v625 = vpop.f32.mrf.mxu0
  %v626 = vadd.f32 %v537, %v625
  %v627 = vpop.f32.mrf.mxu0
  %v628 = vadd.f32 %v537, %v627
  %629 = vmatmul.bf16.gmra.mxu0 %v512
  %v630 = vpop.f32.mrf.mxu0
  %v631 = vadd.f32 %v537, %v630
  %v632 = vpop.f32.mrf.mxu0
  %v633 = vadd.f32 %v537, %v632
  %634 = vmatmul.bf16.gmra.mxu0 %v513
  %v635 = vpop.f32.mrf.mxu0
  %v636 = vadd.f32 %v537, %v635
  %v637 = vpop.f32.mrf.mxu0
  %v638 = vadd.f32 %v537, %v637
  %639 = vmatmul.bf16.gmra.mxu0 %v514
  %v640 = vpop.f32.mrf.mxu0
  %v641 = vadd.f32 %v537, %v640
  %v642 = vpop.f32.mrf.mxu0
  %v643 = vadd.f32 %v537, %v642
  %644 = vmatmul.bf16.gmra.mxu0 %v515
  %v645 = vpop.f32.mrf.mxu0
  %v646 = vadd.f32 %v537, %v645
  %v647 = vpop.f32.mrf.mxu0
  %v648 = vadd.f32 %v537, %v647
  %649 = vmatmul.bf16.gmra.mxu0 %v516
  %v650 = vpop.f32.mrf.mxu0
  %v651 = vadd.f32 %v537, %v650
  %v652 = vpop.f32.mrf.mxu0
  %v653 = vadd.f32 %v537, %v652
  %654 = vmatmul.bf16.gmra.mxu0 %v517
  %v655 = vpop.f32.mrf.mxu0
  %v656 = vadd.f32 %v537, %v655
  %v657 = vpop.f32.mrf.mxu0
  %v658 = vadd.f32 %v537, %v657
  %659 = vmatmul.bf16.gmra.mxu0 %v518
  %v660 = vpop.f32.mrf.mxu0
  %v661 = vadd.f32 %v537, %v660
  %v662 = vpop.f32.mrf.mxu0
  %v663 = vadd.f32 %v537, %v662
  %664 = vmatmul.bf16.gmra.mxu0 %v519
  %v665 = vpop.f32.mrf.mxu0
  %v666 = vadd.f32 %v537, %v665
  %v667 = vpop.f32.mrf.mxu0
  %v668 = vadd.f32 %v537, %v667
  %669 = vmatmul.bf16.gmra.mxu0 %v520
  %v670 = vpop.f32.mrf.mxu0
  %v671 = vadd.f32 %v537, %v670
  %v672 = vpop.f32.mrf.mxu0
  %v673 = vadd.f32 %v537, %v672
  %674 = vdwg.mxu0
  %v675 = vtanh.pop %v596
  %v676 = vtanh.pop %v598
  %v677 = vtanh.pop %v601
  %v678 = vtanh.pop %v603
  %v679 = vtanh.pop %v606
  %v680 = vtanh.pop %v608
  %v681 = vtanh.pop %v611
  %v682 = vtanh.pop %v613
  %v683 = vtanh.pop %v616
  %v684 = vtanh.pop %v618
  %v685 = vtanh.pop %v621
  %v686 = vtanh.pop %v623
  %v687 = vtanh.pop %v626
  %v688 = vtanh.pop %v628
  %v689 = vtanh.pop %v631
  %v690 = vtanh.pop %v633
  %v691 = vtanh.pop %v636
  %v692 = vtanh.pop %v638
  %v693 = vtanh.pop %v641
  %v694 = vtanh.pop %v643
  %v695 = vtanh.pop %v646
  %v696 = vtanh.pop %v648
  %v697 = vtanh.pop %v651
  %v698 = vtanh.pop %v653
  %v699 = vtanh.pop %v656
  %v700 = vtanh.pop %v658
  %v701 = vtanh.pop %v661
  %v702 = vtanh.pop %v663
  %v703 = vtanh.pop %v666
  %v704 = vtanh.pop %v668
  %v705 = vtanh.pop %v671
  %v706 = vtanh.pop %v673
  %v707 = vadd.f32 %v675, %v473
  %v708 = vadd.f32 %v676, %v474
  %v709 = vadd.f32 %v677, %v475
  %v710 = vadd.f32 %v678, %v476
  %v711 = vadd.f32 %v679, %v477
  %v712 = vadd.f32 %v680, %v478
  %v713 = vadd.f32 %v681, %v479
  %v714 = vadd.f32 %v682, %v480
  %v715 = vadd.f32 %v683, %v481
  %v716 = vadd.f32 %v684, %v482
  %v717 = vadd.f32 %v685, %v483
  %v718 = vadd.f32 %v686, %v484
  %v719 = vadd.f32 %v687, %v485
  %v720 = vadd.f32 %v688, %v486
  %v721 = vadd.f32 %v689, %v487
  %v722 = vadd.f32 %v690, %v488
  %v723 = vadd.f32 %v691, %v489
  %v724 = vadd.f32 %v692, %v490
  %v725 = vadd.f32 %v693, %v491
  %v726 = vadd.f32 %v694, %v492
  %v727 = vadd.f32 %v695, %v493
  %v728 = vadd.f32 %v696, %v494
  %v729 = vadd.f32 %v697, %v495
  %v730 = vadd.f32 %v698, %v496
  %v731 = vadd.f32 %v699, %v497
  %v732 = vadd.f32 %v700, %v498
  %v733 = vadd.f32 %v701, %v499
  %v734 = vadd.f32 %v702, %v500
  %v735 = vadd.f32 %v703, %v501
  %v736 = vadd.f32 %v704, %v502
  %v737 = vadd.f32 %v705, %v503
  %v738 = vadd.f32 %v706, %v504
  %v739 = vpack.c.bf16 %v708, %v707
  %v740 = vpack.c.bf16 %v710, %v709
  %v741 = vpack.c.bf16 %v712, %v711
  %v742 = vpack.c.bf16 %v714, %v713
  %v743 = vpack.c.bf16 %v716, %v715
  %v744 = vpack.c.bf16 %v718, %v717
  %v745 = vpack.c.bf16 %v720, %v719
  %v746 = vpack.c.bf16 %v722, %v721
  %v747 = vpack.c.bf16 %v724, %v723
  %v748 = vpack.c.bf16 %v726, %v725
  %v749 = vpack.c.bf16 %v728, %v727
  %v750 = vpack.c.bf16 %v730, %v729
  %v751 = vpack.c.bf16 %v732, %v731
  %v752 = vpack.c.bf16 %v734, %v733
  %v753 = vpack.c.bf16 %v736, %v735
  %v754 = vpack.c.bf16 %v738, %v737
  %s755 = scalar_lea.vmem %s3, 64
  %v756 = vld [vmem:[%s755] sm:$0xf]
  %v757 = vld [vmem:[%s755 + $0x4] sm:$0xf]
  %v758 = vld [vmem:[%s755 + $0x8] sm:$0xf]
  %v759 = vld [vmem:[%s755 + $0xc] sm:$0xf]
  %v760 = vld [vmem:[%s755 + $0x10] sm:$0xf]
  %v761 = vld [vmem:[%s755 + $0x14] sm:$0xf]
  %v762 = vld [vmem:[%s755 + $0x18] sm:$0xf]
  %v763 = vld [vmem:[%s755 + $0x1c] sm:$0xf]
  %v764 = vld [vmem:[%s755 + $0x20] sm:$0xf]
  %v765 = vld [vmem:[%s755 + $0x24] sm:$0xf]
  %v766 = vld [vmem:[%s755 + $0x28] sm:$0xf]
  %v767 = vld [vmem:[%s755 + $0x2c] sm:$0xf]
  %v768 = vld [vmem:[%s755 + $0x30] sm:$0xf]
  %v769 = vld [vmem:[%s755 + $0x34] sm:$0xf]
  %v770 = vld [vmem:[%s755 + $0x38] sm:$0xf]
  %v771 = vld [vmem:[%s755 + $0x3c] sm:$0xf]
  %v772 = vperm.slane %v21, 2
  %v789 = vunpack.c.l.b16 %v756
  %v790 = vunpack.c.l.b16 %v757
  %v791 = vunpack.c.l.b16 %v758
  %v792 = vunpack.c.l.b16 %v759
  %v793 = vunpack.c.l.b16 %v760
  %v794 = vunpack.c.l.b16 %v761
  %v795 = vunpack.c.l.b16 %v762
  %v796 = vunpack.c.l.b16 %v763
  %v797 = vunpack.c.l.b16 %v764
  %v798 = vunpack.c.l.b16 %v765
  %v799 = vunpack.c.l.b16 %v766
  %v800 = vunpack.c.l.b16 %v767
  %v801 = vunpack.c.l.b16 %v768
  %v802 = vunpack.c.l.b16 %v769
  %v803 = vunpack.c.l.b16 %v770
  %v804 = vunpack.c.l.b16 %v771
  %v805 = vpack.c.b16 %v790, %v789
  %v806 = vpack.c.b16 %v792, %v791
  %v807 = vpack.c.b16 %v794, %v793
  %v808 = vpack.c.b16 %v796, %v795
  %v809 = vpack.c.b16 %v798, %v797
  %v810 = vpack.c.b16 %v800, %v799
  %v811 = vpack.c.b16 %v802, %v801
  %v812 = vpack.c.b16 %v804, %v803
  %821 = vmatpush.bf16.msra.mxu0 %v812
  %822 = vmatpush.bf16.msra.mxu0 %v811
  %823 = vmatpush.bf16.msra.mxu0 %v810
  %824 = vmatpush.bf16.msra.mxu0 %v809
  %825 = vmatpush.bf16.msra.mxu0 %v808
  %826 = vmatpush.bf16.msra.mxu0 %v807
  %827 = vmatpush.bf16.msra.mxu0 %v806
  %828 = vmatpush.bf16.msra.mxu0 %v805
  %829 = vmatmul.bf16.gmra.mxu0 %v739
  %v830 = vpop.f32.mrf.mxu0
  %v831 = vadd.f32 %v772, %v830
  %v832 = vpop.f32.mrf.mxu0
  %v833 = vadd.f32 %v772, %v832
  %834 = vmatmul.bf16.gmra.mxu0 %v740
  %v835 = vpop.f32.mrf.mxu0
  %v836 = vadd.f32 %v772, %v835
  %v837 = vpop.f32.mrf.mxu0
  %v838 = vadd.f32 %v772, %v837
  %839 = vmatmul.bf16.gmra.mxu0 %v741
  %v840 = vpop.f32.mrf.mxu0
  %v841 = vadd.f32 %v772, %v840
  %v842 = vpop.f32.mrf.mxu0
  %v843 = vadd.f32 %v772, %v842
  %844 = vmatmul.bf16.gmra.mxu0 %v742
  %v845 = vpop.f32.mrf.mxu0
  %v846 = vadd.f32 %v772, %v845
  %v847 = vpop.f32.mrf.mxu0
  %v848 = vadd.f32 %v772, %v847
  %849 = vmatmul.bf16.gmra.mxu0 %v743
  %v850 = vpop.f32.mrf.mxu0
  %v851 = vadd.f32 %v772, %v850
  %v852 = vpop.f32.mrf.mxu0
  %v853 = vadd.f32 %v772, %v852
  %854 = vmatmul.bf16.gmra.mxu0 %v744
  %v855 = vpop.f32.mrf.mxu0
  %v856 = vadd.f32 %v772, %v855
  %v857 = vpop.f32.mrf.mxu0
  %v858 = vadd.f32 %v772, %v857
  %859 = vmatmul.bf16.gmra.mxu0 %v745
  %v860 = vpop.f32.mrf.mxu0
  %v861 = vadd.f32 %v772, %v860
  %v862 = vpop.f32.mrf.mxu0
  %v863 = vadd.f32 %v772, %v862
  %864 = vmatmul.bf16.gmra.mxu0 %v746
  %v865 = vpop.f32.mrf.mxu0
  %v866 = vadd.f32 %v772, %v865
  %v867 = vpop.f32.mrf.mxu0
  %v868 = vadd.f32 %v772, %v867
  %869 = vmatmul.bf16.gmra.mxu0 %v747
  %v870 = vpop.f32.mrf.mxu0
  %v871 = vadd.f32 %v772, %v870
  %v872 = vpop.f32.mrf.mxu0
  %v873 = vadd.f32 %v772, %v872
  %874 = vmatmul.bf16.gmra.mxu0 %v748
  %v875 = vpop.f32.mrf.mxu0
  %v876 = vadd.f32 %v772, %v875
  %v877 = vpop.f32.mrf.mxu0
  %v878 = vadd.f32 %v772, %v877
  %879 = vmatmul.bf16.gmra.mxu0 %v749
  %v880 = vpop.f32.mrf.mxu0
  %v881 = vadd.f32 %v772, %v880
  %v882 = vpop.f32.mrf.mxu0
  %v883 = vadd.f32 %v772, %v882
  %884 = vmatmul.bf16.gmra.mxu0 %v750
  %v885 = vpop.f32.mrf.mxu0
  %v886 = vadd.f32 %v772, %v885
  %v887 = vpop.f32.mrf.mxu0
  %v888 = vadd.f32 %v772, %v887
  %889 = vmatmul.bf16.gmra.mxu0 %v751
  %v890 = vpop.f32.mrf.mxu0
  %v891 = vadd.f32 %v772, %v890
  %v892 = vpop.f32.mrf.mxu0
  %v893 = vadd.f32 %v772, %v892
  %894 = vmatmul.bf16.gmra.mxu0 %v752
  %v895 = vpop.f32.mrf.mxu0
  %v896 = vadd.f32 %v772, %v895
  %v897 = vpop.f32.mrf.mxu0
  %v898 = vadd.f32 %v772, %v897
  %899 = vmatmul.bf16.gmra.mxu0 %v753
  %v900 = vpop.f32.mrf.mxu0
  %v901 = vadd.f32 %v772, %v900
  %v902 = vpop.f32.mrf.mxu0
  %v903 = vadd.f32 %v772, %v902
  %904 = vmatmul.bf16.gmra.mxu0 %v754
  %v905 = vpop.f32.mrf.mxu0
  %v906 = vadd.f32 %v772, %v905
  %v907 = vpop.f32.mrf.mxu0
  %v908 = vadd.f32 %v772, %v907
  %909 = vdwg.mxu0
  %v910 = vtanh.pop %v831
  %v911 = vtanh.pop %v833
  %v912 = vtanh.pop %v836
  %v913 = vtanh.pop %v838
  %v914 = vtanh.pop %v841
  %v915 = vtanh.pop %v843
  %v916 = vtanh.pop %v846
  %v917 = vtanh.pop %v848
  %v918 = vtanh.pop %v851
  %v919 = vtanh.pop %v853
  %v920 = vtanh.pop %v856
  %v921 = vtanh.pop %v858
  %v922 = vtanh.pop %v861
  %v923 = vtanh.pop %v863
  %v924 = vtanh.pop %v866
  %v925 = vtanh.pop %v868
  %v926 = vtanh.pop %v871
  %v927 = vtanh.pop %v873
  %v928 = vtanh.pop %v876
  %v929 = vtanh.pop %v878
  %v930 = vtanh.pop %v881
  %v931 = vtanh.pop %v883
  %v932 = vtanh.pop %v886
  %v933 = vtanh.pop %v888
  %v934 = vtanh.pop %v891
  %v935 = vtanh.pop %v893
  %v936 = vtanh.pop %v896
  %v937 = vtanh.pop %v898
  %v938 = vtanh.pop %v901
  %v939 = vtanh.pop %v903
  %v940 = vtanh.pop %v906
  %v941 = vtanh.pop %v908
  %v942 = vadd.f32 %v910, %v707
  %v943 = vadd.f32 %v911, %v708
  %v944 = vadd.f32 %v912, %v709
  %v945 = vadd.f32 %v913, %v710
  %v946 = vadd.f32 %v914, %v711
  %v947 = vadd.f32 %v915, %v712
  %v948 = vadd.f32 %v916, %v713
  %v949 = vadd.f32 %v917, %v714
  %v950 = vadd.f32 %v918, %v715
  %v951 = vadd.f32 %v919, %v716
  %v952 = vadd.f32 %v920, %v717
  %v953 = vadd.f32 %v921, %v718
  %v954 = vadd.f32 %v922, %v719
  %v955 = vadd.f32 %v923, %v720
  %v956 = vadd.f32 %v924, %v721
  %v957 = vadd.f32 %v925, %v722
  %v958 = vadd.f32 %v926, %v723
  %v959 = vadd.f32 %v927, %v724
  %v960 = vadd.f32 %v928, %v725
  %v961 = vadd.f32 %v929, %v726
  %v962 = vadd.f32 %v930, %v727
  %v963 = vadd.f32 %v931, %v728
  %v964 = vadd.f32 %v932, %v729
  %v965 = vadd.f32 %v933, %v730
  %v966 = vadd.f32 %v934, %v731
  %v967 = vadd.f32 %v935, %v732
  %v968 = vadd.f32 %v936, %v733
  %v969 = vadd.f32 %v937, %v734
  %v970 = vadd.f32 %v938, %v735
  %v971 = vadd.f32 %v939, %v736
  %v972 = vadd.f32 %v940, %v737
  %v973 = vadd.f32 %v941, %v738
  %v974 = vpack.c.bf16 %v943, %v942
  %v975 = vpack.c.bf16 %v945, %v944
  %v976 = vpack.c.bf16 %v947, %v946
  %v977 = vpack.c.bf16 %v949, %v948
  %v978 = vpack.c.bf16 %v951, %v950
  %v979 = vpack.c.bf16 %v953, %v952
  %v980 = vpack.c.bf16 %v955, %v954
  %v981 = vpack.c.bf16 %v957, %v956
  %v982 = vpack.c.bf16 %v959, %v958
  %v983 = vpack.c.bf16 %v961, %v960
  %v984 = vpack.c.bf16 %v963, %v962
  %v985 = vpack.c.bf16 %v965, %v964
  %v986 = vpack.c.bf16 %v967, %v966
  %v987 = vpack.c.bf16 %v969, %v968
  %v988 = vpack.c.bf16 %v971, %v970
  %v989 = vpack.c.bf16 %v973, %v972
  %s990 = scalar_lea.vmem %s3, 128
  %v991 = vld [vmem:[%s990] sm:$0xf]
  %v992 = vld [vmem:[%s990 + $0x4] sm:$0xf]
  %v993 = vld [vmem:[%s990 + $0x8] sm:$0xf]
  %v994 = vld [vmem:[%s990 + $0xc] sm:$0xf]
  %v995 = vld [vmem:[%s990 + $0x10] sm:$0xf]
  %v996 = vld [vmem:[%s990 + $0x14] sm:$0xf]
  %v997 = vld [vmem:[%s990 + $0x18] sm:$0xf]
  %v998 = vld [vmem:[%s990 + $0x1c] sm:$0xf]
  %v999 = vld [vmem:[%s990 + $0x20] sm:$0xf]
  %v1000 = vld [vmem:[%s990 + $0x24] sm:$0xf]
  %v1001 = vld [vmem:[%s990 + $0x28] sm:$0xf]
  %v1002 = vld [vmem:[%s990 + $0x2c] sm:$0xf]
  %v1003 = vld [vmem:[%s990 + $0x30] sm:$0xf]
  %v1004 = vld [vmem:[%s990 + $0x34] sm:$0xf]
  %v1005 = vld [vmem:[%s990 + $0x38] sm:$0xf]
  %v1006 = vld [vmem:[%s990 + $0x3c] sm:$0xf]
  %v1007 = vperm.slane %v21, 3
  %v1024 = vunpack.c.l.b16 %v991
  %v1025 = vunpack.c.l.b16 %v992
  %v1026 = vunpack.c.l.b16 %v993
  %v1027 = vunpack.c.l.b16 %v994
  %v1028 = vunpack.c.l.b16 %v995
  %v1029 = vunpack.c.l.b16 %v996
  %v1030 = vunpack.c.l.b16 %v997
  %v1031 = vunpack.c.l.b16 %v998
  %v1032 = vunpack.c.l.b16 %v999
  %v1033 = vunpack.c.l.b16 %v1000
  %v1034 = vunpack.c.l.b16 %v1001
  %v1035 = vunpack.c.l.b16 %v1002
  %v1036 = vunpack.c.l.b16 %v1003
  %v1037 = vunpack.c.l.b16 %v1004
  %v1038 = vunpack.c.l.b16 %v1005
  %v1039 = vunpack.c.l.b16 %v1006
  %v1040 = vpack.c.b16 %v1025, %v1024
  %v1041 = vpack.c.b16 %v1027, %v1026
  %v1042 = vpack.c.b16 %v1029, %v1028
  %v1043 = vpack.c.b16 %v1031, %v1030
  %v1044 = vpack.c.b16 %v1033, %v1032
  %v1045 = vpack.c.b16 %v1035, %v1034
  %v1046 = vpack.c.b16 %v1037, %v1036
  %v1047 = vpack.c.b16 %v1039, %v1038
  %1056 = vmatpush.bf16.msra.mxu0 %v1047
  %1057 = vmatpush.bf16.msra.mxu0 %v1046
  %1058 = vmatpush.bf16.msra.mxu0 %v1045
  %1059 = vmatpush.bf16.msra.mxu0 %v1044
  %1060 = vmatpush.bf16.msra.mxu0 %v1043
  %1061 = vmatpush.bf16.msra.mxu0 %v1042
  %1062 = vmatpush.bf16.msra.mxu0 %v1041
  %1063 = vmatpush.bf16.msra.mxu0 %v1040
  %1064 = vmatmul.bf16.gmra.mxu0 %v974
  %v1065 = vpop.f32.mrf.mxu0
  %v1066 = vadd.f32 %v1007, %v1065
  %v1067 = vpop.f32.mrf.mxu0
  %v1068 = vadd.f32 %v1007, %v1067
  %1069 = vmatmul.bf16.gmra.mxu0 %v975
  %v1070 = vpop.f32.mrf.mxu0
  %v1071 = vadd.f32 %v1007, %v1070
  %v1072 = vpop.f32.mrf.mxu0
  %v1073 = vadd.f32 %v1007, %v1072
  %1074 = vmatmul.bf16.gmra.mxu0 %v976
  %v1075 = vpop.f32.mrf.mxu0
  %v1076 = vadd.f32 %v1007, %v1075
  %v1077 = vpop.f32.mrf.mxu0
  %v1078 = vadd.f32 %v1007, %v1077
  %1079 = vmatmul.bf16.gmra.mxu0 %v977
  %v1080 = vpop.f32.mrf.mxu0
  %v1081 = vadd.f32 %v1007, %v1080
  %v1082 = vpop.f32.mrf.mxu0
  %v1083 = vadd.f32 %v1007, %v1082
  %1084 = vmatmul.bf16.gmra.mxu0 %v978
  %v1085 = vpop.f32.mrf.mxu0
  %v1086 = vadd.f32 %v1007, %v1085
  %v1087 = vpop.f32.mrf.mxu0
  %v1088 = vadd.f32 %v1007, %v1087
  %1089 = vmatmul.bf16.gmra.mxu0 %v979
  %v1090 = vpop.f32.mrf.mxu0
  %v1091 = vadd.f32 %v1007, %v1090
  %v1092 = vpop.f32.mrf.mxu0
  %v1093 = vadd.f32 %v1007, %v1092
  %1094 = vmatmul.bf16.gmra.mxu0 %v980
  %v1095 = vpop.f32.mrf.mxu0
  %v1096 = vadd.f32 %v1007, %v1095
  %v1097 = vpop.f32.mrf.mxu0
  %v1098 = vadd.f32 %v1007, %v1097
  %1099 = vmatmul.bf16.gmra.mxu0 %v981
  %v1100 = vpop.f32.mrf.mxu0
  %v1101 = vadd.f32 %v1007, %v1100
  %v1102 = vpop.f32.mrf.mxu0
  %v1103 = vadd.f32 %v1007, %v1102
  %1104 = vmatmul.bf16.gmra.mxu0 %v982
  %v1105 = vpop.f32.mrf.mxu0
  %v1106 = vadd.f32 %v1007, %v1105
  %v1107 = vpop.f32.mrf.mxu0
  %v1108 = vadd.f32 %v1007, %v1107
  %1109 = vmatmul.bf16.gmra.mxu0 %v983
  %v1110 = vpop.f32.mrf.mxu0
  %v1111 = vadd.f32 %v1007, %v1110
  %v1112 = vpop.f32.mrf.mxu0
  %v1113 = vadd.f32 %v1007, %v1112
  %1114 = vmatmul.bf16.gmra.mxu0 %v984
  %v1115 = vpop.f32.mrf.mxu0
  %v1116 = vadd.f32 %v1007, %v1115
  %v1117 = vpop.f32.mrf.mxu0
  %v1118 = vadd.f32 %v1007, %v1117
  %1119 = vmatmul.bf16.gmra.mxu0 %v985
  %v1120 = vpop.f32.mrf.mxu0
  %v1121 = vadd.f32 %v1007, %v1120
  %v1122 = vpop.f32.mrf.mxu0
  %v1123 = vadd.f32 %v1007, %v1122
  %1124 = vmatmul.bf16.gmra.mxu0 %v986
  %v1125 = vpop.f32.mrf.mxu0
  %v1126 = vadd.f32 %v1007, %v1125
  %v1127 = vpop.f32.mrf.mxu0
  %v1128 = vadd.f32 %v1007, %v1127
  %1129 = vmatmul.bf16.gmra.mxu0 %v987
  %v1130 = vpop.f32.mrf.mxu0
  %v1131 = vadd.f32 %v1007, %v1130
  %v1132 = vpop.f32.mrf.mxu0
  %v1133 = vadd.f32 %v1007, %v1132
  %1134 = vmatmul.bf16.gmra.mxu0 %v988
  %v1135 = vpop.f32.mrf.mxu0
  %v1136 = vadd.f32 %v1007, %v1135
  %v1137 = vpop.f32.mrf.mxu0
  %v1138 = vadd.f32 %v1007, %v1137
  %1139 = vmatmul.bf16.gmra.mxu0 %v989
  %v1140 = vpop.f32.mrf.mxu0
  %v1141 = vadd.f32 %v1007, %v1140
  %v1142 = vpop.f32.mrf.mxu0
  %v1143 = vadd.f32 %v1007, %v1142
  %1144 = vdwg.mxu0
  %v1145 = vtanh.pop %v1066
  %v1146 = vtanh.pop %v1068
  %v1147 = vtanh.pop %v1071
  %v1148 = vtanh.pop %v1073
  %v1149 = vtanh.pop %v1076
  %v1150 = vtanh.pop %v1078
  %v1151 = vtanh.pop %v1081
  %v1152 = vtanh.pop %v1083
  %v1153 = vtanh.pop %v1086
  %v1154 = vtanh.pop %v1088
  %v1155 = vtanh.pop %v1091
  %v1156 = vtanh.pop %v1093
  %v1157 = vtanh.pop %v1096
  %v1158 = vtanh.pop %v1098
  %v1159 = vtanh.pop %v1101
  %v1160 = vtanh.pop %v1103
  %v1161 = vtanh.pop %v1106
  %v1162 = vtanh.pop %v1108
  %v1163 = vtanh.pop %v1111
  %v1164 = vtanh.pop %v1113
  %v1165 = vtanh.pop %v1116
  %v1166 = vtanh.pop %v1118
  %v1167 = vtanh.pop %v1121
  %v1168 = vtanh.pop %v1123
  %v1169 = vtanh.pop %v1126
  %v1170 = vtanh.pop %v1128
  %v1171 = vtanh.pop %v1131
  %v1172 = vtanh.pop %v1133
  %v1173 = vtanh.pop %v1136
  %v1174 = vtanh.pop %v1138
  %v1175 = vtanh.pop %v1141
  %v1176 = vtanh.pop %v1143
  %v1177 = vadd.f32 %v1145, %v942
  %v1178 = vadd.f32 %v1146, %v943
  %v1179 = vadd.f32 %v1147, %v944
  %v1180 = vadd.f32 %v1148, %v945
  %v1181 = vadd.f32 %v1149, %v946
  %v1182 = vadd.f32 %v1150, %v947
  %v1183 = vadd.f32 %v1151, %v948
  %v1184 = vadd.f32 %v1152, %v949
  %v1185 = vadd.f32 %v1153, %v950
  %v1186 = vadd.f32 %v1154, %v951
  %v1187 = vadd.f32 %v1155, %v952
  %v1188 = vadd.f32 %v1156, %v953
  %v1189 = vadd.f32 %v1157, %v954
  %v1190 = vadd.f32 %v1158, %v955
  %v1191 = vadd.f32 %v1159, %v956
  %v1192 = vadd.f32 %v1160, %v957
  %v1193 = vadd.f32 %v1161, %v958
  %v1194 = vadd.f32 %v1162, %v959
  %v1195 = vadd.f32 %v1163, %v960
  %v1196 = vadd.f32 %v1164, %v961
  %v1197 = vadd.f32 %v1165, %v962
  %v1198 = vadd.f32 %v1166, %v963
  %v1199 = vadd.f32 %v1167, %v964
  %v1200 = vadd.f32 %v1168, %v965
  %v1201 = vadd.f32 %v1169, %v966
  %v1202 = vadd.f32 %v1170, %v967
  %v1203 = vadd.f32 %v1171, %v968
  %v1204 = vadd.f32 %v1172, %v969
  %v1205 = vadd.f32 %v1173, %v970
  %v1206 = vadd.f32 %v1174, %v971
  %v1207 = vadd.f32 %v1175, %v972
  %v1208 = vadd.f32 %v1176, %v973
  %v1209 = vpack.c.bf16 %v1178, %v1177
  %v1210 = vpack.c.bf16 %v1180, %v1179
  %v1211 = vpack.c.bf16 %v1182, %v1181
  %v1212 = vpack.c.bf16 %v1184, %v1183
  %v1213 = vpack.c.bf16 %v1186, %v1185
  %v1214 = vpack.c.bf16 %v1188, %v1187
  %v1215 = vpack.c.bf16 %v1190, %v1189
  %v1216 = vpack.c.bf16 %v1192, %v1191
  %v1217 = vpack.c.bf16 %v1194, %v1193
  %v1218 = vpack.c.bf16 %v1196, %v1195
  %v1219 = vpack.c.bf16 %v1198, %v1197
  %v1220 = vpack.c.bf16 %v1200, %v1199
  %v1221 = vpack.c.bf16 %v1202, %v1201
  %v1222 = vpack.c.bf16 %v1204, %v1203
  %v1223 = vpack.c.bf16 %v1206, %v1205
  %v1224 = vpack.c.bf16 %v1208, %v1207
  %s1225 = scalar_lea.vmem %s3, 192
  %v1226 = vld [vmem:[%s1225] sm:$0xf]
  %v1227 = vld [vmem:[%s1225 + $0x4] sm:$0xf]
  %v1228 = vld [vmem:[%s1225 + $0x8] sm:$0xf]
  %v1229 = vld [vmem:[%s1225 + $0xc] sm:$0xf]
  %v1230 = vld [vmem:[%s1225 + $0x10] sm:$0xf]
  %v1231 = vld [vmem:[%s1225 + $0x14] sm:$0xf]
  %v1232 = vld [vmem:[%s1225 + $0x18] sm:$0xf]
  %v1233 = vld [vmem:[%s1225 + $0x1c] sm:$0xf]
  %v1234 = vld [vmem:[%s1225 + $0x20] sm:$0xf]
  %v1235 = vld [vmem:[%s1225 + $0x24] sm:$0xf]
  %v1236 = vld [vmem:[%s1225 + $0x28] sm:$0xf]
  %v1237 = vld [vmem:[%s1225 + $0x2c] sm:$0xf]
  %v1238 = vld [vmem:[%s1225 + $0x30] sm:$0xf]
  %v1239 = vld [vmem:[%s1225 + $0x34] sm:$0xf]
  %v1240 = vld [vmem:[%s1225 + $0x38] sm:$0xf]
  %v1241 = vld [vmem:[%s1225 + $0x3c] sm:$0xf]
  %v1242 = vperm.slane %v21, 4
  %v1259 = vunpack.c.l.b16 %v1226
  %v1260 = vunpack.c.l.b16 %v1227
  %v1261 = vunpack.c.l.b16 %v1228
  %v1262 = vunpack.c.l.b16 %v1229
  %v1263 = vunpack.c.l.b16 %v1230
  %v1264 = vunpack.c.l.b16 %v1231
  %v1265 = vunpack.c.l.b16 %v1232
  %v1266 = vunpack.c.l.b16 %v1233
  %v1267 = vunpack.c.l.b16 %v1234
  %v1268 = vunpack.c.l.b16 %v1235
  %v1269 = vunpack.c.l.b16 %v1236
  %v1270 = vunpack.c.l.b16 %v1237
  %v1271 = vunpack.c.l.b16 %v1238
  %v1272 = vunpack.c.l.b16 %v1239
  %v1273 = vunpack.c.l.b16 %v1240
  %v1274 = vunpack.c.l.b16 %v1241
  %v1275 = vpack.c.b16 %v1260, %v1259
  %v1276 = vpack.c.b16 %v1262, %v1261
  %v1277 = vpack.c.b16 %v1264, %v1263
  %v1278 = vpack.c.b16 %v1266, %v1265
  %v1279 = vpack.c.b16 %v1268, %v1267
  %v1280 = vpack.c.b16 %v1270, %v1269
  %v1281 = vpack.c.b16 %v1272, %v1271
  %v1282 = vpack.c.b16 %v1274, %v1273
  %1291 = vmatpush.bf16.msra.mxu0 %v1282
  %1292 = vmatpush.bf16.msra.mxu0 %v1281
  %1293 = vmatpush.bf16.msra.mxu0 %v1280
  %1294 = vmatpush.bf16.msra.mxu0 %v1279
  %1295 = vmatpush.bf16.msra.mxu0 %v1278
  %1296 = vmatpush.bf16.msra.mxu0 %v1277
  %1297 = vmatpush.bf16.msra.mxu0 %v1276
  %1298 = vmatpush.bf16.msra.mxu0 %v1275
  %1299 = vmatmul.bf16.gmra.mxu0 %v1209
  %v1300 = vpop.f32.mrf.mxu0
  %v1301 = vadd.f32 %v1242, %v1300
  %v1302 = vpop.f32.mrf.mxu0
  %v1303 = vadd.f32 %v1242, %v1302
  %1304 = vmatmul.bf16.gmra.mxu0 %v1210
  %v1305 = vpop.f32.mrf.mxu0
  %v1306 = vadd.f32 %v1242, %v1305
  %v1307 = vpop.f32.mrf.mxu0
  %v1308 = vadd.f32 %v1242, %v1307
  %1309 = vmatmul.bf16.gmra.mxu0 %v1211
  %v1310 = vpop.f32.mrf.mxu0
  %v1311 = vadd.f32 %v1242, %v1310
  %v1312 = vpop.f32.mrf.mxu0
  %v1313 = vadd.f32 %v1242, %v1312
  %1314 = vmatmul.bf16.gmra.mxu0 %v1212
  %v1315 = vpop.f32.mrf.mxu0
  %v1316 = vadd.f32 %v1242, %v1315
  %v1317 = vpop.f32.mrf.mxu0
  %v1318 = vadd.f32 %v1242, %v1317
  %1319 = vmatmul.bf16.gmra.mxu0 %v1213
  %v1320 = vpop.f32.mrf.mxu0
  %v1321 = vadd.f32 %v1242, %v1320
  %v1322 = vpop.f32.mrf.mxu0
  %v1323 = vadd.f32 %v1242, %v1322
  %1324 = vmatmul.bf16.gmra.mxu0 %v1214
  %v1325 = vpop.f32.mrf.mxu0
  %v1326 = vadd.f32 %v1242, %v1325
  %v1327 = vpop.f32.mrf.mxu0
  %v1328 = vadd.f32 %v1242, %v1327
  %1329 = vmatmul.bf16.gmra.mxu0 %v1215
  %v1330 = vpop.f32.mrf.mxu0
  %v1331 = vadd.f32 %v1242, %v1330
  %v1332 = vpop.f32.mrf.mxu0
  %v1333 = vadd.f32 %v1242, %v1332
  %1334 = vmatmul.bf16.gmra.mxu0 %v1216
  %v1335 = vpop.f32.mrf.mxu0
  %v1336 = vadd.f32 %v1242, %v1335
  %v1337 = vpop.f32.mrf.mxu0
  %v1338 = vadd.f32 %v1242, %v1337
  %1339 = vmatmul.bf16.gmra.mxu0 %v1217
  %v1340 = vpop.f32.mrf.mxu0
  %v1341 = vadd.f32 %v1242, %v1340
  %v1342 = vpop.f32.mrf.mxu0
  %v1343 = vadd.f32 %v1242, %v1342
  %1344 = vmatmul.bf16.gmra.mxu0 %v1218
  %v1345 = vpop.f32.mrf.mxu0
  %v1346 = vadd.f32 %v1242, %v1345
  %v1347 = vpop.f32.mrf.mxu0
  %v1348 = vadd.f32 %v1242, %v1347
  %1349 = vmatmul.bf16.gmra.mxu0 %v1219
  %v1350 = vpop.f32.mrf.mxu0
  %v1351 = vadd.f32 %v1242, %v1350
  %v1352 = vpop.f32.mrf.mxu0
  %v1353 = vadd.f32 %v1242, %v1352
  %1354 = vmatmul.bf16.gmra.mxu0 %v1220
  %v1355 = vpop.f32.mrf.mxu0
  %v1356 = vadd.f32 %v1242, %v1355
  %v1357 = vpop.f32.mrf.mxu0
  %v1358 = vadd.f32 %v1242, %v1357
  %1359 = vmatmul.bf16.gmra.mxu0 %v1221
  %v1360 = vpop.f32.mrf.mxu0
  %v1361 = vadd.f32 %v1242, %v1360
  %v1362 = vpop.f32.mrf.mxu0
  %v1363 = vadd.f32 %v1242, %v1362
  %1364 = vmatmul.bf16.gmra.mxu0 %v1222
  %v1365 = vpop.f32.mrf.mxu0
  %v1366 = vadd.f32 %v1242, %v1365
  %v1367 = vpop.f32.mrf.mxu0
  %v1368 = vadd.f32 %v1242, %v1367
  %1369 = vmatmul.bf16.gmra.mxu0 %v1223
  %v1370 = vpop.f32.mrf.mxu0
  %v1371 = vadd.f32 %v1242, %v1370
  %v1372 = vpop.f32.mrf.mxu0
  %v1373 = vadd.f32 %v1242, %v1372
  %1374 = vmatmul.bf16.gmra.mxu0 %v1224
  %v1375 = vpop.f32.mrf.mxu0
  %v1376 = vadd.f32 %v1242, %v1375
  %v1377 = vpop.f32.mrf.mxu0
  %v1378 = vadd.f32 %v1242, %v1377
  %1379 = vdwg.mxu0
  %v1380 = vtanh.pop %v1301
  %v1381 = vtanh.pop %v1303
  %v1382 = vtanh.pop %v1306
  %v1383 = vtanh.pop %v1308
  %v1384 = vtanh.pop %v1311
  %v1385 = vtanh.pop %v1313
  %v1386 = vtanh.pop %v1316
  %v1387 = vtanh.pop %v1318
  %v1388 = vtanh.pop %v1321
  %v1389 = vtanh.pop %v1323
  %v1390 = vtanh.pop %v1326
  %v1391 = vtanh.pop %v1328
  %v1392 = vtanh.pop %v1331
  %v1393 = vtanh.pop %v1333
  %v1394 = vtanh.pop %v1336
  %v1395 = vtanh.pop %v1338
  %v1396 = vtanh.pop %v1341
  %v1397 = vtanh.pop %v1343
  %v1398 = vtanh.pop %v1346
  %v1399 = vtanh.pop %v1348
  %v1400 = vtanh.pop %v1351
  %v1401 = vtanh.pop %v1353
  %v1402 = vtanh.pop %v1356
  %v1403 = vtanh.pop %v1358
  %v1404 = vtanh.pop %v1361
  %v1405 = vtanh.pop %v1363
  %v1406 = vtanh.pop %v1366
  %v1407 = vtanh.pop %v1368
  %v1408 = vtanh.pop %v1371
  %v1409 = vtanh.pop %v1373
  %v1410 = vtanh.pop %v1376
  %v1411 = vtanh.pop %v1378
  %v1412 = vpack.c.bf16 %v1381, %v1380
  %v1413 = vpack.c.bf16 %v1383, %v1382
  %v1414 = vpack.c.bf16 %v1385, %v1384
  %v1415 = vpack.c.bf16 %v1387, %v1386
  %v1416 = vpack.c.bf16 %v1389, %v1388
  %v1417 = vpack.c.bf16 %v1391, %v1390
  %v1418 = vpack.c.bf16 %v1393, %v1392
  %v1419 = vpack.c.bf16 %v1395, %v1394
  %v1420 = vpack.c.bf16 %v1397, %v1396
  %v1421 = vpack.c.bf16 %v1399, %v1398
  %v1422 = vpack.c.bf16 %v1401, %v1400
  %v1423 = vpack.c.bf16 %v1403, %v1402
  %v1424 = vpack.c.bf16 %v1405, %v1404
  %v1425 = vpack.c.bf16 %v1407, %v1406
  %v1426 = vpack.c.bf16 %v1409, %v1408
  %v1427 = vpack.c.bf16 %v1411, %v1410
  %v1428 = vld [vmem:[%s4] sm:$0xf]
  %v1429 = vld [vmem:[%s4 + $0x4] sm:$0xf]
  %v1430 = vld [vmem:[%s4 + $0x8] sm:$0xf]
  %v1431 = vld [vmem:[%s4 + $0xc] sm:$0xf]
  %v1432 = vld [vmem:[%s4 + $0x10] sm:$0xf]
  %v1433 = vld [vmem:[%s4 + $0x14] sm:$0xf]
  %v1434 = vld [vmem:[%s4 + $0x18] sm:$0xf]
  %v1435 = vld [vmem:[%s4 + $0x1c] sm:$0xf]
  %v1436 = vld [vmem:[%s4 + $0x20] sm:$0xf]
  %v1437 = vld [vmem:[%s4 + $0x24] sm:$0xf]
  %v1438 = vld [vmem:[%s4 + $0x28] sm:$0xf]
  %v1439 = vld [vmem:[%s4 + $0x2c] sm:$0xf]
  %v1440 = vld [vmem:[%s4 + $0x30] sm:$0xf]
  %v1441 = vld [vmem:[%s4 + $0x34] sm:$0xf]
  %v1442 = vld [vmem:[%s4 + $0x38] sm:$0xf]
  %v1443 = vld [vmem:[%s4 + $0x3c] sm:$0xf]
  %v1444 = vperm.slane %v21, 5
  %v1461 = vunpack.c.l.b16 %v1428
  %v1462 = vunpack.c.l.b16 %v1429
  %v1463 = vunpack.c.l.b16 %v1430
  %v1464 = vunpack.c.l.b16 %v1431
  %v1465 = vunpack.c.l.b16 %v1432
  %v1466 = vunpack.c.l.b16 %v1433
  %v1467 = vunpack.c.l.b16 %v1434
  %v1468 = vunpack.c.l.b16 %v1435
  %v1469 = vunpack.c.l.b16 %v1436
  %v1470 = vunpack.c.l.b16 %v1437
  %v1471 = vunpack.c.l.b16 %v1438
  %v1472 = vunpack.c.l.b16 %v1439
  %v1473 = vunpack.c.l.b16 %v1440
  %v1474 = vunpack.c.l.b16 %v1441
  %v1475 = vunpack.c.l.b16 %v1442
  %v1476 = vunpack.c.l.b16 %v1443
  %v1477 = vpack.c.b16 %v1462, %v1461
  %v1478 = vpack.c.b16 %v1464, %v1463
  %v1479 = vpack.c.b16 %v1466, %v1465
  %v1480 = vpack.c.b16 %v1468, %v1467
  %v1481 = vpack.c.b16 %v1470, %v1469
  %v1482 = vpack.c.b16 %v1472, %v1471
  %v1483 = vpack.c.b16 %v1474, %v1473
  %v1484 = vpack.c.b16 %v1476, %v1475
  %1493 = vmatpush.bf16.msra.mxu0 %v1484
  %1494 = vmatpush.bf16.msra.mxu0 %v1483
  %1495 = vmatpush.bf16.msra.mxu0 %v1482
  %1496 = vmatpush.bf16.msra.mxu0 %v1481
  %1497 = vmatpush.bf16.msra.mxu0 %v1480
  %1498 = vmatpush.bf16.msra.mxu0 %v1479
  %1499 = vmatpush.bf16.msra.mxu0 %v1478
  %1500 = vmatpush.bf16.msra.mxu0 %v1477
  %1501 = vmatmul.bf16.gmra.mxu0 %v1412
  %v1502 = vpop.f32.mrf.mxu0
  %v1503 = vadd.f32 %v1444, %v1502
  %v1504 = vpop.f32.mrf.mxu0
  %v1505 = vadd.f32 %v1444, %v1504
  %1506 = vmatmul.bf16.gmra.mxu0 %v1413
  %v1507 = vpop.f32.mrf.mxu0
  %v1508 = vadd.f32 %v1444, %v1507
  %v1509 = vpop.f32.mrf.mxu0
  %v1510 = vadd.f32 %v1444, %v1509
  %1511 = vmatmul.bf16.gmra.mxu0 %v1414
  %v1512 = vpop.f32.mrf.mxu0
  %v1513 = vadd.f32 %v1444, %v1512
  %v1514 = vpop.f32.mrf.mxu0
  %v1515 = vadd.f32 %v1444, %v1514
  %1516 = vmatmul.bf16.gmra.mxu0 %v1415
  %v1517 = vpop.f32.mrf.mxu0
  %v1518 = vadd.f32 %v1444, %v1517
  %v1519 = vpop.f32.mrf.mxu0
  %v1520 = vadd.f32 %v1444, %v1519
  %1521 = vmatmul.bf16.gmra.mxu0 %v1416
  %v1522 = vpop.f32.mrf.mxu0
  %v1523 = vadd.f32 %v1444, %v1522
  %v1524 = vpop.f32.mrf.mxu0
  %v1525 = vadd.f32 %v1444, %v1524
  %1526 = vmatmul.bf16.gmra.mxu0 %v1417
  %v1527 = vpop.f32.mrf.mxu0
  %v1528 = vadd.f32 %v1444, %v1527
  %v1529 = vpop.f32.mrf.mxu0
  %v1530 = vadd.f32 %v1444, %v1529
  %1531 = vmatmul.bf16.gmra.mxu0 %v1418
  %v1532 = vpop.f32.mrf.mxu0
  %v1533 = vadd.f32 %v1444, %v1532
  %v1534 = vpop.f32.mrf.mxu0
  %v1535 = vadd.f32 %v1444, %v1534
  %1536 = vmatmul.bf16.gmra.mxu0 %v1419
  %v1537 = vpop.f32.mrf.mxu0
  %v1538 = vadd.f32 %v1444, %v1537
  %v1539 = vpop.f32.mrf.mxu0
  %v1540 = vadd.f32 %v1444, %v1539
  %1541 = vmatmul.bf16.gmra.mxu0 %v1420
  %v1542 = vpop.f32.mrf.mxu0
  %v1543 = vadd.f32 %v1444, %v1542
  %v1544 = vpop.f32.mrf.mxu0
  %v1545 = vadd.f32 %v1444, %v1544
  %1546 = vmatmul.bf16.gmra.mxu0 %v1421
  %v1547 = vpop.f32.mrf.mxu0
  %v1548 = vadd.f32 %v1444, %v1547
  %v1549 = vpop.f32.mrf.mxu0
  %v1550 = vadd.f32 %v1444, %v1549
  %1551 = vmatmul.bf16.gmra.mxu0 %v1422
  %v1552 = vpop.f32.mrf.mxu0
  %v1553 = vadd.f32 %v1444, %v1552
  %v1554 = vpop.f32.mrf.mxu0
  %v1555 = vadd.f32 %v1444, %v1554
  %1556 = vmatmul.bf16.gmra.mxu0 %v1423
  %v1557 = vpop.f32.mrf.mxu0
  %v1558 = vadd.f32 %v1444, %v1557
  %v1559 = vpop.f32.mrf.mxu0
  %v1560 = vadd.f32 %v1444, %v1559
  %1561 = vmatmul.bf16.gmra.mxu0 %v1424
  %v1562 = vpop.f32.mrf.mxu0
  %v1563 = vadd.f32 %v1444, %v1562
  %v1564 = vpop.f32.mrf.mxu0
  %v1565 = vadd.f32 %v1444, %v1564
  %1566 = vmatmul.bf16.gmra.mxu0 %v1425
  %v1567 = vpop.f32.mrf.mxu0
  %v1568 = vadd.f32 %v1444, %v1567
  %v1569 = vpop.f32.mrf.mxu0
  %v1570 = vadd.f32 %v1444, %v1569
  %1571 = vmatmul.bf16.gmra.mxu0 %v1426
  %v1572 = vpop.f32.mrf.mxu0
  %v1573 = vadd.f32 %v1444, %v1572
  %v1574 = vpop.f32.mrf.mxu0
  %v1575 = vadd.f32 %v1444, %v1574
  %1576 = vmatmul.bf16.gmra.mxu0 %v1427
  %v1577 = vpop.f32.mrf.mxu0
  %v1578 = vadd.f32 %v1444, %v1577
  %v1579 = vpop.f32.mrf.mxu0
  %v1580 = vadd.f32 %v1444, %v1579
  %1581 = vdwg.mxu0
  %vm1582 = vcmask 64512
  %1583 = vst.msk [vmem:[%s5] sm:$0xff] %vm1582, %v1503
  %1584 = vst.msk [vmem:[%s5 + $0x8] sm:$0xff] %vm1582, %v1505
  %1585 = vst.msk [vmem:[%s5 + $0x10] sm:$0xff] %vm1582, %v1508
  %1586 = vst.msk [vmem:[%s5 + $0x18] sm:$0xff] %vm1582, %v1510
  %1587 = vst.msk [vmem:[%s5 + $0x20] sm:$0xff] %vm1582, %v1513
  %1588 = vst.msk [vmem:[%s5 + $0x28] sm:$0xff] %vm1582, %v1515
  %1589 = vst.msk [vmem:[%s5 + $0x30] sm:$0xff] %vm1582, %v1518
  %1590 = vst.msk [vmem:[%s5 + $0x38] sm:$0xff] %vm1582, %v1520
  %1591 = vst.msk [vmem:[%s5 + $0x40] sm:$0xff] %vm1582, %v1523
  %1592 = vst.msk [vmem:[%s5 + $0x48] sm:$0xff] %vm1582, %v1525
  %1593 = vst.msk [vmem:[%s5 + $0x50] sm:$0xff] %vm1582, %v1528
  %1594 = vst.msk [vmem:[%s5 + $0x58] sm:$0xff] %vm1582, %v1530
  %1595 = vst.msk [vmem:[%s5 + $0x60] sm:$0xff] %vm1582, %v1533
  %1596 = vst.msk [vmem:[%s5 + $0x68] sm:$0xff] %vm1582, %v1535
  %1597 = vst.msk [vmem:[%s5 + $0x70] sm:$0xff] %vm1582, %v1538
  %1598 = vst.msk [vmem:[%s5 + $0x78] sm:$0xff] %vm1582, %v1540
  %1599 = vst.msk [vmem:[%s5 + $0x80] sm:$0xff] %vm1582, %v1543
  %1600 = vst.msk [vmem:[%s5 + $0x88] sm:$0xff] %vm1582, %v1545
  %1601 = vst.msk [vmem:[%s5 + $0x90] sm:$0xff] %vm1582, %v1548
  %1602 = vst.msk [vmem:[%s5 + $0x98] sm:$0xff] %vm1582, %v1550
  %1603 = vst.msk [vmem:[%s5 + $0xa0] sm:$0xff] %vm1582, %v1553
  %1604 = vst.msk [vmem:[%s5 + $0xa8] sm:$0xff] %vm1582, %v1555
  %1605 = vst.msk [vmem:[%s5 + $0xb0] sm:$0xff] %vm1582, %v1558
  %1606 = vst.msk [vmem:[%s5 + $0xb8] sm:$0xff] %vm1582, %v1560
  %1607 = vst.msk [vmem:[%s5 + $0xc0] sm:$0xff] %vm1582, %v1563
  %1608 = vst.msk [vmem:[%s5 + $0xc8] sm:$0xff] %vm1582, %v1565
  %1609 = vst.msk [vmem:[%s5 + $0xd0] sm:$0xff] %vm1582, %v1568
  %1610 = vst.msk [vmem:[%s5 + $0xd8] sm:$0xff] %vm1582, %v1570
  %1611 = vst.msk [vmem:[%s5 + $0xe0] sm:$0xff] %vm1582, %v1573
  %1612 = vst.msk [vmem:[%s5 + $0xe8] sm:$0xff] %vm1582, %v1575
  %1613 = vst.msk [vmem:[%s5 + $0xf0] sm:$0xff] %vm1582, %v1578
  %1614 = vst.msk [vmem:[%s5 + $0xf8] sm:$0xff] %vm1582, %v1580
  %s1615 = scalar_lea.vmem %s0, 256
  %v1616 = vld [vmem:[%s1615] sm:$0xff]
  %v1617 = vld [vmem:[%s1615 + $0x8] sm:$0xff]
  %v1618 = vld [vmem:[%s1615 + $0x10] sm:$0xff]
  %v1619 = vld [vmem:[%s1615 + $0x18] sm:$0xff]
  %v1620 = vld [vmem:[%s1615 + $0x20] sm:$0xff]
  %v1621 = vld [vmem:[%s1615 + $0x28] sm:$0xff]
  %v1622 = vld [vmem:[%s1615 + $0x30] sm:$0xff]
  %v1623 = vld [vmem:[%s1615 + $0x38] sm:$0xff]
  %v1624 = vld [vmem:[%s1615 + $0x40] sm:$0xff]
  %v1625 = vld [vmem:[%s1615 + $0x48] sm:$0xff]
  %v1626 = vld [vmem:[%s1615 + $0x50] sm:$0xff]
  %v1627 = vld [vmem:[%s1615 + $0x58] sm:$0xff]
  %v1628 = vld [vmem:[%s1615 + $0x60] sm:$0xff]
  %v1629 = vld [vmem:[%s1615 + $0x68] sm:$0xff]
  %v1630 = vld [vmem:[%s1615 + $0x70] sm:$0xff]
  %v1631 = vld [vmem:[%s1615 + $0x78] sm:$0xff]
  %v1632 = vld [vmem:[%s1615 + $0x80] sm:$0xff]
  %v1633 = vld [vmem:[%s1615 + $0x88] sm:$0xff]
  %v1634 = vld [vmem:[%s1615 + $0x90] sm:$0xff]
  %v1635 = vld [vmem:[%s1615 + $0x98] sm:$0xff]
  %v1636 = vld [vmem:[%s1615 + $0xa0] sm:$0xff]
  %v1637 = vld [vmem:[%s1615 + $0xa8] sm:$0xff]
  %v1638 = vld [vmem:[%s1615 + $0xb0] sm:$0xff]
  %v1639 = vld [vmem:[%s1615 + $0xb8] sm:$0xff]
  %v1640 = vld [vmem:[%s1615 + $0xc0] sm:$0xff]
  %v1641 = vld [vmem:[%s1615 + $0xc8] sm:$0xff]
  %v1642 = vld [vmem:[%s1615 + $0xd0] sm:$0xff]
  %v1643 = vld [vmem:[%s1615 + $0xd8] sm:$0xff]
  %v1644 = vld [vmem:[%s1615 + $0xe0] sm:$0xff]
  %v1645 = vld [vmem:[%s1615 + $0xe8] sm:$0xff]
  %v1646 = vld [vmem:[%s1615 + $0xf0] sm:$0xff]
  %v1647 = vld [vmem:[%s1615 + $0xf8] sm:$0xff]
  %1649 = vset.pattern.permute.xlu0 0
  %1650 = vperm.xlu0 %1649, %v1616
  %v1651 = vpop.permute.xlu0 %1650
  %1654 = vset.pattern.permute.xlu0 0
  %1655 = vperm.xlu0 %1654, %v1617
  %v1656 = vpop.permute.xlu0 %1655
  %1659 = vset.pattern.permute.xlu0 0
  %1660 = vperm.xlu0 %1659, %v1618
  %v1661 = vpop.permute.xlu0 %1660
  %1664 = vset.pattern.permute.xlu0 0
  %1665 = vperm.xlu0 %1664, %v1619
  %v1666 = vpop.permute.xlu0 %1665
  %1669 = vset.pattern.permute.xlu0 0
  %1670 = vperm.xlu0 %1669, %v1620
  %v1671 = vpop.permute.xlu0 %1670
  %1674 = vset.pattern.permute.xlu0 0
  %1675 = vperm.xlu0 %1674, %v1621
  %v1676 = vpop.permute.xlu0 %1675
  %1679 = vset.pattern.permute.xlu0 0
  %1680 = vperm.xlu0 %1679, %v1622
  %v1681 = vpop.permute.xlu0 %1680
  %1684 = vset.pattern.permute.xlu0 0
  %1685 = vperm.xlu0 %1684, %v1623
  %v1686 = vpop.permute.xlu0 %1685
  %1689 = vset.pattern.permute.xlu0 0
  %1690 = vperm.xlu0 %1689, %v1624
  %v1691 = vpop.permute.xlu0 %1690
  %1694 = vset.pattern.permute.xlu0 0
  %1695 = vperm.xlu0 %1694, %v1625
  %v1696 = vpop.permute.xlu0 %1695
  %1699 = vset.pattern.permute.xlu0 0
  %1700 = vperm.xlu0 %1699, %v1626
  %v1701 = vpop.permute.xlu0 %1700
  %1704 = vset.pattern.permute.xlu0 0
  %1705 = vperm.xlu0 %1704, %v1627
  %v1706 = vpop.permute.xlu0 %1705
  %1709 = vset.pattern.permute.xlu0 0
  %1710 = vperm.xlu0 %1709, %v1628
  %v1711 = vpop.permute.xlu0 %1710
  %1714 = vset.pattern.permute.xlu0 0
  %1715 = vperm.xlu0 %1714, %v1629
  %v1716 = vpop.permute.xlu0 %1715
  %1719 = vset.pattern.permute.xlu0 0
  %1720 = vperm.xlu0 %1719, %v1630
  %v1721 = vpop.permute.xlu0 %1720
  %1724 = vset.pattern.permute.xlu0 0
  %1725 = vperm.xlu0 %1724, %v1631
  %v1726 = vpop.permute.xlu0 %1725
  %1729 = vset.pattern.permute.xlu0 0
  %1730 = vperm.xlu0 %1729, %v1632
  %v1731 = vpop.permute.xlu0 %1730
  %1734 = vset.pattern.permute.xlu0 0
  %1735 = vperm.xlu0 %1734, %v1633
  %v1736 = vpop.permute.xlu0 %1735
  %1739 = vset.pattern.permute.xlu0 0
  %1740 = vperm.xlu0 %1739, %v1634
  %v1741 = vpop.permute.xlu0 %1740
  %1744 = vset.pattern.permute.xlu0 0
  %1745 = vperm.xlu0 %1744, %v1635
  %v1746 = vpop.permute.xlu0 %1745
  %1749 = vset.pattern.permute.xlu0 0
  %1750 = vperm.xlu0 %1749, %v1636
  %v1751 = vpop.permute.xlu0 %1750
  %1754 = vset.pattern.permute.xlu0 0
  %1755 = vperm.xlu0 %1754, %v1637
  %v1756 = vpop.permute.xlu0 %1755
  %1759 = vset.pattern.permute.xlu0 0
  %1760 = vperm.xlu0 %1759, %v1638
  %v1761 = vpop.permute.xlu0 %1760
  %1764 = vset.pattern.permute.xlu0 0
  %1765 = vperm.xlu0 %1764, %v1639
  %v1766 = vpop.permute.xlu0 %1765
  %1769 = vset.pattern.permute.xlu0 0
  %1770 = vperm.xlu0 %1769, %v1640
  %v1771 = vpop.permute.xlu0 %1770
  %1774 = vset.pattern.permute.xlu0 0
  %1775 = vperm.xlu0 %1774, %v1641
  %v1776 = vpop.permute.xlu0 %1775
  %1779 = vset.pattern.permute.xlu0 0
  %1780 = vperm.xlu0 %1779, %v1642
  %v1781 = vpop.permute.xlu0 %1780
  %1784 = vset.pattern.permute.xlu0 0
  %1785 = vperm.xlu0 %1784, %v1643
  %v1786 = vpop.permute.xlu0 %1785
  %1789 = vset.pattern.permute.xlu0 0
  %1790 = vperm.xlu0 %1789, %v1644
  %v1791 = vpop.permute.xlu0 %1790
  %1794 = vset.pattern.permute.xlu0 0
  %1795 = vperm.xlu0 %1794, %v1645
  %v1796 = vpop.permute.xlu0 %1795
  %1799 = vset.pattern.permute.xlu0 0
  %1800 = vperm.xlu0 %1799, %v1646
  %v1801 = vpop.permute.xlu0 %1800
  %1804 = vset.pattern.permute.xlu0 0
  %1805 = vperm.xlu0 %1804, %v1647
  %v1806 = vpop.permute.xlu0 %1805
  %v1808 = vmul.f32 %v1651, %v214
  %v1809 = vmul.f32 %v1656, %v214
  %v1810 = vmul.f32 %v1661, %v214
  %v1811 = vmul.f32 %v1666, %v214
  %v1812 = vmul.f32 %v1671, %v214
  %v1813 = vmul.f32 %v1676, %v214
  %v1814 = vmul.f32 %v1681, %v214
  %v1815 = vmul.f32 %v1686, %v214
  %v1816 = vmul.f32 %v1691, %v214
  %v1817 = vmul.f32 %v1696, %v214
  %v1818 = vmul.f32 %v1701, %v214
  %v1819 = vmul.f32 %v1706, %v214
  %v1820 = vmul.f32 %v1711, %v214
  %v1821 = vmul.f32 %v1716, %v214
  %v1822 = vmul.f32 %v1721, %v214
  %v1823 = vmul.f32 %v1726, %v214
  %v1824 = vmul.f32 %v1731, %v214
  %v1825 = vmul.f32 %v1736, %v214
  %v1826 = vmul.f32 %v1741, %v214
  %v1827 = vmul.f32 %v1746, %v214
  %v1828 = vmul.f32 %v1751, %v214
  %v1829 = vmul.f32 %v1756, %v214
  %v1830 = vmul.f32 %v1761, %v214
  %v1831 = vmul.f32 %v1766, %v214
  %v1832 = vmul.f32 %v1771, %v214
  %v1833 = vmul.f32 %v1776, %v214
  %v1834 = vmul.f32 %v1781, %v214
  %v1835 = vmul.f32 %v1786, %v214
  %v1836 = vmul.f32 %v1791, %v214
  %v1837 = vmul.f32 %v1796, %v214
  %v1838 = vmul.f32 %v1801, %v214
  %v1839 = vmul.f32 %v1806, %v214
  %1840 = vset.pattern.permute.xlu0 1
  %1841 = vperm.xlu0 %1840, %v1616
  %v1842 = vpop.permute.xlu0 %1841
  %1844 = vset.pattern.permute.xlu0 1
  %1845 = vperm.xlu0 %1844, %v1617
  %v1846 = vpop.permute.xlu0 %1845
  %1848 = vset.pattern.permute.xlu0 1
  %1849 = vperm.xlu0 %1848, %v1618
  %v1850 = vpop.permute.xlu0 %1849
  %1852 = vset.pattern.permute.xlu0 1
  %1853 = vperm.xlu0 %1852, %v1619
  %v1854 = vpop.permute.xlu0 %1853
  %1856 = vset.pattern.permute.xlu0 1
  %1857 = vperm.xlu0 %1856, %v1620
  %v1858 = vpop.permute.xlu0 %1857
  %1860 = vset.pattern.permute.xlu0 1
  %1861 = vperm.xlu0 %1860, %v1621
  %v1862 = vpop.permute.xlu0 %1861
  %1864 = vset.pattern.permute.xlu0 1
  %1865 = vperm.xlu0 %1864, %v1622
  %v1866 = vpop.permute.xlu0 %1865
  %1868 = vset.pattern.permute.xlu0 1
  %1869 = vperm.xlu0 %1868, %v1623
  %v1870 = vpop.permute.xlu0 %1869
  %1872 = vset.pattern.permute.xlu0 1
  %1873 = vperm.xlu0 %1872, %v1624
  %v1874 = vpop.permute.xlu0 %1873
  %1876 = vset.pattern.permute.xlu0 1
  %1877 = vperm.xlu0 %1876, %v1625
  %v1878 = vpop.permute.xlu0 %1877
  %1880 = vset.pattern.permute.xlu0 1
  %1881 = vperm.xlu0 %1880, %v1626
  %v1882 = vpop.permute.xlu0 %1881
  %1884 = vset.pattern.permute.xlu0 1
  %1885 = vperm.xlu0 %1884, %v1627
  %v1886 = vpop.permute.xlu0 %1885
  %1888 = vset.pattern.permute.xlu0 1
  %1889 = vperm.xlu0 %1888, %v1628
  %v1890 = vpop.permute.xlu0 %1889
  %1892 = vset.pattern.permute.xlu0 1
  %1893 = vperm.xlu0 %1892, %v1629
  %v1894 = vpop.permute.xlu0 %1893
  %1896 = vset.pattern.permute.xlu0 1
  %1897 = vperm.xlu0 %1896, %v1630
  %v1898 = vpop.permute.xlu0 %1897
  %1900 = vset.pattern.permute.xlu0 1
  %1901 = vperm.xlu0 %1900, %v1631
  %v1902 = vpop.permute.xlu0 %1901
  %1904 = vset.pattern.permute.xlu0 1
  %1905 = vperm.xlu0 %1904, %v1632
  %v1906 = vpop.permute.xlu0 %1905
  %1908 = vset.pattern.permute.xlu0 1
  %1909 = vperm.xlu0 %1908, %v1633
  %v1910 = vpop.permute.xlu0 %1909
  %1912 = vset.pattern.permute.xlu0 1
  %1913 = vperm.xlu0 %1912, %v1634
  %v1914 = vpop.permute.xlu0 %1913
  %1916 = vset.pattern.permute.xlu0 1
  %1917 = vperm.xlu0 %1916, %v1635
  %v1918 = vpop.permute.xlu0 %1917
  %1920 = vset.pattern.permute.xlu0 1
  %1921 = vperm.xlu0 %1920, %v1636
  %v1922 = vpop.permute.xlu0 %1921
  %1924 = vset.pattern.permute.xlu0 1
  %1925 = vperm.xlu0 %1924, %v1637
  %v1926 = vpop.permute.xlu0 %1925
  %1928 = vset.pattern.permute.xlu0 1
  %1929 = vperm.xlu0 %1928, %v1638
  %v1930 = vpop.permute.xlu0 %1929
  %1932 = vset.pattern.permute.xlu0 1
  %1933 = vperm.xlu0 %1932, %v1639
  %v1934 = vpop.permute.xlu0 %1933
  %1936 = vset.pattern.permute.xlu0 1
  %1937 = vperm.xlu0 %1936, %v1640
  %v1938 = vpop.permute.xlu0 %1937
  %1940 = vset.pattern.permute.xlu0 1
  %1941 = vperm.xlu0 %1940, %v1641
  %v1942 = vpop.permute.xlu0 %1941
  %1944 = vset.pattern.permute.xlu0 1
  %1945 = vperm.xlu0 %1944, %v1642
  %v1946 = vpop.permute.xlu0 %1945
  %1948 = vset.pattern.permute.xlu0 1
  %1949 = vperm.xlu0 %1948, %v1643
  %v1950 = vpop.permute.xlu0 %1949
  %1952 = vset.pattern.permute.xlu0 1
  %1953 = vperm.xlu0 %1952, %v1644
  %v1954 = vpop.permute.xlu0 %1953
  %1956 = vset.pattern.permute.xlu0 1
  %1957 = vperm.xlu0 %1956, %v1645
  %v1958 = vpop.permute.xlu0 %1957
  %1960 = vset.pattern.permute.xlu0 1
  %1961 = vperm.xlu0 %1960, %v1646
  %v1962 = vpop.permute.xlu0 %1961
  %1964 = vset.pattern.permute.xlu0 1
  %1965 = vperm.xlu0 %1964, %v1647
  %v1966 = vpop.permute.xlu0 %1965
  %v1968 = vmul.f32 %v1842, %v375
  %v1969 = vmul.f32 %v1846, %v375
  %v1970 = vmul.f32 %v1850, %v375
  %v1971 = vmul.f32 %v1854, %v375
  %v1972 = vmul.f32 %v1858, %v375
  %v1973 = vmul.f32 %v1862, %v375
  %v1974 = vmul.f32 %v1866, %v375
  %v1975 = vmul.f32 %v1870, %v375
  %v1976 = vmul.f32 %v1874, %v375
  %v1977 = vmul.f32 %v1878, %v375
  %v1978 = vmul.f32 %v1882, %v375
  %v1979 = vmul.f32 %v1886, %v375
  %v1980 = vmul.f32 %v1890, %v375
  %v1981 = vmul.f32 %v1894, %v375
  %v1982 = vmul.f32 %v1898, %v375
  %v1983 = vmul.f32 %v1902, %v375
  %v1984 = vmul.f32 %v1906, %v375
  %v1985 = vmul.f32 %v1910, %v375
  %v1986 = vmul.f32 %v1914, %v375
  %v1987 = vmul.f32 %v1918, %v375
  %v1988 = vmul.f32 %v1922, %v375
  %v1989 = vmul.f32 %v1926, %v375
  %v1990 = vmul.f32 %v1930, %v375
  %v1991 = vmul.f32 %v1934, %v375
  %v1992 = vmul.f32 %v1938, %v375
  %v1993 = vmul.f32 %v1942, %v375
  %v1994 = vmul.f32 %v1946, %v375
  %v1995 = vmul.f32 %v1950, %v375
  %v1996 = vmul.f32 %v1954, %v375
  %v1997 = vmul.f32 %v1958, %v375
  %v1998 = vmul.f32 %v1962, %v375
  %v1999 = vmul.f32 %v1966, %v375
  %v2000 = vadd.f32 %v1808, %v1968
  %v2001 = vadd.f32 %v1809, %v1969
  %v2002 = vadd.f32 %v1810, %v1970
  %v2003 = vadd.f32 %v1811, %v1971
  %v2004 = vadd.f32 %v1812, %v1972
  %v2005 = vadd.f32 %v1813, %v1973
  %v2006 = vadd.f32 %v1814, %v1974
  %v2007 = vadd.f32 %v1815, %v1975
  %v2008 = vadd.f32 %v1816, %v1976
  %v2009 = vadd.f32 %v1817, %v1977
  %v2010 = vadd.f32 %v1818, %v1978
  %v2011 = vadd.f32 %v1819, %v1979
  %v2012 = vadd.f32 %v1820, %v1980
  %v2013 = vadd.f32 %v1821, %v1981
  %v2014 = vadd.f32 %v1822, %v1982
  %v2015 = vadd.f32 %v1823, %v1983
  %v2016 = vadd.f32 %v1824, %v1984
  %v2017 = vadd.f32 %v1825, %v1985
  %v2018 = vadd.f32 %v1826, %v1986
  %v2019 = vadd.f32 %v1827, %v1987
  %v2020 = vadd.f32 %v1828, %v1988
  %v2021 = vadd.f32 %v1829, %v1989
  %v2022 = vadd.f32 %v1830, %v1990
  %v2023 = vadd.f32 %v1831, %v1991
  %v2024 = vadd.f32 %v1832, %v1992
  %v2025 = vadd.f32 %v1833, %v1993
  %v2026 = vadd.f32 %v1834, %v1994
  %v2027 = vadd.f32 %v1835, %v1995
  %v2028 = vadd.f32 %v1836, %v1996
  %v2029 = vadd.f32 %v1837, %v1997
  %v2030 = vadd.f32 %v1838, %v1998
  %v2031 = vadd.f32 %v1839, %v1999
  %v2032 = vadd.f32 %v2000, %v440
  %v2033 = vadd.f32 %v2001, %v440
  %v2034 = vadd.f32 %v2002, %v440
  %v2035 = vadd.f32 %v2003, %v440
  %v2036 = vadd.f32 %v2004, %v440
  %v2037 = vadd.f32 %v2005, %v440
  %v2038 = vadd.f32 %v2006, %v440
  %v2039 = vadd.f32 %v2007, %v440
  %v2040 = vadd.f32 %v2008, %v440
  %v2041 = vadd.f32 %v2009, %v440
  %v2042 = vadd.f32 %v2010, %v440
  %v2043 = vadd.f32 %v2011, %v440
  %v2044 = vadd.f32 %v2012, %v440
  %v2045 = vadd.f32 %v2013, %v440
  %v2046 = vadd.f32 %v2014, %v440
  %v2047 = vadd.f32 %v2015, %v440
  %v2048 = vadd.f32 %v2016, %v440
  %v2049 = vadd.f32 %v2017, %v440
  %v2050 = vadd.f32 %v2018, %v440
  %v2051 = vadd.f32 %v2019, %v440
  %v2052 = vadd.f32 %v2020, %v440
  %v2053 = vadd.f32 %v2021, %v440
  %v2054 = vadd.f32 %v2022, %v440
  %v2055 = vadd.f32 %v2023, %v440
  %v2056 = vadd.f32 %v2024, %v440
  %v2057 = vadd.f32 %v2025, %v440
  %v2058 = vadd.f32 %v2026, %v440
  %v2059 = vadd.f32 %v2027, %v440
  %v2060 = vadd.f32 %v2028, %v440
  %v2061 = vadd.f32 %v2029, %v440
  %v2062 = vadd.f32 %v2030, %v440
  %v2063 = vadd.f32 %v2031, %v440
  %v2064 = vtanh.pop %v2032
  %v2065 = vtanh.pop %v2033
  %v2066 = vtanh.pop %v2034
  %v2067 = vtanh.pop %v2035
  %v2068 = vtanh.pop %v2036
  %v2069 = vtanh.pop %v2037
  %v2070 = vtanh.pop %v2038
  %v2071 = vtanh.pop %v2039
  %v2072 = vtanh.pop %v2040
  %v2073 = vtanh.pop %v2041
  %v2074 = vtanh.pop %v2042
  %v2075 = vtanh.pop %v2043
  %v2076 = vtanh.pop %v2044
  %v2077 = vtanh.pop %v2045
  %v2078 = vtanh.pop %v2046
  %v2079 = vtanh.pop %v2047
  %v2080 = vtanh.pop %v2048
  %v2081 = vtanh.pop %v2049
  %v2082 = vtanh.pop %v2050
  %v2083 = vtanh.pop %v2051
  %v2084 = vtanh.pop %v2052
  %v2085 = vtanh.pop %v2053
  %v2086 = vtanh.pop %v2054
  %v2087 = vtanh.pop %v2055
  %v2088 = vtanh.pop %v2056
  %v2089 = vtanh.pop %v2057
  %v2090 = vtanh.pop %v2058
  %v2091 = vtanh.pop %v2059
  %v2092 = vtanh.pop %v2060
  %v2093 = vtanh.pop %v2061
  %v2094 = vtanh.pop %v2062
  %v2095 = vtanh.pop %v2063
  %v2096 = vpack.c.bf16 %v2065, %v2064
  %v2097 = vpack.c.bf16 %v2067, %v2066
  %v2098 = vpack.c.bf16 %v2069, %v2068
  %v2099 = vpack.c.bf16 %v2071, %v2070
  %v2100 = vpack.c.bf16 %v2073, %v2072
  %v2101 = vpack.c.bf16 %v2075, %v2074
  %v2102 = vpack.c.bf16 %v2077, %v2076
  %v2103 = vpack.c.bf16 %v2079, %v2078
  %v2104 = vpack.c.bf16 %v2081, %v2080
  %v2105 = vpack.c.bf16 %v2083, %v2082
  %v2106 = vpack.c.bf16 %v2085, %v2084
  %v2107 = vpack.c.bf16 %v2087, %v2086
  %v2108 = vpack.c.bf16 %v2089, %v2088
  %v2109 = vpack.c.bf16 %v2091, %v2090
  %v2110 = vpack.c.bf16 %v2093, %v2092
  %v2111 = vpack.c.bf16 %v2095, %v2094
  %v2112 = vld [vmem:[%s3] sm:$0xf]
  %v2113 = vld [vmem:[%s3 + $0x4] sm:$0xf]
  %v2114 = vld [vmem:[%s3 + $0x8] sm:$0xf]
  %v2115 = vld [vmem:[%s3 + $0xc] sm:$0xf]
  %v2116 = vld [vmem:[%s3 + $0x10] sm:$0xf]
  %v2117 = vld [vmem:[%s3 + $0x14] sm:$0xf]
  %v2118 = vld [vmem:[%s3 + $0x18] sm:$0xf]
  %v2119 = vld [vmem:[%s3 + $0x1c] sm:$0xf]
  %v2120 = vld [vmem:[%s3 + $0x20] sm:$0xf]
  %v2121 = vld [vmem:[%s3 + $0x24] sm:$0xf]
  %v2122 = vld [vmem:[%s3 + $0x28] sm:$0xf]
  %v2123 = vld [vmem:[%s3 + $0x2c] sm:$0xf]
  %v2124 = vld [vmem:[%s3 + $0x30] sm:$0xf]
  %v2125 = vld [vmem:[%s3 + $0x34] sm:$0xf]
  %v2126 = vld [vmem:[%s3 + $0x38] sm:$0xf]
  %v2127 = vld [vmem:[%s3 + $0x3c] sm:$0xf]
  %v2144 = vunpack.c.l.b16 %v2112
  %v2145 = vunpack.c.l.b16 %v2113
  %v2146 = vunpack.c.l.b16 %v2114
  %v2147 = vunpack.c.l.b16 %v2115
  %v2148 = vunpack.c.l.b16 %v2116
  %v2149 = vunpack.c.l.b16 %v2117
  %v2150 = vunpack.c.l.b16 %v2118
  %v2151 = vunpack.c.l.b16 %v2119
  %v2152 = vunpack.c.l.b16 %v2120
  %v2153 = vunpack.c.l.b16 %v2121
  %v2154 = vunpack.c.l.b16 %v2122
  %v2155 = vunpack.c.l.b16 %v2123
  %v2156 = vunpack.c.l.b16 %v2124
  %v2157 = vunpack.c.l.b16 %v2125
  %v2158 = vunpack.c.l.b16 %v2126
  %v2159 = vunpack.c.l.b16 %v2127
  %v2160 = vpack.c.b16 %v2145, %v2144
  %v2161 = vpack.c.b16 %v2147, %v2146
  %v2162 = vpack.c.b16 %v2149, %v2148
  %v2163 = vpack.c.b16 %v2151, %v2150
  %v2164 = vpack.c.b16 %v2153, %v2152
  %v2165 = vpack.c.b16 %v2155, %v2154
  %v2166 = vpack.c.b16 %v2157, %v2156
  %v2167 = vpack.c.b16 %v2159, %v2158
  %2176 = vmatpush.bf16.msra.mxu0 %v2167
  %2177 = vmatpush.bf16.msra.mxu0 %v2166
  %2178 = vmatpush.bf16.msra.mxu0 %v2165
  %2179 = vmatpush.bf16.msra.mxu0 %v2164
  %2180 = vmatpush.bf16.msra.mxu0 %v2163
  %2181 = vmatpush.bf16.msra.mxu0 %v2162
  %2182 = vmatpush.bf16.msra.mxu0 %v2161
  %2183 = vmatpush.bf16.msra.mxu0 %v2160
  %2184 = vmatmul.bf16.gmra.mxu0 %v2096
  %v2185 = vpop.f32.mrf.mxu0
  %v2186 = vadd.f32 %v537, %v2185
  %v2187 = vpop.f32.mrf.mxu0
  %v2188 = vadd.f32 %v537, %v2187
  %2189 = vmatmul.bf16.gmra.mxu0 %v2097
  %v2190 = vpop.f32.mrf.mxu0
  %v2191 = vadd.f32 %v537, %v2190
  %v2192 = vpop.f32.mrf.mxu0
  %v2193 = vadd.f32 %v537, %v2192
  %2194 = vmatmul.bf16.gmra.mxu0 %v2098
  %v2195 = vpop.f32.mrf.mxu0
  %v2196 = vadd.f32 %v537, %v2195
  %v2197 = vpop.f32.mrf.mxu0
  %v2198 = vadd.f32 %v537, %v2197
  %2199 = vmatmul.bf16.gmra.mxu0 %v2099
  %v2200 = vpop.f32.mrf.mxu0
  %v2201 = vadd.f32 %v537, %v2200
  %v2202 = vpop.f32.mrf.mxu0
  %v2203 = vadd.f32 %v537, %v2202
  %2204 = vmatmul.bf16.gmra.mxu0 %v2100
  %v2205 = vpop.f32.mrf.mxu0
  %v2206 = vadd.f32 %v537, %v2205
  %v2207 = vpop.f32.mrf.mxu0
  %v2208 = vadd.f32 %v537, %v2207
  %2209 = vmatmul.bf16.gmra.mxu0 %v2101
  %v2210 = vpop.f32.mrf.mxu0
  %v2211 = vadd.f32 %v537, %v2210
  %v2212 = vpop.f32.mrf.mxu0
  %v2213 = vadd.f32 %v537, %v2212
  %2214 = vmatmul.bf16.gmra.mxu0 %v2102
  %v2215 = vpop.f32.mrf.mxu0
  %v2216 = vadd.f32 %v537, %v2215
  %v2217 = vpop.f32.mrf.mxu0
  %v2218 = vadd.f32 %v537, %v2217
  %2219 = vmatmul.bf16.gmra.mxu0 %v2103
  %v2220 = vpop.f32.mrf.mxu0
  %v2221 = vadd.f32 %v537, %v2220
  %v2222 = vpop.f32.mrf.mxu0
  %v2223 = vadd.f32 %v537, %v2222
  %2224 = vmatmul.bf16.gmra.mxu0 %v2104
  %v2225 = vpop.f32.mrf.mxu0
  %v2226 = vadd.f32 %v537, %v2225
  %v2227 = vpop.f32.mrf.mxu0
  %v2228 = vadd.f32 %v537, %v2227
  %2229 = vmatmul.bf16.gmra.mxu0 %v2105
  %v2230 = vpop.f32.mrf.mxu0
  %v2231 = vadd.f32 %v537, %v2230
  %v2232 = vpop.f32.mrf.mxu0
  %v2233 = vadd.f32 %v537, %v2232
  %2234 = vmatmul.bf16.gmra.mxu0 %v2106
  %v2235 = vpop.f32.mrf.mxu0
  %v2236 = vadd.f32 %v537, %v2235
  %v2237 = vpop.f32.mrf.mxu0
  %v2238 = vadd.f32 %v537, %v2237
  %2239 = vmatmul.bf16.gmra.mxu0 %v2107
  %v2240 = vpop.f32.mrf.mxu0
  %v2241 = vadd.f32 %v537, %v2240
  %v2242 = vpop.f32.mrf.mxu0
  %v2243 = vadd.f32 %v537, %v2242
  %2244 = vmatmul.bf16.gmra.mxu0 %v2108
  %v2245 = vpop.f32.mrf.mxu0
  %v2246 = vadd.f32 %v537, %v2245
  %v2247 = vpop.f32.mrf.mxu0
  %v2248 = vadd.f32 %v537, %v2247
  %2249 = vmatmul.bf16.gmra.mxu0 %v2109
  %v2250 = vpop.f32.mrf.mxu0
  %v2251 = vadd.f32 %v537, %v2250
  %v2252 = vpop.f32.mrf.mxu0
  %v2253 = vadd.f32 %v537, %v2252
  %2254 = vmatmul.bf16.gmra.mxu0 %v2110
  %v2255 = vpop.f32.mrf.mxu0
  %v2256 = vadd.f32 %v537, %v2255
  %v2257 = vpop.f32.mrf.mxu0
  %v2258 = vadd.f32 %v537, %v2257
  %2259 = vmatmul.bf16.gmra.mxu0 %v2111
  %v2260 = vpop.f32.mrf.mxu0
  %v2261 = vadd.f32 %v537, %v2260
  %v2262 = vpop.f32.mrf.mxu0
  %v2263 = vadd.f32 %v537, %v2262
  %2264 = vdwg.mxu0
  %v2265 = vtanh.pop %v2186
  %v2266 = vtanh.pop %v2188
  %v2267 = vtanh.pop %v2191
  %v2268 = vtanh.pop %v2193
  %v2269 = vtanh.pop %v2196
  %v2270 = vtanh.pop %v2198
  %v2271 = vtanh.pop %v2201
  %v2272 = vtanh.pop %v2203
  %v2273 = vtanh.pop %v2206
  %v2274 = vtanh.pop %v2208
  %v2275 = vtanh.pop %v2211
  %v2276 = vtanh.pop %v2213
  %v2277 = vtanh.pop %v2216
  %v2278 = vtanh.pop %v2218
  %v2279 = vtanh.pop %v2221
  %v2280 = vtanh.pop %v2223
  %v2281 = vtanh.pop %v2226
  %v2282 = vtanh.pop %v2228
  %v2283 = vtanh.pop %v2231
  %v2284 = vtanh.pop %v2233
  %v2285 = vtanh.pop %v2236
  %v2286 = vtanh.pop %v2238
  %v2287 = vtanh.pop %v2241
  %v2288 = vtanh.pop %v2243
  %v2289 = vtanh.pop %v2246
  %v2290 = vtanh.pop %v2248
  %v2291 = vtanh.pop %v2251
  %v2292 = vtanh.pop %v2253
  %v2293 = vtanh.pop %v2256
  %v2294 = vtanh.pop %v2258
  %v2295 = vtanh.pop %v2261
  %v2296 = vtanh.pop %v2263
  %v2297 = vadd.f32 %v2265, %v2064
  %v2298 = vadd.f32 %v2266, %v2065
  %v2299 = vadd.f32 %v2267, %v2066
  %v2300 = vadd.f32 %v2268, %v2067
  %v2301 = vadd.f32 %v2269, %v2068
  %v2302 = vadd.f32 %v2270, %v2069
  %v2303 = vadd.f32 %v2271, %v2070
  %v2304 = vadd.f32 %v2272, %v2071
  %v2305 = vadd.f32 %v2273, %v2072
  %v2306 = vadd.f32 %v2274, %v2073
  %v2307 = vadd.f32 %v2275, %v2074
  %v2308 = vadd.f32 %v2276, %v2075
  %v2309 = vadd.f32 %v2277, %v2076
  %v2310 = vadd.f32 %v2278, %v2077
  %v2311 = vadd.f32 %v2279, %v2078
  %v2312 = vadd.f32 %v2280, %v2079
  %v2313 = vadd.f32 %v2281, %v2080
  %v2314 = vadd.f32 %v2282, %v2081
  %v2315 = vadd.f32 %v2283, %v2082
  %v2316 = vadd.f32 %v2284, %v2083
  %v2317 = vadd.f32 %v2285, %v2084
  %v2318 = vadd.f32 %v2286, %v2085
  %v2319 = vadd.f32 %v2287, %v2086
  %v2320 = vadd.f32 %v2288, %v2087
  %v2321 = vadd.f32 %v2289, %v2088
  %v2322 = vadd.f32 %v2290, %v2089
  %v2323 = vadd.f32 %v2291, %v2090
  %v2324 = vadd.f32 %v2292, %v2091
  %v2325 = vadd.f32 %v2293, %v2092
  %v2326 = vadd.f32 %v2294, %v2093
  %v2327 = vadd.f32 %v2295, %v2094
  %v2328 = vadd.f32 %v2296, %v2095
  %v2329 = vpack.c.bf16 %v2298, %v2297
  %v2330 = vpack.c.bf16 %v2300, %v2299
  %v2331 = vpack.c.bf16 %v2302, %v2301
  %v2332 = vpack.c.bf16 %v2304, %v2303
  %v2333 = vpack.c.bf16 %v2306, %v2305
  %v2334 = vpack.c.bf16 %v2308, %v2307
  %v2335 = vpack.c.bf16 %v2310, %v2309
  %v2336 = vpack.c.bf16 %v2312, %v2311
  %v2337 = vpack.c.bf16 %v2314, %v2313
  %v2338 = vpack.c.bf16 %v2316, %v2315
  %v2339 = vpack.c.bf16 %v2318, %v2317
  %v2340 = vpack.c.bf16 %v2320, %v2319
  %v2341 = vpack.c.bf16 %v2322, %v2321
  %v2342 = vpack.c.bf16 %v2324, %v2323
  %v2343 = vpack.c.bf16 %v2326, %v2325
  %v2344 = vpack.c.bf16 %v2328, %v2327
  %v2345 = vld [vmem:[%s755] sm:$0xf]
  %v2346 = vld [vmem:[%s755 + $0x4] sm:$0xf]
  %v2347 = vld [vmem:[%s755 + $0x8] sm:$0xf]
  %v2348 = vld [vmem:[%s755 + $0xc] sm:$0xf]
  %v2349 = vld [vmem:[%s755 + $0x10] sm:$0xf]
  %v2350 = vld [vmem:[%s755 + $0x14] sm:$0xf]
  %v2351 = vld [vmem:[%s755 + $0x18] sm:$0xf]
  %v2352 = vld [vmem:[%s755 + $0x1c] sm:$0xf]
  %v2353 = vld [vmem:[%s755 + $0x20] sm:$0xf]
  %v2354 = vld [vmem:[%s755 + $0x24] sm:$0xf]
  %v2355 = vld [vmem:[%s755 + $0x28] sm:$0xf]
  %v2356 = vld [vmem:[%s755 + $0x2c] sm:$0xf]
  %v2357 = vld [vmem:[%s755 + $0x30] sm:$0xf]
  %v2358 = vld [vmem:[%s755 + $0x34] sm:$0xf]
  %v2359 = vld [vmem:[%s755 + $0x38] sm:$0xf]
  %v2360 = vld [vmem:[%s755 + $0x3c] sm:$0xf]
  %v2377 = vunpack.c.l.b16 %v2345
  %v2378 = vunpack.c.l.b16 %v2346
  %v2379 = vunpack.c.l.b16 %v2347
  %v2380 = vunpack.c.l.b16 %v2348
  %v2381 = vunpack.c.l.b16 %v2349
  %v2382 = vunpack.c.l.b16 %v2350
  %v2383 = vunpack.c.l.b16 %v2351
  %v2384 = vunpack.c.l.b16 %v2352
  %v2385 = vunpack.c.l.b16 %v2353
  %v2386 = vunpack.c.l.b16 %v2354
  %v2387 = vunpack.c.l.b16 %v2355
  %v2388 = vunpack.c.l.b16 %v2356
  %v2389 = vunpack.c.l.b16 %v2357
  %v2390 = vunpack.c.l.b16 %v2358
  %v2391 = vunpack.c.l.b16 %v2359
  %v2392 = vunpack.c.l.b16 %v2360
  %v2393 = vpack.c.b16 %v2378, %v2377
  %v2394 = vpack.c.b16 %v2380, %v2379
  %v2395 = vpack.c.b16 %v2382, %v2381
  %v2396 = vpack.c.b16 %v2384, %v2383
  %v2397 = vpack.c.b16 %v2386, %v2385
  %v2398 = vpack.c.b16 %v2388, %v2387
  %v2399 = vpack.c.b16 %v2390, %v2389
  %v2400 = vpack.c.b16 %v2392, %v2391
  %2409 = vmatpush.bf16.msra.mxu0 %v2400
  %2410 = vmatpush.bf16.msra.mxu0 %v2399
  %2411 = vmatpush.bf16.msra.mxu0 %v2398
  %2412 = vmatpush.bf16.msra.mxu0 %v2397
  %2413 = vmatpush.bf16.msra.mxu0 %v2396
  %2414 = vmatpush.bf16.msra.mxu0 %v2395
  %2415 = vmatpush.bf16.msra.mxu0 %v2394
  %2416 = vmatpush.bf16.msra.mxu0 %v2393
  %2417 = vmatmul.bf16.gmra.mxu0 %v2329
  %v2418 = vpop.f32.mrf.mxu0
  %v2419 = vadd.f32 %v772, %v2418
  %v2420 = vpop.f32.mrf.mxu0
  %v2421 = vadd.f32 %v772, %v2420
  %2422 = vmatmul.bf16.gmra.mxu0 %v2330
  %v2423 = vpop.f32.mrf.mxu0
  %v2424 = vadd.f32 %v772, %v2423
  %v2425 = vpop.f32.mrf.mxu0
  %v2426 = vadd.f32 %v772, %v2425
  %2427 = vmatmul.bf16.gmra.mxu0 %v2331
  %v2428 = vpop.f32.mrf.mxu0
  %v2429 = vadd.f32 %v772, %v2428
  %v2430 = vpop.f32.mrf.mxu0
  %v2431 = vadd.f32 %v772, %v2430
  %2432 = vmatmul.bf16.gmra.mxu0 %v2332
  %v2433 = vpop.f32.mrf.mxu0
  %v2434 = vadd.f32 %v772, %v2433
  %v2435 = vpop.f32.mrf.mxu0
  %v2436 = vadd.f32 %v772, %v2435
  %2437 = vmatmul.bf16.gmra.mxu0 %v2333
  %v2438 = vpop.f32.mrf.mxu0
  %v2439 = vadd.f32 %v772, %v2438
  %v2440 = vpop.f32.mrf.mxu0
  %v2441 = vadd.f32 %v772, %v2440
  %2442 = vmatmul.bf16.gmra.mxu0 %v2334
  %v2443 = vpop.f32.mrf.mxu0
  %v2444 = vadd.f32 %v772, %v2443
  %v2445 = vpop.f32.mrf.mxu0
  %v2446 = vadd.f32 %v772, %v2445
  %2447 = vmatmul.bf16.gmra.mxu0 %v2335
  %v2448 = vpop.f32.mrf.mxu0
  %v2449 = vadd.f32 %v772, %v2448
  %v2450 = vpop.f32.mrf.mxu0
  %v2451 = vadd.f32 %v772, %v2450
  %2452 = vmatmul.bf16.gmra.mxu0 %v2336
  %v2453 = vpop.f32.mrf.mxu0
  %v2454 = vadd.f32 %v772, %v2453
  %v2455 = vpop.f32.mrf.mxu0
  %v2456 = vadd.f32 %v772, %v2455
  %2457 = vmatmul.bf16.gmra.mxu0 %v2337
  %v2458 = vpop.f32.mrf.mxu0
  %v2459 = vadd.f32 %v772, %v2458
  %v2460 = vpop.f32.mrf.mxu0
  %v2461 = vadd.f32 %v772, %v2460
  %2462 = vmatmul.bf16.gmra.mxu0 %v2338
  %v2463 = vpop.f32.mrf.mxu0
  %v2464 = vadd.f32 %v772, %v2463
  %v2465 = vpop.f32.mrf.mxu0
  %v2466 = vadd.f32 %v772, %v2465
  %2467 = vmatmul.bf16.gmra.mxu0 %v2339
  %v2468 = vpop.f32.mrf.mxu0
  %v2469 = vadd.f32 %v772, %v2468
  %v2470 = vpop.f32.mrf.mxu0
  %v2471 = vadd.f32 %v772, %v2470
  %2472 = vmatmul.bf16.gmra.mxu0 %v2340
  %v2473 = vpop.f32.mrf.mxu0
  %v2474 = vadd.f32 %v772, %v2473
  %v2475 = vpop.f32.mrf.mxu0
  %v2476 = vadd.f32 %v772, %v2475
  %2477 = vmatmul.bf16.gmra.mxu0 %v2341
  %v2478 = vpop.f32.mrf.mxu0
  %v2479 = vadd.f32 %v772, %v2478
  %v2480 = vpop.f32.mrf.mxu0
  %v2481 = vadd.f32 %v772, %v2480
  %2482 = vmatmul.bf16.gmra.mxu0 %v2342
  %v2483 = vpop.f32.mrf.mxu0
  %v2484 = vadd.f32 %v772, %v2483
  %v2485 = vpop.f32.mrf.mxu0
  %v2486 = vadd.f32 %v772, %v2485
  %2487 = vmatmul.bf16.gmra.mxu0 %v2343
  %v2488 = vpop.f32.mrf.mxu0
  %v2489 = vadd.f32 %v772, %v2488
  %v2490 = vpop.f32.mrf.mxu0
  %v2491 = vadd.f32 %v772, %v2490
  %2492 = vmatmul.bf16.gmra.mxu0 %v2344
  %v2493 = vpop.f32.mrf.mxu0
  %v2494 = vadd.f32 %v772, %v2493
  %v2495 = vpop.f32.mrf.mxu0
  %v2496 = vadd.f32 %v772, %v2495
  %2497 = vdwg.mxu0
  %v2498 = vtanh.pop %v2419
  %v2499 = vtanh.pop %v2421
  %v2500 = vtanh.pop %v2424
  %v2501 = vtanh.pop %v2426
  %v2502 = vtanh.pop %v2429
  %v2503 = vtanh.pop %v2431
  %v2504 = vtanh.pop %v2434
  %v2505 = vtanh.pop %v2436
  %v2506 = vtanh.pop %v2439
  %v2507 = vtanh.pop %v2441
  %v2508 = vtanh.pop %v2444
  %v2509 = vtanh.pop %v2446
  %v2510 = vtanh.pop %v2449
  %v2511 = vtanh.pop %v2451
  %v2512 = vtanh.pop %v2454
  %v2513 = vtanh.pop %v2456
  %v2514 = vtanh.pop %v2459
  %v2515 = vtanh.pop %v2461
  %v2516 = vtanh.pop %v2464
  %v2517 = vtanh.pop %v2466
  %v2518 = vtanh.pop %v2469
  %v2519 = vtanh.pop %v2471
  %v2520 = vtanh.pop %v2474
  %v2521 = vtanh.pop %v2476
  %v2522 = vtanh.pop %v2479
  %v2523 = vtanh.pop %v2481
  %v2524 = vtanh.pop %v2484
  %v2525 = vtanh.pop %v2486
  %v2526 = vtanh.pop %v2489
  %v2527 = vtanh.pop %v2491
  %v2528 = vtanh.pop %v2494
  %v2529 = vtanh.pop %v2496
  %v2530 = vadd.f32 %v2498, %v2297
  %v2531 = vadd.f32 %v2499, %v2298
  %v2532 = vadd.f32 %v2500, %v2299
  %v2533 = vadd.f32 %v2501, %v2300
  %v2534 = vadd.f32 %v2502, %v2301
  %v2535 = vadd.f32 %v2503, %v2302
  %v2536 = vadd.f32 %v2504, %v2303
  %v2537 = vadd.f32 %v2505, %v2304
  %v2538 = vadd.f32 %v2506, %v2305
  %v2539 = vadd.f32 %v2507, %v2306
  %v2540 = vadd.f32 %v2508, %v2307
  %v2541 = vadd.f32 %v2509, %v2308
  %v2542 = vadd.f32 %v2510, %v2309
  %v2543 = vadd.f32 %v2511, %v2310
  %v2544 = vadd.f32 %v2512, %v2311
  %v2545 = vadd.f32 %v2513, %v2312
  %v2546 = vadd.f32 %v2514, %v2313
  %v2547 = vadd.f32 %v2515, %v2314
  %v2548 = vadd.f32 %v2516, %v2315
  %v2549 = vadd.f32 %v2517, %v2316
  %v2550 = vadd.f32 %v2518, %v2317
  %v2551 = vadd.f32 %v2519, %v2318
  %v2552 = vadd.f32 %v2520, %v2319
  %v2553 = vadd.f32 %v2521, %v2320
  %v2554 = vadd.f32 %v2522, %v2321
  %v2555 = vadd.f32 %v2523, %v2322
  %v2556 = vadd.f32 %v2524, %v2323
  %v2557 = vadd.f32 %v2525, %v2324
  %v2558 = vadd.f32 %v2526, %v2325
  %v2559 = vadd.f32 %v2527, %v2326
  %v2560 = vadd.f32 %v2528, %v2327
  %v2561 = vadd.f32 %v2529, %v2328
  %v2562 = vpack.c.bf16 %v2531, %v2530
  %v2563 = vpack.c.bf16 %v2533, %v2532
  %v2564 = vpack.c.bf16 %v2535, %v2534
  %v2565 = vpack.c.bf16 %v2537, %v2536
  %v2566 = vpack.c.bf16 %v2539, %v2538
  %v2567 = vpack.c.bf16 %v2541, %v2540
  %v2568 = vpack.c.bf16 %v2543, %v2542
  %v2569 = vpack.c.bf16 %v2545, %v2544
  %v2570 = vpack.c.bf16 %v2547, %v2546
  %v2571 = vpack.c.bf16 %v2549, %v2548
  %v2572 = vpack.c.bf16 %v2551, %v2550
  %v2573 = vpack.c.bf16 %v2553, %v2552
  %v2574 = vpack.c.bf16 %v2555, %v2554
  %v2575 = vpack.c.bf16 %v2557, %v2556
  %v2576 = vpack.c.bf16 %v2559, %v2558
  %v2577 = vpack.c.bf16 %v2561, %v2560
  %v2578 = vld [vmem:[%s990] sm:$0xf]
  %v2579 = vld [vmem:[%s990 + $0x4] sm:$0xf]
  %v2580 = vld [vmem:[%s990 + $0x8] sm:$0xf]
  %v2581 = vld [vmem:[%s990 + $0xc] sm:$0xf]
  %v2582 = vld [vmem:[%s990 + $0x10] sm:$0xf]
  %v2583 = vld [vmem:[%s990 + $0x14] sm:$0xf]
  %v2584 = vld [vmem:[%s990 + $0x18] sm:$0xf]
  %v2585 = vld [vmem:[%s990 + $0x1c] sm:$0xf]
  %v2586 = vld [vmem:[%s990 + $0x20] sm:$0xf]
  %v2587 = vld [vmem:[%s990 + $0x24] sm:$0xf]
  %v2588 = vld [vmem:[%s990 + $0x28] sm:$0xf]
  %v2589 = vld [vmem:[%s990 + $0x2c] sm:$0xf]
  %v2590 = vld [vmem:[%s990 + $0x30] sm:$0xf]
  %v2591 = vld [vmem:[%s990 + $0x34] sm:$0xf]
  %v2592 = vld [vmem:[%s990 + $0x38] sm:$0xf]
  %v2593 = vld [vmem:[%s990 + $0x3c] sm:$0xf]
  %v2610 = vunpack.c.l.b16 %v2578
  %v2611 = vunpack.c.l.b16 %v2579
  %v2612 = vunpack.c.l.b16 %v2580
  %v2613 = vunpack.c.l.b16 %v2581
  %v2614 = vunpack.c.l.b16 %v2582
  %v2615 = vunpack.c.l.b16 %v2583
  %v2616 = vunpack.c.l.b16 %v2584
  %v2617 = vunpack.c.l.b16 %v2585
  %v2618 = vunpack.c.l.b16 %v2586
  %v2619 = vunpack.c.l.b16 %v2587
  %v2620 = vunpack.c.l.b16 %v2588
  %v2621 = vunpack.c.l.b16 %v2589
  %v2622 = vunpack.c.l.b16 %v2590
  %v2623 = vunpack.c.l.b16 %v2591
  %v2624 = vunpack.c.l.b16 %v2592
  %v2625 = vunpack.c.l.b16 %v2593
  %v2626 = vpack.c.b16 %v2611, %v2610
  %v2627 = vpack.c.b16 %v2613, %v2612
  %v2628 = vpack.c.b16 %v2615, %v2614
  %v2629 = vpack.c.b16 %v2617, %v2616
  %v2630 = vpack.c.b16 %v2619, %v2618
  %v2631 = vpack.c.b16 %v2621, %v2620
  %v2632 = vpack.c.b16 %v2623, %v2622
  %v2633 = vpack.c.b16 %v2625, %v2624
  %2642 = vmatpush.bf16.msra.mxu0 %v2633
  %2643 = vmatpush.bf16.msra.mxu0 %v2632
  %2644 = vmatpush.bf16.msra.mxu0 %v2631
  %2645 = vmatpush.bf16.msra.mxu0 %v2630
  %2646 = vmatpush.bf16.msra.mxu0 %v2629
  %2647 = vmatpush.bf16.msra.mxu0 %v2628
  %2648 = vmatpush.bf16.msra.mxu0 %v2627
  %2649 = vmatpush.bf16.msra.mxu0 %v2626
  %2650 = vmatmul.bf16.gmra.mxu0 %v2562
  %v2651 = vpop.f32.mrf.mxu0
  %v2652 = vadd.f32 %v1007, %v2651
  %v2653 = vpop.f32.mrf.mxu0
  %v2654 = vadd.f32 %v1007, %v2653
  %2655 = vmatmul.bf16.gmra.mxu0 %v2563
  %v2656 = vpop.f32.mrf.mxu0
  %v2657 = vadd.f32 %v1007, %v2656
  %v2658 = vpop.f32.mrf.mxu0
  %v2659 = vadd.f32 %v1007, %v2658
  %2660 = vmatmul.bf16.gmra.mxu0 %v2564
  %v2661 = vpop.f32.mrf.mxu0
  %v2662 = vadd.f32 %v1007, %v2661
  %v2663 = vpop.f32.mrf.mxu0
  %v2664 = vadd.f32 %v1007, %v2663
  %2665 = vmatmul.bf16.gmra.mxu0 %v2565
  %v2666 = vpop.f32.mrf.mxu0
  %v2667 = vadd.f32 %v1007, %v2666
  %v2668 = vpop.f32.mrf.mxu0
  %v2669 = vadd.f32 %v1007, %v2668
  %2670 = vmatmul.bf16.gmra.mxu0 %v2566
  %v2671 = vpop.f32.mrf.mxu0
  %v2672 = vadd.f32 %v1007, %v2671
  %v2673 = vpop.f32.mrf.mxu0
  %v2674 = vadd.f32 %v1007, %v2673
  %2675 = vmatmul.bf16.gmra.mxu0 %v2567
  %v2676 = vpop.f32.mrf.mxu0
  %v2677 = vadd.f32 %v1007, %v2676
  %v2678 = vpop.f32.mrf.mxu0
  %v2679 = vadd.f32 %v1007, %v2678
  %2680 = vmatmul.bf16.gmra.mxu0 %v2568
  %v2681 = vpop.f32.mrf.mxu0
  %v2682 = vadd.f32 %v1007, %v2681
  %v2683 = vpop.f32.mrf.mxu0
  %v2684 = vadd.f32 %v1007, %v2683
  %2685 = vmatmul.bf16.gmra.mxu0 %v2569
  %v2686 = vpop.f32.mrf.mxu0
  %v2687 = vadd.f32 %v1007, %v2686
  %v2688 = vpop.f32.mrf.mxu0
  %v2689 = vadd.f32 %v1007, %v2688
  %2690 = vmatmul.bf16.gmra.mxu0 %v2570
  %v2691 = vpop.f32.mrf.mxu0
  %v2692 = vadd.f32 %v1007, %v2691
  %v2693 = vpop.f32.mrf.mxu0
  %v2694 = vadd.f32 %v1007, %v2693
  %2695 = vmatmul.bf16.gmra.mxu0 %v2571
  %v2696 = vpop.f32.mrf.mxu0
  %v2697 = vadd.f32 %v1007, %v2696
  %v2698 = vpop.f32.mrf.mxu0
  %v2699 = vadd.f32 %v1007, %v2698
  %2700 = vmatmul.bf16.gmra.mxu0 %v2572
  %v2701 = vpop.f32.mrf.mxu0
  %v2702 = vadd.f32 %v1007, %v2701
  %v2703 = vpop.f32.mrf.mxu0
  %v2704 = vadd.f32 %v1007, %v2703
  %2705 = vmatmul.bf16.gmra.mxu0 %v2573
  %v2706 = vpop.f32.mrf.mxu0
  %v2707 = vadd.f32 %v1007, %v2706
  %v2708 = vpop.f32.mrf.mxu0
  %v2709 = vadd.f32 %v1007, %v2708
  %2710 = vmatmul.bf16.gmra.mxu0 %v2574
  %v2711 = vpop.f32.mrf.mxu0
  %v2712 = vadd.f32 %v1007, %v2711
  %v2713 = vpop.f32.mrf.mxu0
  %v2714 = vadd.f32 %v1007, %v2713
  %2715 = vmatmul.bf16.gmra.mxu0 %v2575
  %v2716 = vpop.f32.mrf.mxu0
  %v2717 = vadd.f32 %v1007, %v2716
  %v2718 = vpop.f32.mrf.mxu0
  %v2719 = vadd.f32 %v1007, %v2718
  %2720 = vmatmul.bf16.gmra.mxu0 %v2576
  %v2721 = vpop.f32.mrf.mxu0
  %v2722 = vadd.f32 %v1007, %v2721
  %v2723 = vpop.f32.mrf.mxu0
  %v2724 = vadd.f32 %v1007, %v2723
  %2725 = vmatmul.bf16.gmra.mxu0 %v2577
  %v2726 = vpop.f32.mrf.mxu0
  %v2727 = vadd.f32 %v1007, %v2726
  %v2728 = vpop.f32.mrf.mxu0
  %v2729 = vadd.f32 %v1007, %v2728
  %2730 = vdwg.mxu0
  %v2731 = vtanh.pop %v2652
  %v2732 = vtanh.pop %v2654
  %v2733 = vtanh.pop %v2657
  %v2734 = vtanh.pop %v2659
  %v2735 = vtanh.pop %v2662
  %v2736 = vtanh.pop %v2664
  %v2737 = vtanh.pop %v2667
  %v2738 = vtanh.pop %v2669
  %v2739 = vtanh.pop %v2672
  %v2740 = vtanh.pop %v2674
  %v2741 = vtanh.pop %v2677
  %v2742 = vtanh.pop %v2679
  %v2743 = vtanh.pop %v2682
  %v2744 = vtanh.pop %v2684
  %v2745 = vtanh.pop %v2687
  %v2746 = vtanh.pop %v2689
  %v2747 = vtanh.pop %v2692
  %v2748 = vtanh.pop %v2694
  %v2749 = vtanh.pop %v2697
  %v2750 = vtanh.pop %v2699
  %v2751 = vtanh.pop %v2702
  %v2752 = vtanh.pop %v2704
  %v2753 = vtanh.pop %v2707
  %v2754 = vtanh.pop %v2709
  %v2755 = vtanh.pop %v2712
  %v2756 = vtanh.pop %v2714
  %v2757 = vtanh.pop %v2717
  %v2758 = vtanh.pop %v2719
  %v2759 = vtanh.pop %v2722
  %v2760 = vtanh.pop %v2724
  %v2761 = vtanh.pop %v2727
  %v2762 = vtanh.pop %v2729
  %v2763 = vadd.f32 %v2731, %v2530
  %v2764 = vadd.f32 %v2732, %v2531
  %v2765 = vadd.f32 %v2733, %v2532
  %v2766 = vadd.f32 %v2734, %v2533
  %v2767 = vadd.f32 %v2735, %v2534
  %v2768 = vadd.f32 %v2736, %v2535
  %v2769 = vadd.f32 %v2737, %v2536
  %v2770 = vadd.f32 %v2738, %v2537
  %v2771 = vadd.f32 %v2739, %v2538
  %v2772 = vadd.f32 %v2740, %v2539
  %v2773 = vadd.f32 %v2741, %v2540
  %v2774 = vadd.f32 %v2742, %v2541
  %v2775 = vadd.f32 %v2743, %v2542
  %v2776 = vadd.f32 %v2744, %v2543
  %v2777 = vadd.f32 %v2745, %v2544
  %v2778 = vadd.f32 %v2746, %v2545
  %v2779 = vadd.f32 %v2747, %v2546
  %v2780 = vadd.f32 %v2748, %v2547
  %v2781 = vadd.f32 %v2749, %v2548
  %v2782 = vadd.f32 %v2750, %v2549
  %v2783 = vadd.f32 %v2751, %v2550
  %v2784 = vadd.f32 %v2752, %v2551
  %v2785 = vadd.f32 %v2753, %v2552
  %v2786 = vadd.f32 %v2754, %v2553
  %v2787 = vadd.f32 %v2755, %v2554
  %v2788 = vadd.f32 %v2756, %v2555
  %v2789 = vadd.f32 %v2757, %v2556
  %v2790 = vadd.f32 %v2758, %v2557
  %v2791 = vadd.f32 %v2759, %v2558
  %v2792 = vadd.f32 %v2760, %v2559
  %v2793 = vadd.f32 %v2761, %v2560
  %v2794 = vadd.f32 %v2762, %v2561
  %v2795 = vpack.c.bf16 %v2764, %v2763
  %v2796 = vpack.c.bf16 %v2766, %v2765
  %v2797 = vpack.c.bf16 %v2768, %v2767
  %v2798 = vpack.c.bf16 %v2770, %v2769
  %v2799 = vpack.c.bf16 %v2772, %v2771
  %v2800 = vpack.c.bf16 %v2774, %v2773
  %v2801 = vpack.c.bf16 %v2776, %v2775
  %v2802 = vpack.c.bf16 %v2778, %v2777
  %v2803 = vpack.c.bf16 %v2780, %v2779
  %v2804 = vpack.c.bf16 %v2782, %v2781
  %v2805 = vpack.c.bf16 %v2784, %v2783
  %v2806 = vpack.c.bf16 %v2786, %v2785
  %v2807 = vpack.c.bf16 %v2788, %v2787
  %v2808 = vpack.c.bf16 %v2790, %v2789
  %v2809 = vpack.c.bf16 %v2792, %v2791
  %v2810 = vpack.c.bf16 %v2794, %v2793
  %v2811 = vld [vmem:[%s1225] sm:$0xf]
  %v2812 = vld [vmem:[%s1225 + $0x4] sm:$0xf]
  %v2813 = vld [vmem:[%s1225 + $0x8] sm:$0xf]
  %v2814 = vld [vmem:[%s1225 + $0xc] sm:$0xf]
  %v2815 = vld [vmem:[%s1225 + $0x10] sm:$0xf]
  %v2816 = vld [vmem:[%s1225 + $0x14] sm:$0xf]
  %v2817 = vld [vmem:[%s1225 + $0x18] sm:$0xf]
  %v2818 = vld [vmem:[%s1225 + $0x1c] sm:$0xf]
  %v2819 = vld [vmem:[%s1225 + $0x20] sm:$0xf]
  %v2820 = vld [vmem:[%s1225 + $0x24] sm:$0xf]
  %v2821 = vld [vmem:[%s1225 + $0x28] sm:$0xf]
  %v2822 = vld [vmem:[%s1225 + $0x2c] sm:$0xf]
  %v2823 = vld [vmem:[%s1225 + $0x30] sm:$0xf]
  %v2824 = vld [vmem:[%s1225 + $0x34] sm:$0xf]
  %v2825 = vld [vmem:[%s1225 + $0x38] sm:$0xf]
  %v2826 = vld [vmem:[%s1225 + $0x3c] sm:$0xf]
  %v2843 = vunpack.c.l.b16 %v2811
  %v2844 = vunpack.c.l.b16 %v2812
  %v2845 = vunpack.c.l.b16 %v2813
  %v2846 = vunpack.c.l.b16 %v2814
  %v2847 = vunpack.c.l.b16 %v2815
  %v2848 = vunpack.c.l.b16 %v2816
  %v2849 = vunpack.c.l.b16 %v2817
  %v2850 = vunpack.c.l.b16 %v2818
  %v2851 = vunpack.c.l.b16 %v2819
  %v2852 = vunpack.c.l.b16 %v2820
  %v2853 = vunpack.c.l.b16 %v2821
  %v2854 = vunpack.c.l.b16 %v2822
  %v2855 = vunpack.c.l.b16 %v2823
  %v2856 = vunpack.c.l.b16 %v2824
  %v2857 = vunpack.c.l.b16 %v2825
  %v2858 = vunpack.c.l.b16 %v2826
  %v2859 = vpack.c.b16 %v2844, %v2843
  %v2860 = vpack.c.b16 %v2846, %v2845
  %v2861 = vpack.c.b16 %v2848, %v2847
  %v2862 = vpack.c.b16 %v2850, %v2849
  %v2863 = vpack.c.b16 %v2852, %v2851
  %v2864 = vpack.c.b16 %v2854, %v2853
  %v2865 = vpack.c.b16 %v2856, %v2855
  %v2866 = vpack.c.b16 %v2858, %v2857
  %2875 = vmatpush.bf16.msra.mxu0 %v2866
  %2876 = vmatpush.bf16.msra.mxu0 %v2865
  %2877 = vmatpush.bf16.msra.mxu0 %v2864
  %2878 = vmatpush.bf16.msra.mxu0 %v2863
  %2879 = vmatpush.bf16.msra.mxu0 %v2862
  %2880 = vmatpush.bf16.msra.mxu0 %v2861
  %2881 = vmatpush.bf16.msra.mxu0 %v2860
  %2882 = vmatpush.bf16.msra.mxu0 %v2859
  %2883 = vmatmul.bf16.gmra.mxu0 %v2795
  %v2884 = vpop.f32.mrf.mxu0
  %v2885 = vadd.f32 %v1242, %v2884
  %v2886 = vpop.f32.mrf.mxu0
  %v2887 = vadd.f32 %v1242, %v2886
  %2888 = vmatmul.bf16.gmra.mxu0 %v2796
  %v2889 = vpop.f32.mrf.mxu0
  %v2890 = vadd.f32 %v1242, %v2889
  %v2891 = vpop.f32.mrf.mxu0
  %v2892 = vadd.f32 %v1242, %v2891
  %2893 = vmatmul.bf16.gmra.mxu0 %v2797
  %v2894 = vpop.f32.mrf.mxu0
  %v2895 = vadd.f32 %v1242, %v2894
  %v2896 = vpop.f32.mrf.mxu0
  %v2897 = vadd.f32 %v1242, %v2896
  %2898 = vmatmul.bf16.gmra.mxu0 %v2798
  %v2899 = vpop.f32.mrf.mxu0
  %v2900 = vadd.f32 %v1242, %v2899
  %v2901 = vpop.f32.mrf.mxu0
  %v2902 = vadd.f32 %v1242, %v2901
  %2903 = vmatmul.bf16.gmra.mxu0 %v2799
  %v2904 = vpop.f32.mrf.mxu0
  %v2905 = vadd.f32 %v1242, %v2904
  %v2906 = vpop.f32.mrf.mxu0
  %v2907 = vadd.f32 %v1242, %v2906
  %2908 = vmatmul.bf16.gmra.mxu0 %v2800
  %v2909 = vpop.f32.mrf.mxu0
  %v2910 = vadd.f32 %v1242, %v2909
  %v2911 = vpop.f32.mrf.mxu0
  %v2912 = vadd.f32 %v1242, %v2911
  %2913 = vmatmul.bf16.gmra.mxu0 %v2801
  %v2914 = vpop.f32.mrf.mxu0
  %v2915 = vadd.f32 %v1242, %v2914
  %v2916 = vpop.f32.mrf.mxu0
  %v2917 = vadd.f32 %v1242, %v2916
  %2918 = vmatmul.bf16.gmra.mxu0 %v2802
  %v2919 = vpop.f32.mrf.mxu0
  %v2920 = vadd.f32 %v1242, %v2919
  %v2921 = vpop.f32.mrf.mxu0
  %v2922 = vadd.f32 %v1242, %v2921
  %2923 = vmatmul.bf16.gmra.mxu0 %v2803
  %v2924 = vpop.f32.mrf.mxu0
  %v2925 = vadd.f32 %v1242, %v2924
  %v2926 = vpop.f32.mrf.mxu0
  %v2927 = vadd.f32 %v1242, %v2926
  %2928 = vmatmul.bf16.gmra.mxu0 %v2804
  %v2929 = vpop.f32.mrf.mxu0
  %v2930 = vadd.f32 %v1242, %v2929
  %v2931 = vpop.f32.mrf.mxu0
  %v2932 = vadd.f32 %v1242, %v2931
  %2933 = vmatmul.bf16.gmra.mxu0 %v2805
  %v2934 = vpop.f32.mrf.mxu0
  %v2935 = vadd.f32 %v1242, %v2934
  %v2936 = vpop.f32.mrf.mxu0
  %v2937 = vadd.f32 %v1242, %v2936
  %2938 = vmatmul.bf16.gmra.mxu0 %v2806
  %v2939 = vpop.f32.mrf.mxu0
  %v2940 = vadd.f32 %v1242, %v2939
  %v2941 = vpop.f32.mrf.mxu0
  %v2942 = vadd.f32 %v1242, %v2941
  %2943 = vmatmul.bf16.gmra.mxu0 %v2807
  %v2944 = vpop.f32.mrf.mxu0
  %v2945 = vadd.f32 %v1242, %v2944
  %v2946 = vpop.f32.mrf.mxu0
  %v2947 = vadd.f32 %v1242, %v2946
  %2948 = vmatmul.bf16.gmra.mxu0 %v2808
  %v2949 = vpop.f32.mrf.mxu0
  %v2950 = vadd.f32 %v1242, %v2949
  %v2951 = vpop.f32.mrf.mxu0
  %v2952 = vadd.f32 %v1242, %v2951
  %2953 = vmatmul.bf16.gmra.mxu0 %v2809
  %v2954 = vpop.f32.mrf.mxu0
  %v2955 = vadd.f32 %v1242, %v2954
  %v2956 = vpop.f32.mrf.mxu0
  %v2957 = vadd.f32 %v1242, %v2956
  %2958 = vmatmul.bf16.gmra.mxu0 %v2810
  %v2959 = vpop.f32.mrf.mxu0
  %v2960 = vadd.f32 %v1242, %v2959
  %v2961 = vpop.f32.mrf.mxu0
  %v2962 = vadd.f32 %v1242, %v2961
  %2963 = vdwg.mxu0
  %v2964 = vtanh.pop %v2885
  %v2965 = vtanh.pop %v2887
  %v2966 = vtanh.pop %v2890
  %v2967 = vtanh.pop %v2892
  %v2968 = vtanh.pop %v2895
  %v2969 = vtanh.pop %v2897
  %v2970 = vtanh.pop %v2900
  %v2971 = vtanh.pop %v2902
  %v2972 = vtanh.pop %v2905
  %v2973 = vtanh.pop %v2907
  %v2974 = vtanh.pop %v2910
  %v2975 = vtanh.pop %v2912
  %v2976 = vtanh.pop %v2915
  %v2977 = vtanh.pop %v2917
  %v2978 = vtanh.pop %v2920
  %v2979 = vtanh.pop %v2922
  %v2980 = vtanh.pop %v2925
  %v2981 = vtanh.pop %v2927
  %v2982 = vtanh.pop %v2930
  %v2983 = vtanh.pop %v2932
  %v2984 = vtanh.pop %v2935
  %v2985 = vtanh.pop %v2937
  %v2986 = vtanh.pop %v2940
  %v2987 = vtanh.pop %v2942
  %v2988 = vtanh.pop %v2945
  %v2989 = vtanh.pop %v2947
  %v2990 = vtanh.pop %v2950
  %v2991 = vtanh.pop %v2952
  %v2992 = vtanh.pop %v2955
  %v2993 = vtanh.pop %v2957
  %v2994 = vtanh.pop %v2960
  %v2995 = vtanh.pop %v2962
  %v2996 = vpack.c.bf16 %v2965, %v2964
  %v2997 = vpack.c.bf16 %v2967, %v2966
  %v2998 = vpack.c.bf16 %v2969, %v2968
  %v2999 = vpack.c.bf16 %v2971, %v2970
  %v3000 = vpack.c.bf16 %v2973, %v2972
  %v3001 = vpack.c.bf16 %v2975, %v2974
  %v3002 = vpack.c.bf16 %v2977, %v2976
  %v3003 = vpack.c.bf16 %v2979, %v2978
  %v3004 = vpack.c.bf16 %v2981, %v2980
  %v3005 = vpack.c.bf16 %v2983, %v2982
  %v3006 = vpack.c.bf16 %v2985, %v2984
  %v3007 = vpack.c.bf16 %v2987, %v2986
  %v3008 = vpack.c.bf16 %v2989, %v2988
  %v3009 = vpack.c.bf16 %v2991, %v2990
  %v3010 = vpack.c.bf16 %v2993, %v2992
  %v3011 = vpack.c.bf16 %v2995, %v2994
  %v3012 = vld [vmem:[%s4] sm:$0xf]
  %v3013 = vld [vmem:[%s4 + $0x4] sm:$0xf]
  %v3014 = vld [vmem:[%s4 + $0x8] sm:$0xf]
  %v3015 = vld [vmem:[%s4 + $0xc] sm:$0xf]
  %v3016 = vld [vmem:[%s4 + $0x10] sm:$0xf]
  %v3017 = vld [vmem:[%s4 + $0x14] sm:$0xf]
  %v3018 = vld [vmem:[%s4 + $0x18] sm:$0xf]
  %v3019 = vld [vmem:[%s4 + $0x1c] sm:$0xf]
  %v3020 = vld [vmem:[%s4 + $0x20] sm:$0xf]
  %v3021 = vld [vmem:[%s4 + $0x24] sm:$0xf]
  %v3022 = vld [vmem:[%s4 + $0x28] sm:$0xf]
  %v3023 = vld [vmem:[%s4 + $0x2c] sm:$0xf]
  %v3024 = vld [vmem:[%s4 + $0x30] sm:$0xf]
  %v3025 = vld [vmem:[%s4 + $0x34] sm:$0xf]
  %v3026 = vld [vmem:[%s4 + $0x38] sm:$0xf]
  %v3027 = vld [vmem:[%s4 + $0x3c] sm:$0xf]
  %v3044 = vunpack.c.l.b16 %v3012
  %v3045 = vunpack.c.l.b16 %v3013
  %v3046 = vunpack.c.l.b16 %v3014
  %v3047 = vunpack.c.l.b16 %v3015
  %v3048 = vunpack.c.l.b16 %v3016
  %v3049 = vunpack.c.l.b16 %v3017
  %v3050 = vunpack.c.l.b16 %v3018
  %v3051 = vunpack.c.l.b16 %v3019
  %v3052 = vunpack.c.l.b16 %v3020
  %v3053 = vunpack.c.l.b16 %v3021
  %v3054 = vunpack.c.l.b16 %v3022
  %v3055 = vunpack.c.l.b16 %v3023
  %v3056 = vunpack.c.l.b16 %v3024
  %v3057 = vunpack.c.l.b16 %v3025
  %v3058 = vunpack.c.l.b16 %v3026
  %v3059 = vunpack.c.l.b16 %v3027
  %v3060 = vpack.c.b16 %v3045, %v3044
  %v3061 = vpack.c.b16 %v3047, %v3046
  %v3062 = vpack.c.b16 %v3049, %v3048
  %v3063 = vpack.c.b16 %v3051, %v3050
  %v3064 = vpack.c.b16 %v3053, %v3052
  %v3065 = vpack.c.b16 %v3055, %v3054
  %v3066 = vpack.c.b16 %v3057, %v3056
  %v3067 = vpack.c.b16 %v3059, %v3058
  %3076 = vmatpush.bf16.msra.mxu0 %v3067
  %3077 = vmatpush.bf16.msra.mxu0 %v3066
  %3078 = vmatpush.bf16.msra.mxu0 %v3065
  %3079 = vmatpush.bf16.msra.mxu0 %v3064
  %3080 = vmatpush.bf16.msra.mxu0 %v3063
  %3081 = vmatpush.bf16.msra.mxu0 %v3062
  %3082 = vmatpush.bf16.msra.mxu0 %v3061
  %3083 = vmatpush.bf16.msra.mxu0 %v3060
  %3084 = vmatmul.bf16.gmra.mxu0 %v2996
  %v3085 = vpop.f32.mrf.mxu0
  %v3086 = vadd.f32 %v1444, %v3085
  %v3087 = vpop.f32.mrf.mxu0
  %v3088 = vadd.f32 %v1444, %v3087
  %3089 = vmatmul.bf16.gmra.mxu0 %v2997
  %v3090 = vpop.f32.mrf.mxu0
  %v3091 = vadd.f32 %v1444, %v3090
  %v3092 = vpop.f32.mrf.mxu0
  %v3093 = vadd.f32 %v1444, %v3092
  %3094 = vmatmul.bf16.gmra.mxu0 %v2998
  %v3095 = vpop.f32.mrf.mxu0
  %v3096 = vadd.f32 %v1444, %v3095
  %v3097 = vpop.f32.mrf.mxu0
  %v3098 = vadd.f32 %v1444, %v3097
  %3099 = vmatmul.bf16.gmra.mxu0 %v2999
  %v3100 = vpop.f32.mrf.mxu0
  %v3101 = vadd.f32 %v1444, %v3100
  %v3102 = vpop.f32.mrf.mxu0
  %v3103 = vadd.f32 %v1444, %v3102
  %3104 = vmatmul.bf16.gmra.mxu0 %v3000
  %v3105 = vpop.f32.mrf.mxu0
  %v3106 = vadd.f32 %v1444, %v3105
  %v3107 = vpop.f32.mrf.mxu0
  %v3108 = vadd.f32 %v1444, %v3107
  %3109 = vmatmul.bf16.gmra.mxu0 %v3001
  %v3110 = vpop.f32.mrf.mxu0
  %v3111 = vadd.f32 %v1444, %v3110
  %v3112 = vpop.f32.mrf.mxu0
  %v3113 = vadd.f32 %v1444, %v3112
  %3114 = vmatmul.bf16.gmra.mxu0 %v3002
  %v3115 = vpop.f32.mrf.mxu0
  %v3116 = vadd.f32 %v1444, %v3115
  %v3117 = vpop.f32.mrf.mxu0
  %v3118 = vadd.f32 %v1444, %v3117
  %3119 = vmatmul.bf16.gmra.mxu0 %v3003
  %v3120 = vpop.f32.mrf.mxu0
  %v3121 = vadd.f32 %v1444, %v3120
  %v3122 = vpop.f32.mrf.mxu0
  %v3123 = vadd.f32 %v1444, %v3122
  %3124 = vmatmul.bf16.gmra.mxu0 %v3004
  %v3125 = vpop.f32.mrf.mxu0
  %v3126 = vadd.f32 %v1444, %v3125
  %v3127 = vpop.f32.mrf.mxu0
  %v3128 = vadd.f32 %v1444, %v3127
  %3129 = vmatmul.bf16.gmra.mxu0 %v3005
  %v3130 = vpop.f32.mrf.mxu0
  %v3131 = vadd.f32 %v1444, %v3130
  %v3132 = vpop.f32.mrf.mxu0
  %v3133 = vadd.f32 %v1444, %v3132
  %3134 = vmatmul.bf16.gmra.mxu0 %v3006
  %v3135 = vpop.f32.mrf.mxu0
  %v3136 = vadd.f32 %v1444, %v3135
  %v3137 = vpop.f32.mrf.mxu0
  %v3138 = vadd.f32 %v1444, %v3137
  %3139 = vmatmul.bf16.gmra.mxu0 %v3007
  %v3140 = vpop.f32.mrf.mxu0
  %v3141 = vadd.f32 %v1444, %v3140
  %v3142 = vpop.f32.mrf.mxu0
  %v3143 = vadd.f32 %v1444, %v3142
  %3144 = vmatmul.bf16.gmra.mxu0 %v3008
  %v3145 = vpop.f32.mrf.mxu0
  %v3146 = vadd.f32 %v1444, %v3145
  %v3147 = vpop.f32.mrf.mxu0
  %v3148 = vadd.f32 %v1444, %v3147
  %3149 = vmatmul.bf16.gmra.mxu0 %v3009
  %v3150 = vpop.f32.mrf.mxu0
  %v3151 = vadd.f32 %v1444, %v3150
  %v3152 = vpop.f32.mrf.mxu0
  %v3153 = vadd.f32 %v1444, %v3152
  %3154 = vmatmul.bf16.gmra.mxu0 %v3010
  %v3155 = vpop.f32.mrf.mxu0
  %v3156 = vadd.f32 %v1444, %v3155
  %v3157 = vpop.f32.mrf.mxu0
  %v3158 = vadd.f32 %v1444, %v3157
  %3159 = vmatmul.bf16.gmra.mxu0 %v3011
  %v3160 = vpop.f32.mrf.mxu0
  %v3161 = vadd.f32 %v1444, %v3160
  %v3162 = vpop.f32.mrf.mxu0
  %v3163 = vadd.f32 %v1444, %v3162
  %3164 = vdwg.mxu0
  %s3165 = scalar_lea.vmem %s5, 256
  %3166 = vst.msk [vmem:[%s3165] sm:$0xff] %vm1582, %v3086
  %3167 = vst.msk [vmem:[%s3165 + $0x8] sm:$0xff] %vm1582, %v3088
  %3168 = vst.msk [vmem:[%s3165 + $0x10] sm:$0xff] %vm1582, %v3091
  %3169 = vst.msk [vmem:[%s3165 + $0x18] sm:$0xff] %vm1582, %v3093
  %3170 = vst.msk [vmem:[%s3165 + $0x20] sm:$0xff] %vm1582, %v3096
  %3171 = vst.msk [vmem:[%s3165 + $0x28] sm:$0xff] %vm1582, %v3098
  %3172 = vst.msk [vmem:[%s3165 + $0x30] sm:$0xff] %vm1582, %v3101
  %3173 = vst.msk [vmem:[%s3165 + $0x38] sm:$0xff] %vm1582, %v3103
  %3174 = vst.msk [vmem:[%s3165 + $0x40] sm:$0xff] %vm1582, %v3106
  %3175 = vst.msk [vmem:[%s3165 + $0x48] sm:$0xff] %vm1582, %v3108
  %3176 = vst.msk [vmem:[%s3165 + $0x50] sm:$0xff] %vm1582, %v3111
  %3177 = vst.msk [vmem:[%s3165 + $0x58] sm:$0xff] %vm1582, %v3113
  %3178 = vst.msk [vmem:[%s3165 + $0x60] sm:$0xff] %vm1582, %v3116
  %3179 = vst.msk [vmem:[%s3165 + $0x68] sm:$0xff] %vm1582, %v3118
  %3180 = vst.msk [vmem:[%s3165 + $0x70] sm:$0xff] %vm1582, %v3121
  %3181 = vst.msk [vmem:[%s3165 + $0x78] sm:$0xff] %vm1582, %v3123
  %3182 = vst.msk [vmem:[%s3165 + $0x80] sm:$0xff] %vm1582, %v3126
  %3183 = vst.msk [vmem:[%s3165 + $0x88] sm:$0xff] %vm1582, %v3128
  %3184 = vst.msk [vmem:[%s3165 + $0x90] sm:$0xff] %vm1582, %v3131
  %3185 = vst.msk [vmem:[%s3165 + $0x98] sm:$0xff] %vm1582, %v3133
  %3186 = vst.msk [vmem:[%s3165 + $0xa0] sm:$0xff] %vm1582, %v3136
  %3187 = vst.msk [vmem:[%s3165 + $0xa8] sm:$0xff] %vm1582, %v3138
  %3188 = vst.msk [vmem:[%s3165 + $0xb0] sm:$0xff] %vm1582, %v3141
  %3189 = vst.msk [vmem:[%s3165 + $0xb8] sm:$0xff] %vm1582, %v3143
  %3190 = vst.msk [vmem:[%s3165 + $0xc0] sm:$0xff] %vm1582, %v3146
  %3191 = vst.msk [vmem:[%s3165 + $0xc8] sm:$0xff] %vm1582, %v3148
  %3192 = vst.msk [vmem:[%s3165 + $0xd0] sm:$0xff] %vm1582, %v3151
  %3193 = vst.msk [vmem:[%s3165 + $0xd8] sm:$0xff] %vm1582, %v3153
  %3194 = vst.msk [vmem:[%s3165 + $0xe0] sm:$0xff] %vm1582, %v3156
  %3195 = vst.msk [vmem:[%s3165 + $0xe8] sm:$0xff] %vm1582, %v3158
  %3196 = vst.msk [vmem:[%s3165 + $0xf0] sm:$0xff] %vm1582, %v3161
  %3197 = vst.msk [vmem:[%s3165 + $0xf8] sm:$0xff] %vm1582, %v3163
  %s3198 = scalar_lea.vmem %s0, 512
  %v3199 = vld [vmem:[%s3198] sm:$0xff]
  %v3200 = vld [vmem:[%s3198 + $0x8] sm:$0xff]
  %v3201 = vld [vmem:[%s3198 + $0x10] sm:$0xff]
  %v3202 = vld [vmem:[%s3198 + $0x18] sm:$0xff]
  %v3203 = vld [vmem:[%s3198 + $0x20] sm:$0xff]
  %v3204 = vld [vmem:[%s3198 + $0x28] sm:$0xff]
  %v3205 = vld [vmem:[%s3198 + $0x30] sm:$0xff]
  %v3206 = vld [vmem:[%s3198 + $0x38] sm:$0xff]
  %v3207 = vld [vmem:[%s3198 + $0x40] sm:$0xff]
  %v3208 = vld [vmem:[%s3198 + $0x48] sm:$0xff]
  %v3209 = vld [vmem:[%s3198 + $0x50] sm:$0xff]
  %v3210 = vld [vmem:[%s3198 + $0x58] sm:$0xff]
  %v3211 = vld [vmem:[%s3198 + $0x60] sm:$0xff]
  %v3212 = vld [vmem:[%s3198 + $0x68] sm:$0xff]
  %v3213 = vld [vmem:[%s3198 + $0x70] sm:$0xff]
  %v3214 = vld [vmem:[%s3198 + $0x78] sm:$0xff]
  %v3215 = vld [vmem:[%s3198 + $0x80] sm:$0xff]
  %v3216 = vld [vmem:[%s3198 + $0x88] sm:$0xff]
  %v3217 = vld [vmem:[%s3198 + $0x90] sm:$0xff]
  %v3218 = vld [vmem:[%s3198 + $0x98] sm:$0xff]
  %v3219 = vld [vmem:[%s3198 + $0xa0] sm:$0xff]
  %v3220 = vld [vmem:[%s3198 + $0xa8] sm:$0xff]
  %v3221 = vld [vmem:[%s3198 + $0xb0] sm:$0xff]
  %v3222 = vld [vmem:[%s3198 + $0xb8] sm:$0xff]
  %v3223 = vld [vmem:[%s3198 + $0xc0] sm:$0xff]
  %v3224 = vld [vmem:[%s3198 + $0xc8] sm:$0xff]
  %v3225 = vld [vmem:[%s3198 + $0xd0] sm:$0xff]
  %v3226 = vld [vmem:[%s3198 + $0xd8] sm:$0xff]
  %v3227 = vld [vmem:[%s3198 + $0xe0] sm:$0xff]
  %v3228 = vld [vmem:[%s3198 + $0xe8] sm:$0xff]
  %v3229 = vld [vmem:[%s3198 + $0xf0] sm:$0xff]
  %v3230 = vld [vmem:[%s3198 + $0xf8] sm:$0xff]
  %3232 = vset.pattern.permute.xlu0 0
  %3233 = vperm.xlu0 %3232, %v3199
  %v3234 = vpop.permute.xlu0 %3233
  %3237 = vset.pattern.permute.xlu0 0
  %3238 = vperm.xlu0 %3237, %v3200
  %v3239 = vpop.permute.xlu0 %3238
  %3242 = vset.pattern.permute.xlu0 0
  %3243 = vperm.xlu0 %3242, %v3201
  %v3244 = vpop.permute.xlu0 %3243
  %3247 = vset.pattern.permute.xlu0 0
  %3248 = vperm.xlu0 %3247, %v3202
  %v3249 = vpop.permute.xlu0 %3248
  %3252 = vset.pattern.permute.xlu0 0
  %3253 = vperm.xlu0 %3252, %v3203
  %v3254 = vpop.permute.xlu0 %3253
  %3257 = vset.pattern.permute.xlu0 0
  %3258 = vperm.xlu0 %3257, %v3204
  %v3259 = vpop.permute.xlu0 %3258
  %3262 = vset.pattern.permute.xlu0 0
  %3263 = vperm.xlu0 %3262, %v3205
  %v3264 = vpop.permute.xlu0 %3263
  %3267 = vset.pattern.permute.xlu0 0
  %3268 = vperm.xlu0 %3267, %v3206
  %v3269 = vpop.permute.xlu0 %3268
  %3272 = vset.pattern.permute.xlu0 0
  %3273 = vperm.xlu0 %3272, %v3207
  %v3274 = vpop.permute.xlu0 %3273
  %3277 = vset.pattern.permute.xlu0 0
  %3278 = vperm.xlu0 %3277, %v3208
  %v3279 = vpop.permute.xlu0 %3278
  %3282 = vset.pattern.permute.xlu0 0
  %3283 = vperm.xlu0 %3282, %v3209
  %v3284 = vpop.permute.xlu0 %3283
  %3287 = vset.pattern.permute.xlu0 0
  %3288 = vperm.xlu0 %3287, %v3210
  %v3289 = vpop.permute.xlu0 %3288
  %3292 = vset.pattern.permute.xlu0 0
  %3293 = vperm.xlu0 %3292, %v3211
  %v3294 = vpop.permute.xlu0 %3293
  %3297 = vset.pattern.permute.xlu0 0
  %3298 = vperm.xlu0 %3297, %v3212
  %v3299 = vpop.permute.xlu0 %3298
  %3302 = vset.pattern.permute.xlu0 0
  %3303 = vperm.xlu0 %3302, %v3213
  %v3304 = vpop.permute.xlu0 %3303
  %3307 = vset.pattern.permute.xlu0 0
  %3308 = vperm.xlu0 %3307, %v3214
  %v3309 = vpop.permute.xlu0 %3308
  %3312 = vset.pattern.permute.xlu0 0
  %3313 = vperm.xlu0 %3312, %v3215
  %v3314 = vpop.permute.xlu0 %3313
  %3317 = vset.pattern.permute.xlu0 0
  %3318 = vperm.xlu0 %3317, %v3216
  %v3319 = vpop.permute.xlu0 %3318
  %3322 = vset.pattern.permute.xlu0 0
  %3323 = vperm.xlu0 %3322, %v3217
  %v3324 = vpop.permute.xlu0 %3323
  %3327 = vset.pattern.permute.xlu0 0
  %3328 = vperm.xlu0 %3327, %v3218
  %v3329 = vpop.permute.xlu0 %3328
  %3332 = vset.pattern.permute.xlu0 0
  %3333 = vperm.xlu0 %3332, %v3219
  %v3334 = vpop.permute.xlu0 %3333
  %3337 = vset.pattern.permute.xlu0 0
  %3338 = vperm.xlu0 %3337, %v3220
  %v3339 = vpop.permute.xlu0 %3338
  %3342 = vset.pattern.permute.xlu0 0
  %3343 = vperm.xlu0 %3342, %v3221
  %v3344 = vpop.permute.xlu0 %3343
  %3347 = vset.pattern.permute.xlu0 0
  %3348 = vperm.xlu0 %3347, %v3222
  %v3349 = vpop.permute.xlu0 %3348
  %3352 = vset.pattern.permute.xlu0 0
  %3353 = vperm.xlu0 %3352, %v3223
  %v3354 = vpop.permute.xlu0 %3353
  %3357 = vset.pattern.permute.xlu0 0
  %3358 = vperm.xlu0 %3357, %v3224
  %v3359 = vpop.permute.xlu0 %3358
  %3362 = vset.pattern.permute.xlu0 0
  %3363 = vperm.xlu0 %3362, %v3225
  %v3364 = vpop.permute.xlu0 %3363
  %3367 = vset.pattern.permute.xlu0 0
  %3368 = vperm.xlu0 %3367, %v3226
  %v3369 = vpop.permute.xlu0 %3368
  %3372 = vset.pattern.permute.xlu0 0
  %3373 = vperm.xlu0 %3372, %v3227
  %v3374 = vpop.permute.xlu0 %3373
  %3377 = vset.pattern.permute.xlu0 0
  %3378 = vperm.xlu0 %3377, %v3228
  %v3379 = vpop.permute.xlu0 %3378
  %3382 = vset.pattern.permute.xlu0 0
  %3383 = vperm.xlu0 %3382, %v3229
  %v3384 = vpop.permute.xlu0 %3383
  %3387 = vset.pattern.permute.xlu0 0
  %3388 = vperm.xlu0 %3387, %v3230
  %v3389 = vpop.permute.xlu0 %3388
  %v3391 = vmul.f32 %v3234, %v214
  %v3392 = vmul.f32 %v3239, %v214
  %v3393 = vmul.f32 %v3244, %v214
  %v3394 = vmul.f32 %v3249, %v214
  %v3395 = vmul.f32 %v3254, %v214
  %v3396 = vmul.f32 %v3259, %v214
  %v3397 = vmul.f32 %v3264, %v214
  %v3398 = vmul.f32 %v3269, %v214
  %v3399 = vmul.f32 %v3274, %v214
  %v3400 = vmul.f32 %v3279, %v214
  %v3401 = vmul.f32 %v3284, %v214
  %v3402 = vmul.f32 %v3289, %v214
  %v3403 = vmul.f32 %v3294, %v214
  %v3404 = vmul.f32 %v3299, %v214
  %v3405 = vmul.f32 %v3304, %v214
  %v3406 = vmul.f32 %v3309, %v214
  %v3407 = vmul.f32 %v3314, %v214
  %v3408 = vmul.f32 %v3319, %v214
  %v3409 = vmul.f32 %v3324, %v214
  %v3410 = vmul.f32 %v3329, %v214
  %v3411 = vmul.f32 %v3334, %v214
  %v3412 = vmul.f32 %v3339, %v214
  %v3413 = vmul.f32 %v3344, %v214
  %v3414 = vmul.f32 %v3349, %v214
  %v3415 = vmul.f32 %v3354, %v214
  %v3416 = vmul.f32 %v3359, %v214
  %v3417 = vmul.f32 %v3364, %v214
  %v3418 = vmul.f32 %v3369, %v214
  %v3419 = vmul.f32 %v3374, %v214
  %v3420 = vmul.f32 %v3379, %v214
  %v3421 = vmul.f32 %v3384, %v214
  %v3422 = vmul.f32 %v3389, %v214
  %3423 = vset.pattern.permute.xlu0 1
  %3424 = vperm.xlu0 %3423, %v3199
  %v3425 = vpop.permute.xlu0 %3424
  %3427 = vset.pattern.permute.xlu0 1
  %3428 = vperm.xlu0 %3427, %v3200
  %v3429 = vpop.permute.xlu0 %3428
  %3431 = vset.pattern.permute.xlu0 1
  %3432 = vperm.xlu0 %3431, %v3201
  %v3433 = vpop.permute.xlu0 %3432
  %3435 = vset.pattern.permute.xlu0 1
  %3436 = vperm.xlu0 %3435, %v3202
  %v3437 = vpop.permute.xlu0 %3436
  %3439 = vset.pattern.permute.xlu0 1
  %3440 = vperm.xlu0 %3439, %v3203
  %v3441 = vpop.permute.xlu0 %3440
  %3443 = vset.pattern.permute.xlu0 1
  %3444 = vperm.xlu0 %3443, %v3204
  %v3445 = vpop.permute.xlu0 %3444
  %3447 = vset.pattern.permute.xlu0 1
  %3448 = vperm.xlu0 %3447, %v3205
  %v3449 = vpop.permute.xlu0 %3448
  %3451 = vset.pattern.permute.xlu0 1
  %3452 = vperm.xlu0 %3451, %v3206
  %v3453 = vpop.permute.xlu0 %3452
  %3455 = vset.pattern.permute.xlu0 1
  %3456 = vperm.xlu0 %3455, %v3207
  %v3457 = vpop.permute.xlu0 %3456
  %3459 = vset.pattern.permute.xlu0 1
  %3460 = vperm.xlu0 %3459, %v3208
  %v3461 = vpop.permute.xlu0 %3460
  %3463 = vset.pattern.permute.xlu0 1
  %3464 = vperm.xlu0 %3463, %v3209
  %v3465 = vpop.permute.xlu0 %3464
  %3467 = vset.pattern.permute.xlu0 1
  %3468 = vperm.xlu0 %3467, %v3210
  %v3469 = vpop.permute.xlu0 %3468
  %3471 = vset.pattern.permute.xlu0 1
  %3472 = vperm.xlu0 %3471, %v3211
  %v3473 = vpop.permute.xlu0 %3472
  %3475 = vset.pattern.permute.xlu0 1
  %3476 = vperm.xlu0 %3475, %v3212
  %v3477 = vpop.permute.xlu0 %3476
  %3479 = vset.pattern.permute.xlu0 1
  %3480 = vperm.xlu0 %3479, %v3213
  %v3481 = vpop.permute.xlu0 %3480
  %3483 = vset.pattern.permute.xlu0 1
  %3484 = vperm.xlu0 %3483, %v3214
  %v3485 = vpop.permute.xlu0 %3484
  %3487 = vset.pattern.permute.xlu0 1
  %3488 = vperm.xlu0 %3487, %v3215
  %v3489 = vpop.permute.xlu0 %3488
  %3491 = vset.pattern.permute.xlu0 1
  %3492 = vperm.xlu0 %3491, %v3216
  %v3493 = vpop.permute.xlu0 %3492
  %3495 = vset.pattern.permute.xlu0 1
  %3496 = vperm.xlu0 %3495, %v3217
  %v3497 = vpop.permute.xlu0 %3496
  %3499 = vset.pattern.permute.xlu0 1
  %3500 = vperm.xlu0 %3499, %v3218
  %v3501 = vpop.permute.xlu0 %3500
  %3503 = vset.pattern.permute.xlu0 1
  %3504 = vperm.xlu0 %3503, %v3219
  %v3505 = vpop.permute.xlu0 %3504
  %3507 = vset.pattern.permute.xlu0 1
  %3508 = vperm.xlu0 %3507, %v3220
  %v3509 = vpop.permute.xlu0 %3508
  %3511 = vset.pattern.permute.xlu0 1
  %3512 = vperm.xlu0 %3511, %v3221
  %v3513 = vpop.permute.xlu0 %3512
  %3515 = vset.pattern.permute.xlu0 1
  %3516 = vperm.xlu0 %3515, %v3222
  %v3517 = vpop.permute.xlu0 %3516
  %3519 = vset.pattern.permute.xlu0 1
  %3520 = vperm.xlu0 %3519, %v3223
  %v3521 = vpop.permute.xlu0 %3520
  %3523 = vset.pattern.permute.xlu0 1
  %3524 = vperm.xlu0 %3523, %v3224
  %v3525 = vpop.permute.xlu0 %3524
  %3527 = vset.pattern.permute.xlu0 1
  %3528 = vperm.xlu0 %3527, %v3225
  %v3529 = vpop.permute.xlu0 %3528
  %3531 = vset.pattern.permute.xlu0 1
  %3532 = vperm.xlu0 %3531, %v3226
  %v3533 = vpop.permute.xlu0 %3532
  %3535 = vset.pattern.permute.xlu0 1
  %3536 = vperm.xlu0 %3535, %v3227
  %v3537 = vpop.permute.xlu0 %3536
  %3539 = vset.pattern.permute.xlu0 1
  %3540 = vperm.xlu0 %3539, %v3228
  %v3541 = vpop.permute.xlu0 %3540
  %3543 = vset.pattern.permute.xlu0 1
  %3544 = vperm.xlu0 %3543, %v3229
  %v3545 = vpop.permute.xlu0 %3544
  %3547 = vset.pattern.permute.xlu0 1
  %3548 = vperm.xlu0 %3547, %v3230
  %v3549 = vpop.permute.xlu0 %3548
  %v3551 = vmul.f32 %v3425, %v375
  %v3552 = vmul.f32 %v3429, %v375
  %v3553 = vmul.f32 %v3433, %v375
  %v3554 = vmul.f32 %v3437, %v375
  %v3555 = vmul.f32 %v3441, %v375
  %v3556 = vmul.f32 %v3445, %v375
  %v3557 = vmul.f32 %v3449, %v375
  %v3558 = vmul.f32 %v3453, %v375
  %v3559 = vmul.f32 %v3457, %v375
  %v3560 = vmul.f32 %v3461, %v375
  %v3561 = vmul.f32 %v3465, %v375
  %v3562 = vmul.f32 %v3469, %v375
  %v3563 = vmul.f32 %v3473, %v375
  %v3564 = vmul.f32 %v3477, %v375
  %v3565 = vmul.f32 %v3481, %v375
  %v3566 = vmul.f32 %v3485, %v375
  %v3567 = vmul.f32 %v3489, %v375
  %v3568 = vmul.f32 %v3493, %v375
  %v3569 = vmul.f32 %v3497, %v375
  %v3570 = vmul.f32 %v3501, %v375
  %v3571 = vmul.f32 %v3505, %v375
  %v3572 = vmul.f32 %v3509, %v375
  %v3573 = vmul.f32 %v3513, %v375
  %v3574 = vmul.f32 %v3517, %v375
  %v3575 = vmul.f32 %v3521, %v375
  %v3576 = vmul.f32 %v3525, %v375
  %v3577 = vmul.f32 %v3529, %v375
  %v3578 = vmul.f32 %v3533, %v375
  %v3579 = vmul.f32 %v3537, %v375
  %v3580 = vmul.f32 %v3541, %v375
  %v3581 = vmul.f32 %v3545, %v375
  %v3582 = vmul.f32 %v3549, %v375
  %v3583 = vadd.f32 %v3391, %v3551
  %v3584 = vadd.f32 %v3392, %v3552
  %v3585 = vadd.f32 %v3393, %v3553
  %v3586 = vadd.f32 %v3394, %v3554
  %v3587 = vadd.f32 %v3395, %v3555
  %v3588 = vadd.f32 %v3396, %v3556
  %v3589 = vadd.f32 %v3397, %v3557
  %v3590 = vadd.f32 %v3398, %v3558
  %v3591 = vadd.f32 %v3399, %v3559
  %v3592 = vadd.f32 %v3400, %v3560
  %v3593 = vadd.f32 %v3401, %v3561
  %v3594 = vadd.f32 %v3402, %v3562
  %v3595 = vadd.f32 %v3403, %v3563
  %v3596 = vadd.f32 %v3404, %v3564
  %v3597 = vadd.f32 %v3405, %v3565
  %v3598 = vadd.f32 %v3406, %v3566
  %v3599 = vadd.f32 %v3407, %v3567
  %v3600 = vadd.f32 %v3408, %v3568
  %v3601 = vadd.f32 %v3409, %v3569
  %v3602 = vadd.f32 %v3410, %v3570
  %v3603 = vadd.f32 %v3411, %v3571
  %v3604 = vadd.f32 %v3412, %v3572
  %v3605 = vadd.f32 %v3413, %v3573
  %v3606 = vadd.f32 %v3414, %v3574
  %v3607 = vadd.f32 %v3415, %v3575
  %v3608 = vadd.f32 %v3416, %v3576
  %v3609 = vadd.f32 %v3417, %v3577
  %v3610 = vadd.f32 %v3418, %v3578
  %v3611 = vadd.f32 %v3419, %v3579
  %v3612 = vadd.f32 %v3420, %v3580
  %v3613 = vadd.f32 %v3421, %v3581
  %v3614 = vadd.f32 %v3422, %v3582
  %v3615 = vadd.f32 %v3583, %v440
  %v3616 = vadd.f32 %v3584, %v440
  %v3617 = vadd.f32 %v3585, %v440
  %v3618 = vadd.f32 %v3586, %v440
  %v3619 = vadd.f32 %v3587, %v440
  %v3620 = vadd.f32 %v3588, %v440
  %v3621 = vadd.f32 %v3589, %v440
  %v3622 = vadd.f32 %v3590, %v440
  %v3623 = vadd.f32 %v3591, %v440
  %v3624 = vadd.f32 %v3592, %v440
  %v3625 = vadd.f32 %v3593, %v440
  %v3626 = vadd.f32 %v3594, %v440
  %v3627 = vadd.f32 %v3595, %v440
  %v3628 = vadd.f32 %v3596, %v440
  %v3629 = vadd.f32 %v3597, %v440
  %v3630 = vadd.f32 %v3598, %v440
  %v3631 = vadd.f32 %v3599, %v440
  %v3632 = vadd.f32 %v3600, %v440
  %v3633 = vadd.f32 %v3601, %v440
  %v3634 = vadd.f32 %v3602, %v440
  %v3635 = vadd.f32 %v3603, %v440
  %v3636 = vadd.f32 %v3604, %v440
  %v3637 = vadd.f32 %v3605, %v440
  %v3638 = vadd.f32 %v3606, %v440
  %v3639 = vadd.f32 %v3607, %v440
  %v3640 = vadd.f32 %v3608, %v440
  %v3641 = vadd.f32 %v3609, %v440
  %v3642 = vadd.f32 %v3610, %v440
  %v3643 = vadd.f32 %v3611, %v440
  %v3644 = vadd.f32 %v3612, %v440
  %v3645 = vadd.f32 %v3613, %v440
  %v3646 = vadd.f32 %v3614, %v440
  %v3647 = vtanh.pop %v3615
  %v3648 = vtanh.pop %v3616
  %v3649 = vtanh.pop %v3617
  %v3650 = vtanh.pop %v3618
  %v3651 = vtanh.pop %v3619
  %v3652 = vtanh.pop %v3620
  %v3653 = vtanh.pop %v3621
  %v3654 = vtanh.pop %v3622
  %v3655 = vtanh.pop %v3623
  %v3656 = vtanh.pop %v3624
  %v3657 = vtanh.pop %v3625
  %v3658 = vtanh.pop %v3626
  %v3659 = vtanh.pop %v3627
  %v3660 = vtanh.pop %v3628
  %v3661 = vtanh.pop %v3629
  %v3662 = vtanh.pop %v3630
  %v3663 = vtanh.pop %v3631
  %v3664 = vtanh.pop %v3632
  %v3665 = vtanh.pop %v3633
  %v3666 = vtanh.pop %v3634
  %v3667 = vtanh.pop %v3635
  %v3668 = vtanh.pop %v3636
  %v3669 = vtanh.pop %v3637
  %v3670 = vtanh.pop %v3638
  %v3671 = vtanh.pop %v3639
  %v3672 = vtanh.pop %v3640
  %v3673 = vtanh.pop %v3641
  %v3674 = vtanh.pop %v3642
  %v3675 = vtanh.pop %v3643
  %v3676 = vtanh.pop %v3644
  %v3677 = vtanh.pop %v3645
  %v3678 = vtanh.pop %v3646
  %v3679 = vpack.c.bf16 %v3648, %v3647
  %v3680 = vpack.c.bf16 %v3650, %v3649
  %v3681 = vpack.c.bf16 %v3652, %v3651
  %v3682 = vpack.c.bf16 %v3654, %v3653
  %v3683 = vpack.c.bf16 %v3656, %v3655
  %v3684 = vpack.c.bf16 %v3658, %v3657
  %v3685 = vpack.c.bf16 %v3660, %v3659
  %v3686 = vpack.c.bf16 %v3662, %v3661
  %v3687 = vpack.c.bf16 %v3664, %v3663
  %v3688 = vpack.c.bf16 %v3666, %v3665
  %v3689 = vpack.c.bf16 %v3668, %v3667
  %v3690 = vpack.c.bf16 %v3670, %v3669
  %v3691 = vpack.c.bf16 %v3672, %v3671
  %v3692 = vpack.c.bf16 %v3674, %v3673
  %v3693 = vpack.c.bf16 %v3676, %v3675
  %v3694 = vpack.c.bf16 %v3678, %v3677
  %v3695 = vld [vmem:[%s3] sm:$0xf]
  %v3696 = vld [vmem:[%s3 + $0x4] sm:$0xf]
  %v3697 = vld [vmem:[%s3 + $0x8] sm:$0xf]
  %v3698 = vld [vmem:[%s3 + $0xc] sm:$0xf]
  %v3699 = vld [vmem:[%s3 + $0x10] sm:$0xf]
  %v3700 = vld [vmem:[%s3 + $0x14] sm:$0xf]
  %v3701 = vld [vmem:[%s3 + $0x18] sm:$0xf]
  %v3702 = vld [vmem:[%s3 + $0x1c] sm:$0xf]
  %v3703 = vld [vmem:[%s3 + $0x20] sm:$0xf]
  %v3704 = vld [vmem:[%s3 + $0x24] sm:$0xf]
  %v3705 = vld [vmem:[%s3 + $0x28] sm:$0xf]
  %v3706 = vld [vmem:[%s3 + $0x2c] sm:$0xf]
  %v3707 = vld [vmem:[%s3 + $0x30] sm:$0xf]
  %v3708 = vld [vmem:[%s3 + $0x34] sm:$0xf]
  %v3709 = vld [vmem:[%s3 + $0x38] sm:$0xf]
  %v3710 = vld [vmem:[%s3 + $0x3c] sm:$0xf]
  %v3727 = vunpack.c.l.b16 %v3695
  %v3728 = vunpack.c.l.b16 %v3696
  %v3729 = vunpack.c.l.b16 %v3697
  %v3730 = vunpack.c.l.b16 %v3698
  %v3731 = vunpack.c.l.b16 %v3699
  %v3732 = vunpack.c.l.b16 %v3700
  %v3733 = vunpack.c.l.b16 %v3701
  %v3734 = vunpack.c.l.b16 %v3702
  %v3735 = vunpack.c.l.b16 %v3703
  %v3736 = vunpack.c.l.b16 %v3704
  %v3737 = vunpack.c.l.b16 %v3705
  %v3738 = vunpack.c.l.b16 %v3706
  %v3739 = vunpack.c.l.b16 %v3707
  %v3740 = vunpack.c.l.b16 %v3708
  %v3741 = vunpack.c.l.b16 %v3709
  %v3742 = vunpack.c.l.b16 %v3710
  %v3743 = vpack.c.b16 %v3728, %v3727
  %v3744 = vpack.c.b16 %v3730, %v3729
  %v3745 = vpack.c.b16 %v3732, %v3731
  %v3746 = vpack.c.b16 %v3734, %v3733
  %v3747 = vpack.c.b16 %v3736, %v3735
  %v3748 = vpack.c.b16 %v3738, %v3737
  %v3749 = vpack.c.b16 %v3740, %v3739
  %v3750 = vpack.c.b16 %v3742, %v3741
  %3759 = vmatpush.bf16.msra.mxu0 %v3750
  %3760 = vmatpush.bf16.msra.mxu0 %v3749
  %3761 = vmatpush.bf16.msra.mxu0 %v3748
  %3762 = vmatpush.bf16.msra.mxu0 %v3747
  %3763 = vmatpush.bf16.msra.mxu0 %v3746
  %3764 = vmatpush.bf16.msra.mxu0 %v3745
  %3765 = vmatpush.bf16.msra.mxu0 %v3744
  %3766 = vmatpush.bf16.msra.mxu0 %v3743
  %3767 = vmatmul.bf16.gmra.mxu0 %v3679
  %v3768 = vpop.f32.mrf.mxu0
  %v3769 = vadd.f32 %v537, %v3768
  %v3770 = vpop.f32.mrf.mxu0
  %v3771 = vadd.f32 %v537, %v3770
  %3772 = vmatmul.bf16.gmra.mxu0 %v3680
  %v3773 = vpop.f32.mrf.mxu0
  %v3774 = vadd.f32 %v537, %v3773
  %v3775 = vpop.f32.mrf.mxu0
  %v3776 = vadd.f32 %v537, %v3775
  %3777 = vmatmul.bf16.gmra.mxu0 %v3681
  %v3778 = vpop.f32.mrf.mxu0
  %v3779 = vadd.f32 %v537, %v3778
  %v3780 = vpop.f32.mrf.mxu0
  %v3781 = vadd.f32 %v537, %v3780
  %3782 = vmatmul.bf16.gmra.mxu0 %v3682
  %v3783 = vpop.f32.mrf.mxu0
  %v3784 = vadd.f32 %v537, %v3783
  %v3785 = vpop.f32.mrf.mxu0
  %v3786 = vadd.f32 %v537, %v3785
  %3787 = vmatmul.bf16.gmra.mxu0 %v3683
  %v3788 = vpop.f32.mrf.mxu0
  %v3789 = vadd.f32 %v537, %v3788
  %v3790 = vpop.f32.mrf.mxu0
  %v3791 = vadd.f32 %v537, %v3790
  %3792 = vmatmul.bf16.gmra.mxu0 %v3684
  %v3793 = vpop.f32.mrf.mxu0
  %v3794 = vadd.f32 %v537, %v3793
  %v3795 = vpop.f32.mrf.mxu0
  %v3796 = vadd.f32 %v537, %v3795
  %3797 = vmatmul.bf16.gmra.mxu0 %v3685
  %v3798 = vpop.f32.mrf.mxu0
  %v3799 = vadd.f32 %v537, %v3798
  %v3800 = vpop.f32.mrf.mxu0
  %v3801 = vadd.f32 %v537, %v3800
  %3802 = vmatmul.bf16.gmra.mxu0 %v3686
  %v3803 = vpop.f32.mrf.mxu0
  %v3804 = vadd.f32 %v537, %v3803
  %v3805 = vpop.f32.mrf.mxu0
  %v3806 = vadd.f32 %v537, %v3805
  %3807 = vmatmul.bf16.gmra.mxu0 %v3687
  %v3808 = vpop.f32.mrf.mxu0
  %v3809 = vadd.f32 %v537, %v3808
  %v3810 = vpop.f32.mrf.mxu0
  %v3811 = vadd.f32 %v537, %v3810
  %3812 = vmatmul.bf16.gmra.mxu0 %v3688
  %v3813 = vpop.f32.mrf.mxu0
  %v3814 = vadd.f32 %v537, %v3813
  %v3815 = vpop.f32.mrf.mxu0
  %v3816 = vadd.f32 %v537, %v3815
  %3817 = vmatmul.bf16.gmra.mxu0 %v3689
  %v3818 = vpop.f32.mrf.mxu0
  %v3819 = vadd.f32 %v537, %v3818
  %v3820 = vpop.f32.mrf.mxu0
  %v3821 = vadd.f32 %v537, %v3820
  %3822 = vmatmul.bf16.gmra.mxu0 %v3690
  %v3823 = vpop.f32.mrf.mxu0
  %v3824 = vadd.f32 %v537, %v3823
  %v3825 = vpop.f32.mrf.mxu0
  %v3826 = vadd.f32 %v537, %v3825
  %3827 = vmatmul.bf16.gmra.mxu0 %v3691
  %v3828 = vpop.f32.mrf.mxu0
  %v3829 = vadd.f32 %v537, %v3828
  %v3830 = vpop.f32.mrf.mxu0
  %v3831 = vadd.f32 %v537, %v3830
  %3832 = vmatmul.bf16.gmra.mxu0 %v3692
  %v3833 = vpop.f32.mrf.mxu0
  %v3834 = vadd.f32 %v537, %v3833
  %v3835 = vpop.f32.mrf.mxu0
  %v3836 = vadd.f32 %v537, %v3835
  %3837 = vmatmul.bf16.gmra.mxu0 %v3693
  %v3838 = vpop.f32.mrf.mxu0
  %v3839 = vadd.f32 %v537, %v3838
  %v3840 = vpop.f32.mrf.mxu0
  %v3841 = vadd.f32 %v537, %v3840
  %3842 = vmatmul.bf16.gmra.mxu0 %v3694
  %v3843 = vpop.f32.mrf.mxu0
  %v3844 = vadd.f32 %v537, %v3843
  %v3845 = vpop.f32.mrf.mxu0
  %v3846 = vadd.f32 %v537, %v3845
  %3847 = vdwg.mxu0
  %v3848 = vtanh.pop %v3769
  %v3849 = vtanh.pop %v3771
  %v3850 = vtanh.pop %v3774
  %v3851 = vtanh.pop %v3776
  %v3852 = vtanh.pop %v3779
  %v3853 = vtanh.pop %v3781
  %v3854 = vtanh.pop %v3784
  %v3855 = vtanh.pop %v3786
  %v3856 = vtanh.pop %v3789
  %v3857 = vtanh.pop %v3791
  %v3858 = vtanh.pop %v3794
  %v3859 = vtanh.pop %v3796
  %v3860 = vtanh.pop %v3799
  %v3861 = vtanh.pop %v3801
  %v3862 = vtanh.pop %v3804
  %v3863 = vtanh.pop %v3806
  %v3864 = vtanh.pop %v3809
  %v3865 = vtanh.pop %v3811
  %v3866 = vtanh.pop %v3814
  %v3867 = vtanh.pop %v3816
  %v3868 = vtanh.pop %v3819
  %v3869 = vtanh.pop %v3821
  %v3870 = vtanh.pop %v3824
  %v3871 = vtanh.pop %v3826
  %v3872 = vtanh.pop %v3829
  %v3873 = vtanh.pop %v3831
  %v3874 = vtanh.pop %v3834
  %v3875 = vtanh.pop %v3836
  %v3876 = vtanh.pop %v3839
  %v3877 = vtanh.pop %v3841
  %v3878 = vtanh.pop %v3844
  %v3879 = vtanh.pop %v3846
  %v3880 = vadd.f32 %v3848, %v3647
  %v3881 = vadd.f32 %v3849, %v3648
  %v3882 = vadd.f32 %v3850, %v3649
  %v3883 = vadd.f32 %v3851, %v3650
  %v3884 = vadd.f32 %v3852, %v3651
  %v3885 = vadd.f32 %v3853, %v3652
  %v3886 = vadd.f32 %v3854, %v3653
  %v3887 = vadd.f32 %v3855, %v3654
  %v3888 = vadd.f32 %v3856, %v3655
  %v3889 = vadd.f32 %v3857, %v3656
  %v3890 = vadd.f32 %v3858, %v3657
  %v3891 = vadd.f32 %v3859, %v3658
  %v3892 = vadd.f32 %v3860, %v3659
  %v3893 = vadd.f32 %v3861, %v3660
  %v3894 = vadd.f32 %v3862, %v3661
  %v3895 = vadd.f32 %v3863, %v3662
  %v3896 = vadd.f32 %v3864, %v3663
  %v3897 = vadd.f32 %v3865, %v3664
  %v3898 = vadd.f32 %v3866, %v3665
  %v3899 = vadd.f32 %v3867, %v3666
  %v3900 = vadd.f32 %v3868, %v3667
  %v3901 = vadd.f32 %v3869, %v3668
  %v3902 = vadd.f32 %v3870, %v3669
  %v3903 = vadd.f32 %v3871, %v3670
  %v3904 = vadd.f32 %v3872, %v3671
  %v3905 = vadd.f32 %v3873, %v3672
  %v3906 = vadd.f32 %v3874, %v3673
  %v3907 = vadd.f32 %v3875, %v3674
  %v3908 = vadd.f32 %v3876, %v3675
  %v3909 = vadd.f32 %v3877, %v3676
  %v3910 = vadd.f32 %v3878, %v3677
  %v3911 = vadd.f32 %v3879, %v3678
  %v3912 = vpack.c.bf16 %v3881, %v3880
  %v3913 = vpack.c.bf16 %v3883, %v3882
  %v3914 = vpack.c.bf16 %v3885, %v3884
  %v3915 = vpack.c.bf16 %v3887, %v3886
  %v3916 = vpack.c.bf16 %v3889, %v3888
  %v3917 = vpack.c.bf16 %v3891, %v3890
  %v3918 = vpack.c.bf16 %v3893, %v3892
  %v3919 = vpack.c.bf16 %v3895, %v3894
  %v3920 = vpack.c.bf16 %v3897, %v3896
  %v3921 = vpack.c.bf16 %v3899, %v3898
  %v3922 = vpack.c.bf16 %v3901, %v3900
  %v3923 = vpack.c.bf16 %v3903, %v3902
  %v3924 = vpack.c.bf16 %v3905, %v3904
  %v3925 = vpack.c.bf16 %v3907, %v3906
  %v3926 = vpack.c.bf16 %v3909, %v3908
  %v3927 = vpack.c.bf16 %v3911, %v3910
  %v3928 = vld [vmem:[%s755] sm:$0xf]
  %v3929 = vld [vmem:[%s755 + $0x4] sm:$0xf]
  %v3930 = vld [vmem:[%s755 + $0x8] sm:$0xf]
  %v3931 = vld [vmem:[%s755 + $0xc] sm:$0xf]
  %v3932 = vld [vmem:[%s755 + $0x10] sm:$0xf]
  %v3933 = vld [vmem:[%s755 + $0x14] sm:$0xf]
  %v3934 = vld [vmem:[%s755 + $0x18] sm:$0xf]
  %v3935 = vld [vmem:[%s755 + $0x1c] sm:$0xf]
  %v3936 = vld [vmem:[%s755 + $0x20] sm:$0xf]
  %v3937 = vld [vmem:[%s755 + $0x24] sm:$0xf]
  %v3938 = vld [vmem:[%s755 + $0x28] sm:$0xf]
  %v3939 = vld [vmem:[%s755 + $0x2c] sm:$0xf]
  %v3940 = vld [vmem:[%s755 + $0x30] sm:$0xf]
  %v3941 = vld [vmem:[%s755 + $0x34] sm:$0xf]
  %v3942 = vld [vmem:[%s755 + $0x38] sm:$0xf]
  %v3943 = vld [vmem:[%s755 + $0x3c] sm:$0xf]
  %v3960 = vunpack.c.l.b16 %v3928
  %v3961 = vunpack.c.l.b16 %v3929
  %v3962 = vunpack.c.l.b16 %v3930
  %v3963 = vunpack.c.l.b16 %v3931
  %v3964 = vunpack.c.l.b16 %v3932
  %v3965 = vunpack.c.l.b16 %v3933
  %v3966 = vunpack.c.l.b16 %v3934
  %v3967 = vunpack.c.l.b16 %v3935
  %v3968 = vunpack.c.l.b16 %v3936
  %v3969 = vunpack.c.l.b16 %v3937
  %v3970 = vunpack.c.l.b16 %v3938
  %v3971 = vunpack.c.l.b16 %v3939
  %v3972 = vunpack.c.l.b16 %v3940
  %v3973 = vunpack.c.l.b16 %v3941
  %v3974 = vunpack.c.l.b16 %v3942
  %v3975 = vunpack.c.l.b16 %v3943
  %v3976 = vpack.c.b16 %v3961, %v3960
  %v3977 = vpack.c.b16 %v3963, %v3962
  %v3978 = vpack.c.b16 %v3965, %v3964
  %v3979 = vpack.c.b16 %v3967, %v3966
  %v3980 = vpack.c.b16 %v3969, %v3968
  %v3981 = vpack.c.b16 %v3971, %v3970
  %v3982 = vpack.c.b16 %v3973, %v3972
  %v3983 = vpack.c.b16 %v3975, %v3974
  %3992 = vmatpush.bf16.msra.mxu0 %v3983
  %3993 = vmatpush.bf16.msra.mxu0 %v3982
  %3994 = vmatpush.bf16.msra.mxu0 %v3981
  %3995 = vmatpush.bf16.msra.mxu0 %v3980
  %3996 = vmatpush.bf16.msra.mxu0 %v3979
  %3997 = vmatpush.bf16.msra.mxu0 %v3978
  %3998 = vmatpush.bf16.msra.mxu0 %v3977
  %3999 = vmatpush.bf16.msra.mxu0 %v3976
  %4000 = vmatmul.bf16.gmra.mxu0 %v3912
  %v4001 = vpop.f32.mrf.mxu0
  %v4002 = vadd.f32 %v772, %v4001
  %v4003 = vpop.f32.mrf.mxu0
  %v4004 = vadd.f32 %v772, %v4003
  %4005 = vmatmul.bf16.gmra.mxu0 %v3913
  %v4006 = vpop.f32.mrf.mxu0
  %v4007 = vadd.f32 %v772, %v4006
  %v4008 = vpop.f32.mrf.mxu0
  %v4009 = vadd.f32 %v772, %v4008
  %4010 = vmatmul.bf16.gmra.mxu0 %v3914
  %v4011 = vpop.f32.mrf.mxu0
  %v4012 = vadd.f32 %v772, %v4011
  %v4013 = vpop.f32.mrf.mxu0
  %v4014 = vadd.f32 %v772, %v4013
  %4015 = vmatmul.bf16.gmra.mxu0 %v3915
  %v4016 = vpop.f32.mrf.mxu0
  %v4017 = vadd.f32 %v772, %v4016
  %v4018 = vpop.f32.mrf.mxu0
  %v4019 = vadd.f32 %v772, %v4018
  %4020 = vmatmul.bf16.gmra.mxu0 %v3916
  %v4021 = vpop.f32.mrf.mxu0
  %v4022 = vadd.f32 %v772, %v4021
  %v4023 = vpop.f32.mrf.mxu0
  %v4024 = vadd.f32 %v772, %v4023
  %4025 = vmatmul.bf16.gmra.mxu0 %v3917
  %v4026 = vpop.f32.mrf.mxu0
  %v4027 = vadd.f32 %v772, %v4026
  %v4028 = vpop.f32.mrf.mxu0
  %v4029 = vadd.f32 %v772, %v4028
  %4030 = vmatmul.bf16.gmra.mxu0 %v3918
  %v4031 = vpop.f32.mrf.mxu0
  %v4032 = vadd.f32 %v772, %v4031
  %v4033 = vpop.f32.mrf.mxu0
  %v4034 = vadd.f32 %v772, %v4033
  %4035 = vmatmul.bf16.gmra.mxu0 %v3919
  %v4036 = vpop.f32.mrf.mxu0
  %v4037 = vadd.f32 %v772, %v4036
  %v4038 = vpop.f32.mrf.mxu0
  %v4039 = vadd.f32 %v772, %v4038
  %4040 = vmatmul.bf16.gmra.mxu0 %v3920
  %v4041 = vpop.f32.mrf.mxu0
  %v4042 = vadd.f32 %v772, %v4041
  %v4043 = vpop.f32.mrf.mxu0
  %v4044 = vadd.f32 %v772, %v4043
  %4045 = vmatmul.bf16.gmra.mxu0 %v3921
  %v4046 = vpop.f32.mrf.mxu0
  %v4047 = vadd.f32 %v772, %v4046
  %v4048 = vpop.f32.mrf.mxu0
  %v4049 = vadd.f32 %v772, %v4048
  %4050 = vmatmul.bf16.gmra.mxu0 %v3922
  %v4051 = vpop.f32.mrf.mxu0
  %v4052 = vadd.f32 %v772, %v4051
  %v4053 = vpop.f32.mrf.mxu0
  %v4054 = vadd.f32 %v772, %v4053
  %4055 = vmatmul.bf16.gmra.mxu0 %v3923
  %v4056 = vpop.f32.mrf.mxu0
  %v4057 = vadd.f32 %v772, %v4056
  %v4058 = vpop.f32.mrf.mxu0
  %v4059 = vadd.f32 %v772, %v4058
  %4060 = vmatmul.bf16.gmra.mxu0 %v3924
  %v4061 = vpop.f32.mrf.mxu0
  %v4062 = vadd.f32 %v772, %v4061
  %v4063 = vpop.f32.mrf.mxu0
  %v4064 = vadd.f32 %v772, %v4063
  %4065 = vmatmul.bf16.gmra.mxu0 %v3925
  %v4066 = vpop.f32.mrf.mxu0
  %v4067 = vadd.f32 %v772, %v4066
  %v4068 = vpop.f32.mrf.mxu0
  %v4069 = vadd.f32 %v772, %v4068
  %4070 = vmatmul.bf16.gmra.mxu0 %v3926
  %v4071 = vpop.f32.mrf.mxu0
  %v4072 = vadd.f32 %v772, %v4071
  %v4073 = vpop.f32.mrf.mxu0
  %v4074 = vadd.f32 %v772, %v4073
  %4075 = vmatmul.bf16.gmra.mxu0 %v3927
  %v4076 = vpop.f32.mrf.mxu0
  %v4077 = vadd.f32 %v772, %v4076
  %v4078 = vpop.f32.mrf.mxu0
  %v4079 = vadd.f32 %v772, %v4078
  %4080 = vdwg.mxu0
  %v4081 = vtanh.pop %v4002
  %v4082 = vtanh.pop %v4004
  %v4083 = vtanh.pop %v4007
  %v4084 = vtanh.pop %v4009
  %v4085 = vtanh.pop %v4012
  %v4086 = vtanh.pop %v4014
  %v4087 = vtanh.pop %v4017
  %v4088 = vtanh.pop %v4019
  %v4089 = vtanh.pop %v4022
  %v4090 = vtanh.pop %v4024
  %v4091 = vtanh.pop %v4027
  %v4092 = vtanh.pop %v4029
  %v4093 = vtanh.pop %v4032
  %v4094 = vtanh.pop %v4034
  %v4095 = vtanh.pop %v4037
  %v4096 = vtanh.pop %v4039
  %v4097 = vtanh.pop %v4042
  %v4098 = vtanh.pop %v4044
  %v4099 = vtanh.pop %v4047
  %v4100 = vtanh.pop %v4049
  %v4101 = vtanh.pop %v4052
  %v4102 = vtanh.pop %v4054
  %v4103 = vtanh.pop %v4057
  %v4104 = vtanh.pop %v4059
  %v4105 = vtanh.pop %v4062
  %v4106 = vtanh.pop %v4064
  %v4107 = vtanh.pop %v4067
  %v4108 = vtanh.pop %v4069
  %v4109 = vtanh.pop %v4072
  %v4110 = vtanh.pop %v4074
  %v4111 = vtanh.pop %v4077
  %v4112 = vtanh.pop %v4079
  %v4113 = vadd.f32 %v4081, %v3880
  %v4114 = vadd.f32 %v4082, %v3881
  %v4115 = vadd.f32 %v4083, %v3882
  %v4116 = vadd.f32 %v4084, %v3883
  %v4117 = vadd.f32 %v4085, %v3884
  %v4118 = vadd.f32 %v4086, %v3885
  %v4119 = vadd.f32 %v4087, %v3886
  %v4120 = vadd.f32 %v4088, %v3887
  %v4121 = vadd.f32 %v4089, %v3888
  %v4122 = vadd.f32 %v4090, %v3889
  %v4123 = vadd.f32 %v4091, %v3890
  %v4124 = vadd.f32 %v4092, %v3891
  %v4125 = vadd.f32 %v4093, %v3892
  %v4126 = vadd.f32 %v4094, %v3893
  %v4127 = vadd.f32 %v4095, %v3894
  %v4128 = vadd.f32 %v4096, %v3895
  %v4129 = vadd.f32 %v4097, %v3896
  %v4130 = vadd.f32 %v4098, %v3897
  %v4131 = vadd.f32 %v4099, %v3898
  %v4132 = vadd.f32 %v4100, %v3899
  %v4133 = vadd.f32 %v4101, %v3900
  %v4134 = vadd.f32 %v4102, %v3901
  %v4135 = vadd.f32 %v4103, %v3902
  %v4136 = vadd.f32 %v4104, %v3903
  %v4137 = vadd.f32 %v4105, %v3904
  %v4138 = vadd.f32 %v4106, %v3905
  %v4139 = vadd.f32 %v4107, %v3906
  %v4140 = vadd.f32 %v4108, %v3907
  %v4141 = vadd.f32 %v4109, %v3908
  %v4142 = vadd.f32 %v4110, %v3909
  %v4143 = vadd.f32 %v4111, %v3910
  %v4144 = vadd.f32 %v4112, %v3911
  %v4145 = vpack.c.bf16 %v4114, %v4113
  %v4146 = vpack.c.bf16 %v4116, %v4115
  %v4147 = vpack.c.bf16 %v4118, %v4117
  %v4148 = vpack.c.bf16 %v4120, %v4119
  %v4149 = vpack.c.bf16 %v4122, %v4121
  %v4150 = vpack.c.bf16 %v4124, %v4123
  %v4151 = vpack.c.bf16 %v4126, %v4125
  %v4152 = vpack.c.bf16 %v4128, %v4127
  %v4153 = vpack.c.bf16 %v4130, %v4129
  %v4154 = vpack.c.bf16 %v4132, %v4131
  %v4155 = vpack.c.bf16 %v4134, %v4133
  %v4156 = vpack.c.bf16 %v4136, %v4135
  %v4157 = vpack.c.bf16 %v4138, %v4137
  %v4158 = vpack.c.bf16 %v4140, %v4139
  %v4159 = vpack.c.bf16 %v4142, %v4141
  %v4160 = vpack.c.bf16 %v4144, %v4143
  %v4161 = vld [vmem:[%s990] sm:$0xf]
  %v4162 = vld [vmem:[%s990 + $0x4] sm:$0xf]
  %v4163 = vld [vmem:[%s990 + $0x8] sm:$0xf]
  %v4164 = vld [vmem:[%s990 + $0xc] sm:$0xf]
  %v4165 = vld [vmem:[%s990 + $0x10] sm:$0xf]
  %v4166 = vld [vmem:[%s990 + $0x14] sm:$0xf]
  %v4167 = vld [vmem:[%s990 + $0x18] sm:$0xf]
  %v4168 = vld [vmem:[%s990 + $0x1c] sm:$0xf]
  %v4169 = vld [vmem:[%s990 + $0x20] sm:$0xf]
  %v4170 = vld [vmem:[%s990 + $0x24] sm:$0xf]
  %v4171 = vld [vmem:[%s990 + $0x28] sm:$0xf]
  %v4172 = vld [vmem:[%s990 + $0x2c] sm:$0xf]
  %v4173 = vld [vmem:[%s990 + $0x30] sm:$0xf]
  %v4174 = vld [vmem:[%s990 + $0x34] sm:$0xf]
  %v4175 = vld [vmem:[%s990 + $0x38] sm:$0xf]
  %v4176 = vld [vmem:[%s990 + $0x3c] sm:$0xf]
  %v4193 = vunpack.c.l.b16 %v4161
  %v4194 = vunpack.c.l.b16 %v4162
  %v4195 = vunpack.c.l.b16 %v4163
  %v4196 = vunpack.c.l.b16 %v4164
  %v4197 = vunpack.c.l.b16 %v4165
  %v4198 = vunpack.c.l.b16 %v4166
  %v4199 = vunpack.c.l.b16 %v4167
  %v4200 = vunpack.c.l.b16 %v4168
  %v4201 = vunpack.c.l.b16 %v4169
  %v4202 = vunpack.c.l.b16 %v4170
  %v4203 = vunpack.c.l.b16 %v4171
  %v4204 = vunpack.c.l.b16 %v4172
  %v4205 = vunpack.c.l.b16 %v4173
  %v4206 = vunpack.c.l.b16 %v4174
  %v4207 = vunpack.c.l.b16 %v4175
  %v4208 = vunpack.c.l.b16 %v4176
  %v4209 = vpack.c.b16 %v4194, %v4193
  %v4210 = vpack.c.b16 %v4196, %v4195
  %v4211 = vpack.c.b16 %v4198, %v4197
  %v4212 = vpack.c.b16 %v4200, %v4199
  %v4213 = vpack.c.b16 %v4202, %v4201
  %v4214 = vpack.c.b16 %v4204, %v4203
  %v4215 = vpack.c.b16 %v4206, %v4205
  %v4216 = vpack.c.b16 %v4208, %v4207
  %4225 = vmatpush.bf16.msra.mxu0 %v4216
  %4226 = vmatpush.bf16.msra.mxu0 %v4215
  %4227 = vmatpush.bf16.msra.mxu0 %v4214
  %4228 = vmatpush.bf16.msra.mxu0 %v4213
  %4229 = vmatpush.bf16.msra.mxu0 %v4212
  %4230 = vmatpush.bf16.msra.mxu0 %v4211
  %4231 = vmatpush.bf16.msra.mxu0 %v4210
  %4232 = vmatpush.bf16.msra.mxu0 %v4209
  %4233 = vmatmul.bf16.gmra.mxu0 %v4145
  %v4234 = vpop.f32.mrf.mxu0
  %v4235 = vadd.f32 %v1007, %v4234
  %v4236 = vpop.f32.mrf.mxu0
  %v4237 = vadd.f32 %v1007, %v4236
  %4238 = vmatmul.bf16.gmra.mxu0 %v4146
  %v4239 = vpop.f32.mrf.mxu0
  %v4240 = vadd.f32 %v1007, %v4239
  %v4241 = vpop.f32.mrf.mxu0
  %v4242 = vadd.f32 %v1007, %v4241
  %4243 = vmatmul.bf16.gmra.mxu0 %v4147
  %v4244 = vpop.f32.mrf.mxu0
  %v4245 = vadd.f32 %v1007, %v4244
  %v4246 = vpop.f32.mrf.mxu0
  %v4247 = vadd.f32 %v1007, %v4246
  %4248 = vmatmul.bf16.gmra.mxu0 %v4148
  %v4249 = vpop.f32.mrf.mxu0
  %v4250 = vadd.f32 %v1007, %v4249
  %v4251 = vpop.f32.mrf.mxu0
  %v4252 = vadd.f32 %v1007, %v4251
  %4253 = vmatmul.bf16.gmra.mxu0 %v4149
  %v4254 = vpop.f32.mrf.mxu0
  %v4255 = vadd.f32 %v1007, %v4254
  %v4256 = vpop.f32.mrf.mxu0
  %v4257 = vadd.f32 %v1007, %v4256
  %4258 = vmatmul.bf16.gmra.mxu0 %v4150
  %v4259 = vpop.f32.mrf.mxu0
  %v4260 = vadd.f32 %v1007, %v4259
  %v4261 = vpop.f32.mrf.mxu0
  %v4262 = vadd.f32 %v1007, %v4261
  %4263 = vmatmul.bf16.gmra.mxu0 %v4151
  %v4264 = vpop.f32.mrf.mxu0
  %v4265 = vadd.f32 %v1007, %v4264
  %v4266 = vpop.f32.mrf.mxu0
  %v4267 = vadd.f32 %v1007, %v4266
  %4268 = vmatmul.bf16.gmra.mxu0 %v4152
  %v4269 = vpop.f32.mrf.mxu0
  %v4270 = vadd.f32 %v1007, %v4269
  %v4271 = vpop.f32.mrf.mxu0
  %v4272 = vadd.f32 %v1007, %v4271
  %4273 = vmatmul.bf16.gmra.mxu0 %v4153
  %v4274 = vpop.f32.mrf.mxu0
  %v4275 = vadd.f32 %v1007, %v4274
  %v4276 = vpop.f32.mrf.mxu0
  %v4277 = vadd.f32 %v1007, %v4276
  %4278 = vmatmul.bf16.gmra.mxu0 %v4154
  %v4279 = vpop.f32.mrf.mxu0
  %v4280 = vadd.f32 %v1007, %v4279
  %v4281 = vpop.f32.mrf.mxu0
  %v4282 = vadd.f32 %v1007, %v4281
  %4283 = vmatmul.bf16.gmra.mxu0 %v4155
  %v4284 = vpop.f32.mrf.mxu0
  %v4285 = vadd.f32 %v1007, %v4284
  %v4286 = vpop.f32.mrf.mxu0
  %v4287 = vadd.f32 %v1007, %v4286
  %4288 = vmatmul.bf16.gmra.mxu0 %v4156
  %v4289 = vpop.f32.mrf.mxu0
  %v4290 = vadd.f32 %v1007, %v4289
  %v4291 = vpop.f32.mrf.mxu0
  %v4292 = vadd.f32 %v1007, %v4291
  %4293 = vmatmul.bf16.gmra.mxu0 %v4157
  %v4294 = vpop.f32.mrf.mxu0
  %v4295 = vadd.f32 %v1007, %v4294
  %v4296 = vpop.f32.mrf.mxu0
  %v4297 = vadd.f32 %v1007, %v4296
  %4298 = vmatmul.bf16.gmra.mxu0 %v4158
  %v4299 = vpop.f32.mrf.mxu0
  %v4300 = vadd.f32 %v1007, %v4299
  %v4301 = vpop.f32.mrf.mxu0
  %v4302 = vadd.f32 %v1007, %v4301
  %4303 = vmatmul.bf16.gmra.mxu0 %v4159
  %v4304 = vpop.f32.mrf.mxu0
  %v4305 = vadd.f32 %v1007, %v4304
  %v4306 = vpop.f32.mrf.mxu0
  %v4307 = vadd.f32 %v1007, %v4306
  %4308 = vmatmul.bf16.gmra.mxu0 %v4160
  %v4309 = vpop.f32.mrf.mxu0
  %v4310 = vadd.f32 %v1007, %v4309
  %v4311 = vpop.f32.mrf.mxu0
  %v4312 = vadd.f32 %v1007, %v4311
  %4313 = vdwg.mxu0
  %v4314 = vtanh.pop %v4235
  %v4315 = vtanh.pop %v4237
  %v4316 = vtanh.pop %v4240
  %v4317 = vtanh.pop %v4242
  %v4318 = vtanh.pop %v4245
  %v4319 = vtanh.pop %v4247
  %v4320 = vtanh.pop %v4250
  %v4321 = vtanh.pop %v4252
  %v4322 = vtanh.pop %v4255
  %v4323 = vtanh.pop %v4257
  %v4324 = vtanh.pop %v4260
  %v4325 = vtanh.pop %v4262
  %v4326 = vtanh.pop %v4265
  %v4327 = vtanh.pop %v4267
  %v4328 = vtanh.pop %v4270
  %v4329 = vtanh.pop %v4272
  %v4330 = vtanh.pop %v4275
  %v4331 = vtanh.pop %v4277
  %v4332 = vtanh.pop %v4280
  %v4333 = vtanh.pop %v4282
  %v4334 = vtanh.pop %v4285
  %v4335 = vtanh.pop %v4287
  %v4336 = vtanh.pop %v4290
  %v4337 = vtanh.pop %v4292
  %v4338 = vtanh.pop %v4295
  %v4339 = vtanh.pop %v4297
  %v4340 = vtanh.pop %v4300
  %v4341 = vtanh.pop %v4302
  %v4342 = vtanh.pop %v4305
  %v4343 = vtanh.pop %v4307
  %v4344 = vtanh.pop %v4310
  %v4345 = vtanh.pop %v4312
  %v4346 = vadd.f32 %v4314, %v4113
  %v4347 = vadd.f32 %v4315, %v4114
  %v4348 = vadd.f32 %v4316, %v4115
  %v4349 = vadd.f32 %v4317, %v4116
  %v4350 = vadd.f32 %v4318, %v4117
  %v4351 = vadd.f32 %v4319, %v4118
  %v4352 = vadd.f32 %v4320, %v4119
  %v4353 = vadd.f32 %v4321, %v4120
  %v4354 = vadd.f32 %v4322, %v4121
  %v4355 = vadd.f32 %v4323, %v4122
  %v4356 = vadd.f32 %v4324, %v4123
  %v4357 = vadd.f32 %v4325, %v4124
  %v4358 = vadd.f32 %v4326, %v4125
  %v4359 = vadd.f32 %v4327, %v4126
  %v4360 = vadd.f32 %v4328, %v4127
  %v4361 = vadd.f32 %v4329, %v4128
  %v4362 = vadd.f32 %v4330, %v4129
  %v4363 = vadd.f32 %v4331, %v4130
  %v4364 = vadd.f32 %v4332, %v4131
  %v4365 = vadd.f32 %v4333, %v4132
  %v4366 = vadd.f32 %v4334, %v4133
  %v4367 = vadd.f32 %v4335, %v4134
  %v4368 = vadd.f32 %v4336, %v4135
  %v4369 = vadd.f32 %v4337, %v4136
  %v4370 = vadd.f32 %v4338, %v4137
  %v4371 = vadd.f32 %v4339, %v4138
  %v4372 = vadd.f32 %v4340, %v4139
  %v4373 = vadd.f32 %v4341, %v4140
  %v4374 = vadd.f32 %v4342, %v4141
  %v4375 = vadd.f32 %v4343, %v4142
  %v4376 = vadd.f32 %v4344, %v4143
  %v4377 = vadd.f32 %v4345, %v4144
  %v4378 = vpack.c.bf16 %v4347, %v4346
  %v4379 = vpack.c.bf16 %v4349, %v4348
  %v4380 = vpack.c.bf16 %v4351, %v4350
  %v4381 = vpack.c.bf16 %v4353, %v4352
  %v4382 = vpack.c.bf16 %v4355, %v4354
  %v4383 = vpack.c.bf16 %v4357, %v4356
  %v4384 = vpack.c.bf16 %v4359, %v4358
  %v4385 = vpack.c.bf16 %v4361, %v4360
  %v4386 = vpack.c.bf16 %v4363, %v4362
  %v4387 = vpack.c.bf16 %v4365, %v4364
  %v4388 = vpack.c.bf16 %v4367, %v4366
  %v4389 = vpack.c.bf16 %v4369, %v4368
  %v4390 = vpack.c.bf16 %v4371, %v4370
  %v4391 = vpack.c.bf16 %v4373, %v4372
  %v4392 = vpack.c.bf16 %v4375, %v4374
  %v4393 = vpack.c.bf16 %v4377, %v4376
  %v4394 = vld [vmem:[%s1225] sm:$0xf]
  %v4395 = vld [vmem:[%s1225 + $0x4] sm:$0xf]
  %v4396 = vld [vmem:[%s1225 + $0x8] sm:$0xf]
  %v4397 = vld [vmem:[%s1225 + $0xc] sm:$0xf]
  %v4398 = vld [vmem:[%s1225 + $0x10] sm:$0xf]
  %v4399 = vld [vmem:[%s1225 + $0x14] sm:$0xf]
  %v4400 = vld [vmem:[%s1225 + $0x18] sm:$0xf]
  %v4401 = vld [vmem:[%s1225 + $0x1c] sm:$0xf]
  %v4402 = vld [vmem:[%s1225 + $0x20] sm:$0xf]
  %v4403 = vld [vmem:[%s1225 + $0x24] sm:$0xf]
  %v4404 = vld [vmem:[%s1225 + $0x28] sm:$0xf]
  %v4405 = vld [vmem:[%s1225 + $0x2c] sm:$0xf]
  %v4406 = vld [vmem:[%s1225 + $0x30] sm:$0xf]
  %v4407 = vld [vmem:[%s1225 + $0x34] sm:$0xf]
  %v4408 = vld [vmem:[%s1225 + $0x38] sm:$0xf]
  %v4409 = vld [vmem:[%s1225 + $0x3c] sm:$0xf]
  %v4426 = vunpack.c.l.b16 %v4394
  %v4427 = vunpack.c.l.b16 %v4395
  %v4428 = vunpack.c.l.b16 %v4396
  %v4429 = vunpack.c.l.b16 %v4397
  %v4430 = vunpack.c.l.b16 %v4398
  %v4431 = vunpack.c.l.b16 %v4399
  %v4432 = vunpack.c.l.b16 %v4400
  %v4433 = vunpack.c.l.b16 %v4401
  %v4434 = vunpack.c.l.b16 %v4402
  %v4435 = vunpack.c.l.b16 %v4403
  %v4436 = vunpack.c.l.b16 %v4404
  %v4437 = vunpack.c.l.b16 %v4405
  %v4438 = vunpack.c.l.b16 %v4406
  %v4439 = vunpack.c.l.b16 %v4407
  %v4440 = vunpack.c.l.b16 %v4408
  %v4441 = vunpack.c.l.b16 %v4409
  %v4442 = vpack.c.b16 %v4427, %v4426
  %v4443 = vpack.c.b16 %v4429, %v4428
  %v4444 = vpack.c.b16 %v4431, %v4430
  %v4445 = vpack.c.b16 %v4433, %v4432
  %v4446 = vpack.c.b16 %v4435, %v4434
  %v4447 = vpack.c.b16 %v4437, %v4436
  %v4448 = vpack.c.b16 %v4439, %v4438
  %v4449 = vpack.c.b16 %v4441, %v4440
  %4458 = vmatpush.bf16.msra.mxu0 %v4449
  %4459 = vmatpush.bf16.msra.mxu0 %v4448
  %4460 = vmatpush.bf16.msra.mxu0 %v4447
  %4461 = vmatpush.bf16.msra.mxu0 %v4446
  %4462 = vmatpush.bf16.msra.mxu0 %v4445
  %4463 = vmatpush.bf16.msra.mxu0 %v4444
  %4464 = vmatpush.bf16.msra.mxu0 %v4443
  %4465 = vmatpush.bf16.msra.mxu0 %v4442
  %4466 = vmatmul.bf16.gmra.mxu0 %v4378
  %v4467 = vpop.f32.mrf.mxu0
  %v4468 = vadd.f32 %v1242, %v4467
  %v4469 = vpop.f32.mrf.mxu0
  %v4470 = vadd.f32 %v1242, %v4469
  %4471 = vmatmul.bf16.gmra.mxu0 %v4379
  %v4472 = vpop.f32.mrf.mxu0
  %v4473 = vadd.f32 %v1242, %v4472
  %v4474 = vpop.f32.mrf.mxu0
  %v4475 = vadd.f32 %v1242, %v4474
  %4476 = vmatmul.bf16.gmra.mxu0 %v4380
  %v4477 = vpop.f32.mrf.mxu0
  %v4478 = vadd.f32 %v1242, %v4477
  %v4479 = vpop.f32.mrf.mxu0
  %v4480 = vadd.f32 %v1242, %v4479
  %4481 = vmatmul.bf16.gmra.mxu0 %v4381
  %v4482 = vpop.f32.mrf.mxu0
  %v4483 = vadd.f32 %v1242, %v4482
  %v4484 = vpop.f32.mrf.mxu0
  %v4485 = vadd.f32 %v1242, %v4484
  %4486 = vmatmul.bf16.gmra.mxu0 %v4382
  %v4487 = vpop.f32.mrf.mxu0
  %v4488 = vadd.f32 %v1242, %v4487
  %v4489 = vpop.f32.mrf.mxu0
  %v4490 = vadd.f32 %v1242, %v4489
  %4491 = vmatmul.bf16.gmra.mxu0 %v4383
  %v4492 = vpop.f32.mrf.mxu0
  %v4493 = vadd.f32 %v1242, %v4492
  %v4494 = vpop.f32.mrf.mxu0
  %v4495 = vadd.f32 %v1242, %v4494
  %4496 = vmatmul.bf16.gmra.mxu0 %v4384
  %v4497 = vpop.f32.mrf.mxu0
  %v4498 = vadd.f32 %v1242, %v4497
  %v4499 = vpop.f32.mrf.mxu0
  %v4500 = vadd.f32 %v1242, %v4499
  %4501 = vmatmul.bf16.gmra.mxu0 %v4385
  %v4502 = vpop.f32.mrf.mxu0
  %v4503 = vadd.f32 %v1242, %v4502
  %v4504 = vpop.f32.mrf.mxu0
  %v4505 = vadd.f32 %v1242, %v4504
  %4506 = vmatmul.bf16.gmra.mxu0 %v4386
  %v4507 = vpop.f32.mrf.mxu0
  %v4508 = vadd.f32 %v1242, %v4507
  %v4509 = vpop.f32.mrf.mxu0
  %v4510 = vadd.f32 %v1242, %v4509
  %4511 = vmatmul.bf16.gmra.mxu0 %v4387
  %v4512 = vpop.f32.mrf.mxu0
  %v4513 = vadd.f32 %v1242, %v4512
  %v4514 = vpop.f32.mrf.mxu0
  %v4515 = vadd.f32 %v1242, %v4514
  %4516 = vmatmul.bf16.gmra.mxu0 %v4388
  %v4517 = vpop.f32.mrf.mxu0
  %v4518 = vadd.f32 %v1242, %v4517
  %v4519 = vpop.f32.mrf.mxu0
  %v4520 = vadd.f32 %v1242, %v4519
  %4521 = vmatmul.bf16.gmra.mxu0 %v4389
  %v4522 = vpop.f32.mrf.mxu0
  %v4523 = vadd.f32 %v1242, %v4522
  %v4524 = vpop.f32.mrf.mxu0
  %v4525 = vadd.f32 %v1242, %v4524
  %4526 = vmatmul.bf16.gmra.mxu0 %v4390
  %v4527 = vpop.f32.mrf.mxu0
  %v4528 = vadd.f32 %v1242, %v4527
  %v4529 = vpop.f32.mrf.mxu0
  %v4530 = vadd.f32 %v1242, %v4529
  %4531 = vmatmul.bf16.gmra.mxu0 %v4391
  %v4532 = vpop.f32.mrf.mxu0
  %v4533 = vadd.f32 %v1242, %v4532
  %v4534 = vpop.f32.mrf.mxu0
  %v4535 = vadd.f32 %v1242, %v4534
  %4536 = vmatmul.bf16.gmra.mxu0 %v4392
  %v4537 = vpop.f32.mrf.mxu0
  %v4538 = vadd.f32 %v1242, %v4537
  %v4539 = vpop.f32.mrf.mxu0
  %v4540 = vadd.f32 %v1242, %v4539
  %4541 = vmatmul.bf16.gmra.mxu0 %v4393
  %v4542 = vpop.f32.mrf.mxu0
  %v4543 = vadd.f32 %v1242, %v4542
  %v4544 = vpop.f32.mrf.mxu0
  %v4545 = vadd.f32 %v1242, %v4544
  %4546 = vdwg.mxu0
  %v4547 = vtanh.pop %v4468
  %v4548 = vtanh.pop %v4470
  %v4549 = vtanh.pop %v4473
  %v4550 = vtanh.pop %v4475
  %v4551 = vtanh.pop %v4478
  %v4552 = vtanh.pop %v4480
  %v4553 = vtanh.pop %v4483
  %v4554 = vtanh.pop %v4485
  %v4555 = vtanh.pop %v4488
  %v4556 = vtanh.pop %v4490
  %v4557 = vtanh.pop %v4493
  %v4558 = vtanh.pop %v4495
  %v4559 = vtanh.pop %v4498
  %v4560 = vtanh.pop %v4500
  %v4561 = vtanh.pop %v4503
  %v4562 = vtanh.pop %v4505
  %v4563 = vtanh.pop %v4508
  %v4564 = vtanh.pop %v4510
  %v4565 = vtanh.pop %v4513
  %v4566 = vtanh.pop %v4515
  %v4567 = vtanh.pop %v4518
  %v4568 = vtanh.pop %v4520
  %v4569 = vtanh.pop %v4523
  %v4570 = vtanh.pop %v4525
  %v4571 = vtanh.pop %v4528
  %v4572 = vtanh.pop %v4530
  %v4573 = vtanh.pop %v4533
  %v4574 = vtanh.pop %v4535
  %v4575 = vtanh.pop %v4538
  %v4576 = vtanh.pop %v4540
  %v4577 = vtanh.pop %v4543
  %v4578 = vtanh.pop %v4545
  %v4579 = vpack.c.bf16 %v4548, %v4547
  %v4580 = vpack.c.bf16 %v4550, %v4549
  %v4581 = vpack.c.bf16 %v4552, %v4551
  %v4582 = vpack.c.bf16 %v4554, %v4553
  %v4583 = vpack.c.bf16 %v4556, %v4555
  %v4584 = vpack.c.bf16 %v4558, %v4557
  %v4585 = vpack.c.bf16 %v4560, %v4559
  %v4586 = vpack.c.bf16 %v4562, %v4561
  %v4587 = vpack.c.bf16 %v4564, %v4563
  %v4588 = vpack.c.bf16 %v4566, %v4565
  %v4589 = vpack.c.bf16 %v4568, %v4567
  %v4590 = vpack.c.bf16 %v4570, %v4569
  %v4591 = vpack.c.bf16 %v4572, %v4571
  %v4592 = vpack.c.bf16 %v4574, %v4573
  %v4593 = vpack.c.bf16 %v4576, %v4575
  %v4594 = vpack.c.bf16 %v4578, %v4577
  %v4595 = vld [vmem:[%s4] sm:$0xf]
  %v4596 = vld [vmem:[%s4 + $0x4] sm:$0xf]
  %v4597 = vld [vmem:[%s4 + $0x8] sm:$0xf]
  %v4598 = vld [vmem:[%s4 + $0xc] sm:$0xf]
  %v4599 = vld [vmem:[%s4 + $0x10] sm:$0xf]
  %v4600 = vld [vmem:[%s4 + $0x14] sm:$0xf]
  %v4601 = vld [vmem:[%s4 + $0x18] sm:$0xf]
  %v4602 = vld [vmem:[%s4 + $0x1c] sm:$0xf]
  %v4603 = vld [vmem:[%s4 + $0x20] sm:$0xf]
  %v4604 = vld [vmem:[%s4 + $0x24] sm:$0xf]
  %v4605 = vld [vmem:[%s4 + $0x28] sm:$0xf]
  %v4606 = vld [vmem:[%s4 + $0x2c] sm:$0xf]
  %v4607 = vld [vmem:[%s4 + $0x30] sm:$0xf]
  %v4608 = vld [vmem:[%s4 + $0x34] sm:$0xf]
  %v4609 = vld [vmem:[%s4 + $0x38] sm:$0xf]
  %v4610 = vld [vmem:[%s4 + $0x3c] sm:$0xf]
  %v4627 = vunpack.c.l.b16 %v4595
  %v4628 = vunpack.c.l.b16 %v4596
  %v4629 = vunpack.c.l.b16 %v4597
  %v4630 = vunpack.c.l.b16 %v4598
  %v4631 = vunpack.c.l.b16 %v4599
  %v4632 = vunpack.c.l.b16 %v4600
  %v4633 = vunpack.c.l.b16 %v4601
  %v4634 = vunpack.c.l.b16 %v4602
  %v4635 = vunpack.c.l.b16 %v4603
  %v4636 = vunpack.c.l.b16 %v4604
  %v4637 = vunpack.c.l.b16 %v4605
  %v4638 = vunpack.c.l.b16 %v4606
  %v4639 = vunpack.c.l.b16 %v4607
  %v4640 = vunpack.c.l.b16 %v4608
  %v4641 = vunpack.c.l.b16 %v4609
  %v4642 = vunpack.c.l.b16 %v4610
  %v4643 = vpack.c.b16 %v4628, %v4627
  %v4644 = vpack.c.b16 %v4630, %v4629
  %v4645 = vpack.c.b16 %v4632, %v4631
  %v4646 = vpack.c.b16 %v4634, %v4633
  %v4647 = vpack.c.b16 %v4636, %v4635
  %v4648 = vpack.c.b16 %v4638, %v4637
  %v4649 = vpack.c.b16 %v4640, %v4639
  %v4650 = vpack.c.b16 %v4642, %v4641
  %4659 = vmatpush.bf16.msra.mxu0 %v4650
  %4660 = vmatpush.bf16.msra.mxu0 %v4649
  %4661 = vmatpush.bf16.msra.mxu0 %v4648
  %4662 = vmatpush.bf16.msra.mxu0 %v4647
  %4663 = vmatpush.bf16.msra.mxu0 %v4646
  %4664 = vmatpush.bf16.msra.mxu0 %v4645
  %4665 = vmatpush.bf16.msra.mxu0 %v4644
  %4666 = vmatpush.bf16.msra.mxu0 %v4643
  %4667 = vmatmul.bf16.gmra.mxu0 %v4579
  %v4668 = vpop.f32.mrf.mxu0
  %v4669 = vadd.f32 %v1444, %v4668
  %v4670 = vpop.f32.mrf.mxu0
  %v4671 = vadd.f32 %v1444, %v4670
  %4672 = vmatmul.bf16.gmra.mxu0 %v4580
  %v4673 = vpop.f32.mrf.mxu0
  %v4674 = vadd.f32 %v1444, %v4673
  %v4675 = vpop.f32.mrf.mxu0
  %v4676 = vadd.f32 %v1444, %v4675
  %4677 = vmatmul.bf16.gmra.mxu0 %v4581
  %v4678 = vpop.f32.mrf.mxu0
  %v4679 = vadd.f32 %v1444, %v4678
  %v4680 = vpop.f32.mrf.mxu0
  %v4681 = vadd.f32 %v1444, %v4680
  %4682 = vmatmul.bf16.gmra.mxu0 %v4582
  %v4683 = vpop.f32.mrf.mxu0
  %v4684 = vadd.f32 %v1444, %v4683
  %v4685 = vpop.f32.mrf.mxu0
  %v4686 = vadd.f32 %v1444, %v4685
  %4687 = vmatmul.bf16.gmra.mxu0 %v4583
  %v4688 = vpop.f32.mrf.mxu0
  %v4689 = vadd.f32 %v1444, %v4688
  %v4690 = vpop.f32.mrf.mxu0
  %v4691 = vadd.f32 %v1444, %v4690
  %4692 = vmatmul.bf16.gmra.mxu0 %v4584
  %v4693 = vpop.f32.mrf.mxu0
  %v4694 = vadd.f32 %v1444, %v4693
  %v4695 = vpop.f32.mrf.mxu0
  %v4696 = vadd.f32 %v1444, %v4695
  %4697 = vmatmul.bf16.gmra.mxu0 %v4585
  %v4698 = vpop.f32.mrf.mxu0
  %v4699 = vadd.f32 %v1444, %v4698
  %v4700 = vpop.f32.mrf.mxu0
  %v4701 = vadd.f32 %v1444, %v4700
  %4702 = vmatmul.bf16.gmra.mxu0 %v4586
  %v4703 = vpop.f32.mrf.mxu0
  %v4704 = vadd.f32 %v1444, %v4703
  %v4705 = vpop.f32.mrf.mxu0
  %v4706 = vadd.f32 %v1444, %v4705
  %4707 = vmatmul.bf16.gmra.mxu0 %v4587
  %v4708 = vpop.f32.mrf.mxu0
  %v4709 = vadd.f32 %v1444, %v4708
  %v4710 = vpop.f32.mrf.mxu0
  %v4711 = vadd.f32 %v1444, %v4710
  %4712 = vmatmul.bf16.gmra.mxu0 %v4588
  %v4713 = vpop.f32.mrf.mxu0
  %v4714 = vadd.f32 %v1444, %v4713
  %v4715 = vpop.f32.mrf.mxu0
  %v4716 = vadd.f32 %v1444, %v4715
  %4717 = vmatmul.bf16.gmra.mxu0 %v4589
  %v4718 = vpop.f32.mrf.mxu0
  %v4719 = vadd.f32 %v1444, %v4718
  %v4720 = vpop.f32.mrf.mxu0
  %v4721 = vadd.f32 %v1444, %v4720
  %4722 = vmatmul.bf16.gmra.mxu0 %v4590
  %v4723 = vpop.f32.mrf.mxu0
  %v4724 = vadd.f32 %v1444, %v4723
  %v4725 = vpop.f32.mrf.mxu0
  %v4726 = vadd.f32 %v1444, %v4725
  %4727 = vmatmul.bf16.gmra.mxu0 %v4591
  %v4728 = vpop.f32.mrf.mxu0
  %v4729 = vadd.f32 %v1444, %v4728
  %v4730 = vpop.f32.mrf.mxu0
  %v4731 = vadd.f32 %v1444, %v4730
  %4732 = vmatmul.bf16.gmra.mxu0 %v4592
  %v4733 = vpop.f32.mrf.mxu0
  %v4734 = vadd.f32 %v1444, %v4733
  %v4735 = vpop.f32.mrf.mxu0
  %v4736 = vadd.f32 %v1444, %v4735
  %4737 = vmatmul.bf16.gmra.mxu0 %v4593
  %v4738 = vpop.f32.mrf.mxu0
  %v4739 = vadd.f32 %v1444, %v4738
  %v4740 = vpop.f32.mrf.mxu0
  %v4741 = vadd.f32 %v1444, %v4740
  %4742 = vmatmul.bf16.gmra.mxu0 %v4594
  %v4743 = vpop.f32.mrf.mxu0
  %v4744 = vadd.f32 %v1444, %v4743
  %v4745 = vpop.f32.mrf.mxu0
  %v4746 = vadd.f32 %v1444, %v4745
  %4747 = vdwg.mxu0
  %s4748 = scalar_lea.vmem %s5, 512
  %4749 = vst.msk [vmem:[%s4748] sm:$0xff] %vm1582, %v4669
  %4750 = vst.msk [vmem:[%s4748 + $0x8] sm:$0xff] %vm1582, %v4671
  %4751 = vst.msk [vmem:[%s4748 + $0x10] sm:$0xff] %vm1582, %v4674
  %4752 = vst.msk [vmem:[%s4748 + $0x18] sm:$0xff] %vm1582, %v4676
  %4753 = vst.msk [vmem:[%s4748 + $0x20] sm:$0xff] %vm1582, %v4679
  %4754 = vst.msk [vmem:[%s4748 + $0x28] sm:$0xff] %vm1582, %v4681
  %4755 = vst.msk [vmem:[%s4748 + $0x30] sm:$0xff] %vm1582, %v4684
  %4756 = vst.msk [vmem:[%s4748 + $0x38] sm:$0xff] %vm1582, %v4686
  %4757 = vst.msk [vmem:[%s4748 + $0x40] sm:$0xff] %vm1582, %v4689
  %4758 = vst.msk [vmem:[%s4748 + $0x48] sm:$0xff] %vm1582, %v4691
  %4759 = vst.msk [vmem:[%s4748 + $0x50] sm:$0xff] %vm1582, %v4694
  %4760 = vst.msk [vmem:[%s4748 + $0x58] sm:$0xff] %vm1582, %v4696
  %4761 = vst.msk [vmem:[%s4748 + $0x60] sm:$0xff] %vm1582, %v4699
  %4762 = vst.msk [vmem:[%s4748 + $0x68] sm:$0xff] %vm1582, %v4701
  %4763 = vst.msk [vmem:[%s4748 + $0x70] sm:$0xff] %vm1582, %v4704
  %4764 = vst.msk [vmem:[%s4748 + $0x78] sm:$0xff] %vm1582, %v4706
  %4765 = vst.msk [vmem:[%s4748 + $0x80] sm:$0xff] %vm1582, %v4709
  %4766 = vst.msk [vmem:[%s4748 + $0x88] sm:$0xff] %vm1582, %v4711
  %4767 = vst.msk [vmem:[%s4748 + $0x90] sm:$0xff] %vm1582, %v4714
  %4768 = vst.msk [vmem:[%s4748 + $0x98] sm:$0xff] %vm1582, %v4716
  %4769 = vst.msk [vmem:[%s4748 + $0xa0] sm:$0xff] %vm1582, %v4719
  %4770 = vst.msk [vmem:[%s4748 + $0xa8] sm:$0xff] %vm1582, %v4721
  %4771 = vst.msk [vmem:[%s4748 + $0xb0] sm:$0xff] %vm1582, %v4724
  %4772 = vst.msk [vmem:[%s4748 + $0xb8] sm:$0xff] %vm1582, %v4726
  %4773 = vst.msk [vmem:[%s4748 + $0xc0] sm:$0xff] %vm1582, %v4729
  %4774 = vst.msk [vmem:[%s4748 + $0xc8] sm:$0xff] %vm1582, %v4731
  %4775 = vst.msk [vmem:[%s4748 + $0xd0] sm:$0xff] %vm1582, %v4734
  %4776 = vst.msk [vmem:[%s4748 + $0xd8] sm:$0xff] %vm1582, %v4736
  %4777 = vst.msk [vmem:[%s4748 + $0xe0] sm:$0xff] %vm1582, %v4739
  %4778 = vst.msk [vmem:[%s4748 + $0xe8] sm:$0xff] %vm1582, %v4741
  %4779 = vst.msk [vmem:[%s4748 + $0xf0] sm:$0xff] %vm1582, %v4744
  %4780 = vst.msk [vmem:[%s4748 + $0xf8] sm:$0xff] %vm1582, %v4746
  %s4781 = scalar_lea.vmem %s0, 768
  %v4782 = vld [vmem:[%s4781] sm:$0xff]
  %v4783 = vld [vmem:[%s4781 + $0x8] sm:$0xff]
  %v4784 = vld [vmem:[%s4781 + $0x10] sm:$0xff]
  %v4785 = vld [vmem:[%s4781 + $0x18] sm:$0xff]
  %v4786 = vld [vmem:[%s4781 + $0x20] sm:$0xff]
  %v4787 = vld [vmem:[%s4781 + $0x28] sm:$0xff]
  %v4788 = vld [vmem:[%s4781 + $0x30] sm:$0xff]
  %v4789 = vld [vmem:[%s4781 + $0x38] sm:$0xff]
  %v4790 = vld [vmem:[%s4781 + $0x40] sm:$0xff]
  %v4791 = vld [vmem:[%s4781 + $0x48] sm:$0xff]
  %v4792 = vld [vmem:[%s4781 + $0x50] sm:$0xff]
  %v4793 = vld [vmem:[%s4781 + $0x58] sm:$0xff]
  %v4794 = vld [vmem:[%s4781 + $0x60] sm:$0xff]
  %v4795 = vld [vmem:[%s4781 + $0x68] sm:$0xff]
  %v4796 = vld [vmem:[%s4781 + $0x70] sm:$0xff]
  %v4797 = vld [vmem:[%s4781 + $0x78] sm:$0xff]
  %v4798 = vld [vmem:[%s4781 + $0x80] sm:$0xff]
  %v4799 = vld [vmem:[%s4781 + $0x88] sm:$0xff]
  %v4800 = vld [vmem:[%s4781 + $0x90] sm:$0xff]
  %v4801 = vld [vmem:[%s4781 + $0x98] sm:$0xff]
  %v4802 = vld [vmem:[%s4781 + $0xa0] sm:$0xff]
  %v4803 = vld [vmem:[%s4781 + $0xa8] sm:$0xff]
  %v4804 = vld [vmem:[%s4781 + $0xb0] sm:$0xff]
  %v4805 = vld [vmem:[%s4781 + $0xb8] sm:$0xff]
  %v4806 = vld [vmem:[%s4781 + $0xc0] sm:$0xff]
  %v4807 = vld [vmem:[%s4781 + $0xc8] sm:$0xff]
  %v4808 = vld [vmem:[%s4781 + $0xd0] sm:$0xff]
  %v4809 = vld [vmem:[%s4781 + $0xd8] sm:$0xff]
  %v4810 = vld [vmem:[%s4781 + $0xe0] sm:$0xff]
  %v4811 = vld [vmem:[%s4781 + $0xe8] sm:$0xff]
  %v4812 = vld [vmem:[%s4781 + $0xf0] sm:$0xff]
  %v4813 = vld [vmem:[%s4781 + $0xf8] sm:$0xff]
  %4815 = vset.pattern.permute.xlu0 0
  %4816 = vperm.xlu0 %4815, %v4782
  %v4817 = vpop.permute.xlu0 %4816
  %4820 = vset.pattern.permute.xlu0 0
  %4821 = vperm.xlu0 %4820, %v4783
  %v4822 = vpop.permute.xlu0 %4821
  %4825 = vset.pattern.permute.xlu0 0
  %4826 = vperm.xlu0 %4825, %v4784
  %v4827 = vpop.permute.xlu0 %4826
  %4830 = vset.pattern.permute.xlu0 0
  %4831 = vperm.xlu0 %4830, %v4785
  %v4832 = vpop.permute.xlu0 %4831
  %4835 = vset.pattern.permute.xlu0 0
  %4836 = vperm.xlu0 %4835, %v4786
  %v4837 = vpop.permute.xlu0 %4836
  %4840 = vset.pattern.permute.xlu0 0
  %4841 = vperm.xlu0 %4840, %v4787
  %v4842 = vpop.permute.xlu0 %4841
  %4845 = vset.pattern.permute.xlu0 0
  %4846 = vperm.xlu0 %4845, %v4788
  %v4847 = vpop.permute.xlu0 %4846
  %4850 = vset.pattern.permute.xlu0 0
  %4851 = vperm.xlu0 %4850, %v4789
  %v4852 = vpop.permute.xlu0 %4851
  %4855 = vset.pattern.permute.xlu0 0
  %4856 = vperm.xlu0 %4855, %v4790
  %v4857 = vpop.permute.xlu0 %4856
  %4860 = vset.pattern.permute.xlu0 0
  %4861 = vperm.xlu0 %4860, %v4791
  %v4862 = vpop.permute.xlu0 %4861
  %4865 = vset.pattern.permute.xlu0 0
  %4866 = vperm.xlu0 %4865, %v4792
  %v4867 = vpop.permute.xlu0 %4866
  %4870 = vset.pattern.permute.xlu0 0
  %4871 = vperm.xlu0 %4870, %v4793
  %v4872 = vpop.permute.xlu0 %4871
  %4875 = vset.pattern.permute.xlu0 0
  %4876 = vperm.xlu0 %4875, %v4794
  %v4877 = vpop.permute.xlu0 %4876
  %4880 = vset.pattern.permute.xlu0 0
  %4881 = vperm.xlu0 %4880, %v4795
  %v4882 = vpop.permute.xlu0 %4881
  %4885 = vset.pattern.permute.xlu0 0
  %4886 = vperm.xlu0 %4885, %v4796
  %v4887 = vpop.permute.xlu0 %4886
  %4890 = vset.pattern.permute.xlu0 0
  %4891 = vperm.xlu0 %4890, %v4797
  %v4892 = vpop.permute.xlu0 %4891
  %4895 = vset.pattern.permute.xlu0 0
  %4896 = vperm.xlu0 %4895, %v4798
  %v4897 = vpop.permute.xlu0 %4896
  %4900 = vset.pattern.permute.xlu0 0
  %4901 = vperm.xlu0 %4900, %v4799
  %v4902 = vpop.permute.xlu0 %4901
  %4905 = vset.pattern.permute.xlu0 0
  %4906 = vperm.xlu0 %4905, %v4800
  %v4907 = vpop.permute.xlu0 %4906
  %4910 = vset.pattern.permute.xlu0 0
  %4911 = vperm.xlu0 %4910, %v4801
  %v4912 = vpop.permute.xlu0 %4911
  %4915 = vset.pattern.permute.xlu0 0
  %4916 = vperm.xlu0 %4915, %v4802
  %v4917 = vpop.permute.xlu0 %4916
  %4920 = vset.pattern.permute.xlu0 0
  %4921 = vperm.xlu0 %4920, %v4803
  %v4922 = vpop.permute.xlu0 %4921
  %4925 = vset.pattern.permute.xlu0 0
  %4926 = vperm.xlu0 %4925, %v4804
  %v4927 = vpop.permute.xlu0 %4926
  %4930 = vset.pattern.permute.xlu0 0
  %4931 = vperm.xlu0 %4930, %v4805
  %v4932 = vpop.permute.xlu0 %4931
  %4935 = vset.pattern.permute.xlu0 0
  %4936 = vperm.xlu0 %4935, %v4806
  %v4937 = vpop.permute.xlu0 %4936
  %4940 = vset.pattern.permute.xlu0 0
  %4941 = vperm.xlu0 %4940, %v4807
  %v4942 = vpop.permute.xlu0 %4941
  %4945 = vset.pattern.permute.xlu0 0
  %4946 = vperm.xlu0 %4945, %v4808
  %v4947 = vpop.permute.xlu0 %4946
  %4950 = vset.pattern.permute.xlu0 0
  %4951 = vperm.xlu0 %4950, %v4809
  %v4952 = vpop.permute.xlu0 %4951
  %4955 = vset.pattern.permute.xlu0 0
  %4956 = vperm.xlu0 %4955, %v4810
  %v4957 = vpop.permute.xlu0 %4956
  %4960 = vset.pattern.permute.xlu0 0
  %4961 = vperm.xlu0 %4960, %v4811
  %v4962 = vpop.permute.xlu0 %4961
  %4965 = vset.pattern.permute.xlu0 0
  %4966 = vperm.xlu0 %4965, %v4812
  %v4967 = vpop.permute.xlu0 %4966
  %4970 = vset.pattern.permute.xlu0 0
  %4971 = vperm.xlu0 %4970, %v4813
  %v4972 = vpop.permute.xlu0 %4971
  %v4974 = vmul.f32 %v4817, %v214
  %v4975 = vmul.f32 %v4822, %v214
  %v4976 = vmul.f32 %v4827, %v214
  %v4977 = vmul.f32 %v4832, %v214
  %v4978 = vmul.f32 %v4837, %v214
  %v4979 = vmul.f32 %v4842, %v214
  %v4980 = vmul.f32 %v4847, %v214
  %v4981 = vmul.f32 %v4852, %v214
  %v4982 = vmul.f32 %v4857, %v214
  %v4983 = vmul.f32 %v4862, %v214
  %v4984 = vmul.f32 %v4867, %v214
  %v4985 = vmul.f32 %v4872, %v214
  %v4986 = vmul.f32 %v4877, %v214
  %v4987 = vmul.f32 %v4882, %v214
  %v4988 = vmul.f32 %v4887, %v214
  %v4989 = vmul.f32 %v4892, %v214
  %v4990 = vmul.f32 %v4897, %v214
  %v4991 = vmul.f32 %v4902, %v214
  %v4992 = vmul.f32 %v4907, %v214
  %v4993 = vmul.f32 %v4912, %v214
  %v4994 = vmul.f32 %v4917, %v214
  %v4995 = vmul.f32 %v4922, %v214
  %v4996 = vmul.f32 %v4927, %v214
  %v4997 = vmul.f32 %v4932, %v214
  %v4998 = vmul.f32 %v4937, %v214
  %v4999 = vmul.f32 %v4942, %v214
  %v5000 = vmul.f32 %v4947, %v214
  %v5001 = vmul.f32 %v4952, %v214
  %v5002 = vmul.f32 %v4957, %v214
  %v5003 = vmul.f32 %v4962, %v214
  %v5004 = vmul.f32 %v4967, %v214
  %v5005 = vmul.f32 %v4972, %v214
  %5006 = vset.pattern.permute.xlu0 1
  %5007 = vperm.xlu0 %5006, %v4782
  %v5008 = vpop.permute.xlu0 %5007
  %5010 = vset.pattern.permute.xlu0 1
  %5011 = vperm.xlu0 %5010, %v4783
  %v5012 = vpop.permute.xlu0 %5011
  %5014 = vset.pattern.permute.xlu0 1
  %5015 = vperm.xlu0 %5014, %v4784
  %v5016 = vpop.permute.xlu0 %5015
  %5018 = vset.pattern.permute.xlu0 1
  %5019 = vperm.xlu0 %5018, %v4785
  %v5020 = vpop.permute.xlu0 %5019
  %5022 = vset.pattern.permute.xlu0 1
  %5023 = vperm.xlu0 %5022, %v4786
  %v5024 = vpop.permute.xlu0 %5023
  %5026 = vset.pattern.permute.xlu0 1
  %5027 = vperm.xlu0 %5026, %v4787
  %v5028 = vpop.permute.xlu0 %5027
  %5030 = vset.pattern.permute.xlu0 1
  %5031 = vperm.xlu0 %5030, %v4788
  %v5032 = vpop.permute.xlu0 %5031
  %5034 = vset.pattern.permute.xlu0 1
  %5035 = vperm.xlu0 %5034, %v4789
  %v5036 = vpop.permute.xlu0 %5035
  %5038 = vset.pattern.permute.xlu0 1
  %5039 = vperm.xlu0 %5038, %v4790
  %v5040 = vpop.permute.xlu0 %5039
  %5042 = vset.pattern.permute.xlu0 1
  %5043 = vperm.xlu0 %5042, %v4791
  %v5044 = vpop.permute.xlu0 %5043
  %5046 = vset.pattern.permute.xlu0 1
  %5047 = vperm.xlu0 %5046, %v4792
  %v5048 = vpop.permute.xlu0 %5047
  %5050 = vset.pattern.permute.xlu0 1
  %5051 = vperm.xlu0 %5050, %v4793
  %v5052 = vpop.permute.xlu0 %5051
  %5054 = vset.pattern.permute.xlu0 1
  %5055 = vperm.xlu0 %5054, %v4794
  %v5056 = vpop.permute.xlu0 %5055
  %5058 = vset.pattern.permute.xlu0 1
  %5059 = vperm.xlu0 %5058, %v4795
  %v5060 = vpop.permute.xlu0 %5059
  %5062 = vset.pattern.permute.xlu0 1
  %5063 = vperm.xlu0 %5062, %v4796
  %v5064 = vpop.permute.xlu0 %5063
  %5066 = vset.pattern.permute.xlu0 1
  %5067 = vperm.xlu0 %5066, %v4797
  %v5068 = vpop.permute.xlu0 %5067
  %5070 = vset.pattern.permute.xlu0 1
  %5071 = vperm.xlu0 %5070, %v4798
  %v5072 = vpop.permute.xlu0 %5071
  %5074 = vset.pattern.permute.xlu0 1
  %5075 = vperm.xlu0 %5074, %v4799
  %v5076 = vpop.permute.xlu0 %5075
  %5078 = vset.pattern.permute.xlu0 1
  %5079 = vperm.xlu0 %5078, %v4800
  %v5080 = vpop.permute.xlu0 %5079
  %5082 = vset.pattern.permute.xlu0 1
  %5083 = vperm.xlu0 %5082, %v4801
  %v5084 = vpop.permute.xlu0 %5083
  %5086 = vset.pattern.permute.xlu0 1
  %5087 = vperm.xlu0 %5086, %v4802
  %v5088 = vpop.permute.xlu0 %5087
  %5090 = vset.pattern.permute.xlu0 1
  %5091 = vperm.xlu0 %5090, %v4803
  %v5092 = vpop.permute.xlu0 %5091
  %5094 = vset.pattern.permute.xlu0 1
  %5095 = vperm.xlu0 %5094, %v4804
  %v5096 = vpop.permute.xlu0 %5095
  %5098 = vset.pattern.permute.xlu0 1
  %5099 = vperm.xlu0 %5098, %v4805
  %v5100 = vpop.permute.xlu0 %5099
  %5102 = vset.pattern.permute.xlu0 1
  %5103 = vperm.xlu0 %5102, %v4806
  %v5104 = vpop.permute.xlu0 %5103
  %5106 = vset.pattern.permute.xlu0 1
  %5107 = vperm.xlu0 %5106, %v4807
  %v5108 = vpop.permute.xlu0 %5107
  %5110 = vset.pattern.permute.xlu0 1
  %5111 = vperm.xlu0 %5110, %v4808
  %v5112 = vpop.permute.xlu0 %5111
  %5114 = vset.pattern.permute.xlu0 1
  %5115 = vperm.xlu0 %5114, %v4809
  %v5116 = vpop.permute.xlu0 %5115
  %5118 = vset.pattern.permute.xlu0 1
  %5119 = vperm.xlu0 %5118, %v4810
  %v5120 = vpop.permute.xlu0 %5119
  %5122 = vset.pattern.permute.xlu0 1
  %5123 = vperm.xlu0 %5122, %v4811
  %v5124 = vpop.permute.xlu0 %5123
  %5126 = vset.pattern.permute.xlu0 1
  %5127 = vperm.xlu0 %5126, %v4812
  %v5128 = vpop.permute.xlu0 %5127
  %5130 = vset.pattern.permute.xlu0 1
  %5131 = vperm.xlu0 %5130, %v4813
  %v5132 = vpop.permute.xlu0 %5131
  %v5134 = vmul.f32 %v5008, %v375
  %v5135 = vmul.f32 %v5012, %v375
  %v5136 = vmul.f32 %v5016, %v375
  %v5137 = vmul.f32 %v5020, %v375
  %v5138 = vmul.f32 %v5024, %v375
  %v5139 = vmul.f32 %v5028, %v375
  %v5140 = vmul.f32 %v5032, %v375
  %v5141 = vmul.f32 %v5036, %v375
  %v5142 = vmul.f32 %v5040, %v375
  %v5143 = vmul.f32 %v5044, %v375
  %v5144 = vmul.f32 %v5048, %v375
  %v5145 = vmul.f32 %v5052, %v375
  %v5146 = vmul.f32 %v5056, %v375
  %v5147 = vmul.f32 %v5060, %v375
  %v5148 = vmul.f32 %v5064, %v375
  %v5149 = vmul.f32 %v5068, %v375
  %v5150 = vmul.f32 %v5072, %v375
  %v5151 = vmul.f32 %v5076, %v375
  %v5152 = vmul.f32 %v5080, %v375
  %v5153 = vmul.f32 %v5084, %v375
  %v5154 = vmul.f32 %v5088, %v375
  %v5155 = vmul.f32 %v5092, %v375
  %v5156 = vmul.f32 %v5096, %v375
  %v5157 = vmul.f32 %v5100, %v375
  %v5158 = vmul.f32 %v5104, %v375
  %v5159 = vmul.f32 %v5108, %v375
  %v5160 = vmul.f32 %v5112, %v375
  %v5161 = vmul.f32 %v5116, %v375
  %v5162 = vmul.f32 %v5120, %v375
  %v5163 = vmul.f32 %v5124, %v375
  %v5164 = vmul.f32 %v5128, %v375
  %v5165 = vmul.f32 %v5132, %v375
  %v5166 = vadd.f32 %v4974, %v5134
  %v5167 = vadd.f32 %v4975, %v5135
  %v5168 = vadd.f32 %v4976, %v5136
  %v5169 = vadd.f32 %v4977, %v5137
  %v5170 = vadd.f32 %v4978, %v5138
  %v5171 = vadd.f32 %v4979, %v5139
  %v5172 = vadd.f32 %v4980, %v5140
  %v5173 = vadd.f32 %v4981, %v5141
  %v5174 = vadd.f32 %v4982, %v5142
  %v5175 = vadd.f32 %v4983, %v5143
  %v5176 = vadd.f32 %v4984, %v5144
  %v5177 = vadd.f32 %v4985, %v5145
  %v5178 = vadd.f32 %v4986, %v5146
  %v5179 = vadd.f32 %v4987, %v5147
  %v5180 = vadd.f32 %v4988, %v5148
  %v5181 = vadd.f32 %v4989, %v5149
  %v5182 = vadd.f32 %v4990, %v5150
  %v5183 = vadd.f32 %v4991, %v5151
  %v5184 = vadd.f32 %v4992, %v5152
  %v5185 = vadd.f32 %v4993, %v5153
  %v5186 = vadd.f32 %v4994, %v5154
  %v5187 = vadd.f32 %v4995, %v5155
  %v5188 = vadd.f32 %v4996, %v5156
  %v5189 = vadd.f32 %v4997, %v5157
  %v5190 = vadd.f32 %v4998, %v5158
  %v5191 = vadd.f32 %v4999, %v5159
  %v5192 = vadd.f32 %v5000, %v5160
  %v5193 = vadd.f32 %v5001, %v5161
  %v5194 = vadd.f32 %v5002, %v5162
  %v5195 = vadd.f32 %v5003, %v5163
  %v5196 = vadd.f32 %v5004, %v5164
  %v5197 = vadd.f32 %v5005, %v5165
  %v5198 = vadd.f32 %v5166, %v440
  %v5199 = vadd.f32 %v5167, %v440
  %v5200 = vadd.f32 %v5168, %v440
  %v5201 = vadd.f32 %v5169, %v440
  %v5202 = vadd.f32 %v5170, %v440
  %v5203 = vadd.f32 %v5171, %v440
  %v5204 = vadd.f32 %v5172, %v440
  %v5205 = vadd.f32 %v5173, %v440
  %v5206 = vadd.f32 %v5174, %v440
  %v5207 = vadd.f32 %v5175, %v440
  %v5208 = vadd.f32 %v5176, %v440
  %v5209 = vadd.f32 %v5177, %v440
  %v5210 = vadd.f32 %v5178, %v440
  %v5211 = vadd.f32 %v5179, %v440
  %v5212 = vadd.f32 %v5180, %v440
  %v5213 = vadd.f32 %v5181, %v440
  %v5214 = vadd.f32 %v5182, %v440
  %v5215 = vadd.f32 %v5183, %v440
  %v5216 = vadd.f32 %v5184, %v440
  %v5217 = vadd.f32 %v5185, %v440
  %v5218 = vadd.f32 %v5186, %v440
  %v5219 = vadd.f32 %v5187, %v440
  %v5220 = vadd.f32 %v5188, %v440
  %v5221 = vadd.f32 %v5189, %v440
  %v5222 = vadd.f32 %v5190, %v440
  %v5223 = vadd.f32 %v5191, %v440
  %v5224 = vadd.f32 %v5192, %v440
  %v5225 = vadd.f32 %v5193, %v440
  %v5226 = vadd.f32 %v5194, %v440
  %v5227 = vadd.f32 %v5195, %v440
  %v5228 = vadd.f32 %v5196, %v440
  %v5229 = vadd.f32 %v5197, %v440
  %v5230 = vtanh.pop %v5198
  %v5231 = vtanh.pop %v5199
  %v5232 = vtanh.pop %v5200
  %v5233 = vtanh.pop %v5201
  %v5234 = vtanh.pop %v5202
  %v5235 = vtanh.pop %v5203
  %v5236 = vtanh.pop %v5204
  %v5237 = vtanh.pop %v5205
  %v5238 = vtanh.pop %v5206
  %v5239 = vtanh.pop %v5207
  %v5240 = vtanh.pop %v5208
  %v5241 = vtanh.pop %v5209
  %v5242 = vtanh.pop %v5210
  %v5243 = vtanh.pop %v5211
  %v5244 = vtanh.pop %v5212
  %v5245 = vtanh.pop %v5213
  %v5246 = vtanh.pop %v5214
  %v5247 = vtanh.pop %v5215
  %v5248 = vtanh.pop %v5216
  %v5249 = vtanh.pop %v5217
  %v5250 = vtanh.pop %v5218
  %v5251 = vtanh.pop %v5219
  %v5252 = vtanh.pop %v5220
  %v5253 = vtanh.pop %v5221
  %v5254 = vtanh.pop %v5222
  %v5255 = vtanh.pop %v5223
  %v5256 = vtanh.pop %v5224
  %v5257 = vtanh.pop %v5225
  %v5258 = vtanh.pop %v5226
  %v5259 = vtanh.pop %v5227
  %v5260 = vtanh.pop %v5228
  %v5261 = vtanh.pop %v5229
  %v5262 = vpack.c.bf16 %v5231, %v5230
  %v5263 = vpack.c.bf16 %v5233, %v5232
  %v5264 = vpack.c.bf16 %v5235, %v5234
  %v5265 = vpack.c.bf16 %v5237, %v5236
  %v5266 = vpack.c.bf16 %v5239, %v5238
  %v5267 = vpack.c.bf16 %v5241, %v5240
  %v5268 = vpack.c.bf16 %v5243, %v5242
  %v5269 = vpack.c.bf16 %v5245, %v5244
  %v5270 = vpack.c.bf16 %v5247, %v5246
  %v5271 = vpack.c.bf16 %v5249, %v5248
  %v5272 = vpack.c.bf16 %v5251, %v5250
  %v5273 = vpack.c.bf16 %v5253, %v5252
  %v5274 = vpack.c.bf16 %v5255, %v5254
  %v5275 = vpack.c.bf16 %v5257, %v5256
  %v5276 = vpack.c.bf16 %v5259, %v5258
  %v5277 = vpack.c.bf16 %v5261, %v5260
  %v5278 = vld [vmem:[%s3] sm:$0xf]
  %v5279 = vld [vmem:[%s3 + $0x4] sm:$0xf]
  %v5280 = vld [vmem:[%s3 + $0x8] sm:$0xf]
  %v5281 = vld [vmem:[%s3 + $0xc] sm:$0xf]
  %v5282 = vld [vmem:[%s3 + $0x10] sm:$0xf]
  %v5283 = vld [vmem:[%s3 + $0x14] sm:$0xf]
  %v5284 = vld [vmem:[%s3 + $0x18] sm:$0xf]
  %v5285 = vld [vmem:[%s3 + $0x1c] sm:$0xf]
  %v5286 = vld [vmem:[%s3 + $0x20] sm:$0xf]
  %v5287 = vld [vmem:[%s3 + $0x24] sm:$0xf]
  %v5288 = vld [vmem:[%s3 + $0x28] sm:$0xf]
  %v5289 = vld [vmem:[%s3 + $0x2c] sm:$0xf]
  %v5290 = vld [vmem:[%s3 + $0x30] sm:$0xf]
  %v5291 = vld [vmem:[%s3 + $0x34] sm:$0xf]
  %v5292 = vld [vmem:[%s3 + $0x38] sm:$0xf]
  %v5293 = vld [vmem:[%s3 + $0x3c] sm:$0xf]
  %v5310 = vunpack.c.l.b16 %v5278
  %v5311 = vunpack.c.l.b16 %v5279
  %v5312 = vunpack.c.l.b16 %v5280
  %v5313 = vunpack.c.l.b16 %v5281
  %v5314 = vunpack.c.l.b16 %v5282
  %v5315 = vunpack.c.l.b16 %v5283
  %v5316 = vunpack.c.l.b16 %v5284
  %v5317 = vunpack.c.l.b16 %v5285
  %v5318 = vunpack.c.l.b16 %v5286
  %v5319 = vunpack.c.l.b16 %v5287
  %v5320 = vunpack.c.l.b16 %v5288
  %v5321 = vunpack.c.l.b16 %v5289
  %v5322 = vunpack.c.l.b16 %v5290
  %v5323 = vunpack.c.l.b16 %v5291
  %v5324 = vunpack.c.l.b16 %v5292
  %v5325 = vunpack.c.l.b16 %v5293
  %v5326 = vpack.c.b16 %v5311, %v5310
  %v5327 = vpack.c.b16 %v5313, %v5312
  %v5328 = vpack.c.b16 %v5315, %v5314
  %v5329 = vpack.c.b16 %v5317, %v5316
  %v5330 = vpack.c.b16 %v5319, %v5318
  %v5331 = vpack.c.b16 %v5321, %v5320
  %v5332 = vpack.c.b16 %v5323, %v5322
  %v5333 = vpack.c.b16 %v5325, %v5324
  %5342 = vmatpush.bf16.msra.mxu0 %v5333
  %5343 = vmatpush.bf16.msra.mxu0 %v5332
  %5344 = vmatpush.bf16.msra.mxu0 %v5331
  %5345 = vmatpush.bf16.msra.mxu0 %v5330
  %5346 = vmatpush.bf16.msra.mxu0 %v5329
  %5347 = vmatpush.bf16.msra.mxu0 %v5328
  %5348 = vmatpush.bf16.msra.mxu0 %v5327
  %5349 = vmatpush.bf16.msra.mxu0 %v5326
  %5350 = vmatmul.bf16.gmra.mxu0 %v5262
  %v5351 = vpop.f32.mrf.mxu0
  %v5352 = vadd.f32 %v537, %v5351
  %v5353 = vpop.f32.mrf.mxu0
  %v5354 = vadd.f32 %v537, %v5353
  %5355 = vmatmul.bf16.gmra.mxu0 %v5263
  %v5356 = vpop.f32.mrf.mxu0
  %v5357 = vadd.f32 %v537, %v5356
  %v5358 = vpop.f32.mrf.mxu0
  %v5359 = vadd.f32 %v537, %v5358
  %5360 = vmatmul.bf16.gmra.mxu0 %v5264
  %v5361 = vpop.f32.mrf.mxu0
  %v5362 = vadd.f32 %v537, %v5361
  %v5363 = vpop.f32.mrf.mxu0
  %v5364 = vadd.f32 %v537, %v5363
  %5365 = vmatmul.bf16.gmra.mxu0 %v5265
  %v5366 = vpop.f32.mrf.mxu0
  %v5367 = vadd.f32 %v537, %v5366
  %v5368 = vpop.f32.mrf.mxu0
  %v5369 = vadd.f32 %v537, %v5368
  %5370 = vmatmul.bf16.gmra.mxu0 %v5266
  %v5371 = vpop.f32.mrf.mxu0
  %v5372 = vadd.f32 %v537, %v5371
  %v5373 = vpop.f32.mrf.mxu0
  %v5374 = vadd.f32 %v537, %v5373
  %5375 = vmatmul.bf16.gmra.mxu0 %v5267
  %v5376 = vpop.f32.mrf.mxu0
  %v5377 = vadd.f32 %v537, %v5376
  %v5378 = vpop.f32.mrf.mxu0
  %v5379 = vadd.f32 %v537, %v5378
  %5380 = vmatmul.bf16.gmra.mxu0 %v5268
  %v5381 = vpop.f32.mrf.mxu0
  %v5382 = vadd.f32 %v537, %v5381
  %v5383 = vpop.f32.mrf.mxu0
  %v5384 = vadd.f32 %v537, %v5383
  %5385 = vmatmul.bf16.gmra.mxu0 %v5269
  %v5386 = vpop.f32.mrf.mxu0
  %v5387 = vadd.f32 %v537, %v5386
  %v5388 = vpop.f32.mrf.mxu0
  %v5389 = vadd.f32 %v537, %v5388
  %5390 = vmatmul.bf16.gmra.mxu0 %v5270
  %v5391 = vpop.f32.mrf.mxu0
  %v5392 = vadd.f32 %v537, %v5391
  %v5393 = vpop.f32.mrf.mxu0
  %v5394 = vadd.f32 %v537, %v5393
  %5395 = vmatmul.bf16.gmra.mxu0 %v5271
  %v5396 = vpop.f32.mrf.mxu0
  %v5397 = vadd.f32 %v537, %v5396
  %v5398 = vpop.f32.mrf.mxu0
  %v5399 = vadd.f32 %v537, %v5398
  %5400 = vmatmul.bf16.gmra.mxu0 %v5272
  %v5401 = vpop.f32.mrf.mxu0
  %v5402 = vadd.f32 %v537, %v5401
  %v5403 = vpop.f32.mrf.mxu0
  %v5404 = vadd.f32 %v537, %v5403
  %5405 = vmatmul.bf16.gmra.mxu0 %v5273
  %v5406 = vpop.f32.mrf.mxu0
  %v5407 = vadd.f32 %v537, %v5406
  %v5408 = vpop.f32.mrf.mxu0
  %v5409 = vadd.f32 %v537, %v5408
  %5410 = vmatmul.bf16.gmra.mxu0 %v5274
  %v5411 = vpop.f32.mrf.mxu0
  %v5412 = vadd.f32 %v537, %v5411
  %v5413 = vpop.f32.mrf.mxu0
  %v5414 = vadd.f32 %v537, %v5413
  %5415 = vmatmul.bf16.gmra.mxu0 %v5275
  %v5416 = vpop.f32.mrf.mxu0
  %v5417 = vadd.f32 %v537, %v5416
  %v5418 = vpop.f32.mrf.mxu0
  %v5419 = vadd.f32 %v537, %v5418
  %5420 = vmatmul.bf16.gmra.mxu0 %v5276
  %v5421 = vpop.f32.mrf.mxu0
  %v5422 = vadd.f32 %v537, %v5421
  %v5423 = vpop.f32.mrf.mxu0
  %v5424 = vadd.f32 %v537, %v5423
  %5425 = vmatmul.bf16.gmra.mxu0 %v5277
  %v5426 = vpop.f32.mrf.mxu0
  %v5427 = vadd.f32 %v537, %v5426
  %v5428 = vpop.f32.mrf.mxu0
  %v5429 = vadd.f32 %v537, %v5428
  %5430 = vdwg.mxu0
  %v5431 = vtanh.pop %v5352
  %v5432 = vtanh.pop %v5354
  %v5433 = vtanh.pop %v5357
  %v5434 = vtanh.pop %v5359
  %v5435 = vtanh.pop %v5362
  %v5436 = vtanh.pop %v5364
  %v5437 = vtanh.pop %v5367
  %v5438 = vtanh.pop %v5369
  %v5439 = vtanh.pop %v5372
  %v5440 = vtanh.pop %v5374
  %v5441 = vtanh.pop %v5377
  %v5442 = vtanh.pop %v5379
  %v5443 = vtanh.pop %v5382
  %v5444 = vtanh.pop %v5384
  %v5445 = vtanh.pop %v5387
  %v5446 = vtanh.pop %v5389
  %v5447 = vtanh.pop %v5392
  %v5448 = vtanh.pop %v5394
  %v5449 = vtanh.pop %v5397
  %v5450 = vtanh.pop %v5399
  %v5451 = vtanh.pop %v5402
  %v5452 = vtanh.pop %v5404
  %v5453 = vtanh.pop %v5407
  %v5454 = vtanh.pop %v5409
  %v5455 = vtanh.pop %v5412
  %v5456 = vtanh.pop %v5414
  %v5457 = vtanh.pop %v5417
  %v5458 = vtanh.pop %v5419
  %v5459 = vtanh.pop %v5422
  %v5460 = vtanh.pop %v5424
  %v5461 = vtanh.pop %v5427
  %v5462 = vtanh.pop %v5429
  %v5463 = vadd.f32 %v5431, %v5230
  %v5464 = vadd.f32 %v5432, %v5231
  %v5465 = vadd.f32 %v5433, %v5232
  %v5466 = vadd.f32 %v5434, %v5233
  %v5467 = vadd.f32 %v5435, %v5234
  %v5468 = vadd.f32 %v5436, %v5235
  %v5469 = vadd.f32 %v5437, %v5236
  %v5470 = vadd.f32 %v5438, %v5237
  %v5471 = vadd.f32 %v5439, %v5238
  %v5472 = vadd.f32 %v5440, %v5239
  %v5473 = vadd.f32 %v5441, %v5240
  %v5474 = vadd.f32 %v5442, %v5241
  %v5475 = vadd.f32 %v5443, %v5242
  %v5476 = vadd.f32 %v5444, %v5243
  %v5477 = vadd.f32 %v5445, %v5244
  %v5478 = vadd.f32 %v5446, %v5245
  %v5479 = vadd.f32 %v5447, %v5246
  %v5480 = vadd.f32 %v5448, %v5247
  %v5481 = vadd.f32 %v5449, %v5248
  %v5482 = vadd.f32 %v5450, %v5249
  %v5483 = vadd.f32 %v5451, %v5250
  %v5484 = vadd.f32 %v5452, %v5251
  %v5485 = vadd.f32 %v5453, %v5252
  %v5486 = vadd.f32 %v5454, %v5253
  %v5487 = vadd.f32 %v5455, %v5254
  %v5488 = vadd.f32 %v5456, %v5255
  %v5489 = vadd.f32 %v5457, %v5256
  %v5490 = vadd.f32 %v5458, %v5257
  %v5491 = vadd.f32 %v5459, %v5258
  %v5492 = vadd.f32 %v5460, %v5259
  %v5493 = vadd.f32 %v5461, %v5260
  %v5494 = vadd.f32 %v5462, %v5261
  %v5495 = vpack.c.bf16 %v5464, %v5463
  %v5496 = vpack.c.bf16 %v5466, %v5465
  %v5497 = vpack.c.bf16 %v5468, %v5467
  %v5498 = vpack.c.bf16 %v5470, %v5469
  %v5499 = vpack.c.bf16 %v5472, %v5471
  %v5500 = vpack.c.bf16 %v5474, %v5473
  %v5501 = vpack.c.bf16 %v5476, %v5475
  %v5502 = vpack.c.bf16 %v5478, %v5477
  %v5503 = vpack.c.bf16 %v5480, %v5479
  %v5504 = vpack.c.bf16 %v5482, %v5481
  %v5505 = vpack.c.bf16 %v5484, %v5483
  %v5506 = vpack.c.bf16 %v5486, %v5485
  %v5507 = vpack.c.bf16 %v5488, %v5487
  %v5508 = vpack.c.bf16 %v5490, %v5489
  %v5509 = vpack.c.bf16 %v5492, %v5491
  %v5510 = vpack.c.bf16 %v5494, %v5493
  %v5511 = vld [vmem:[%s755] sm:$0xf]
  %v5512 = vld [vmem:[%s755 + $0x4] sm:$0xf]
  %v5513 = vld [vmem:[%s755 + $0x8] sm:$0xf]
  %v5514 = vld [vmem:[%s755 + $0xc] sm:$0xf]
  %v5515 = vld [vmem:[%s755 + $0x10] sm:$0xf]
  %v5516 = vld [vmem:[%s755 + $0x14] sm:$0xf]
  %v5517 = vld [vmem:[%s755 + $0x18] sm:$0xf]
  %v5518 = vld [vmem:[%s755 + $0x1c] sm:$0xf]
  %v5519 = vld [vmem:[%s755 + $0x20] sm:$0xf]
  %v5520 = vld [vmem:[%s755 + $0x24] sm:$0xf]
  %v5521 = vld [vmem:[%s755 + $0x28] sm:$0xf]
  %v5522 = vld [vmem:[%s755 + $0x2c] sm:$0xf]
  %v5523 = vld [vmem:[%s755 + $0x30] sm:$0xf]
  %v5524 = vld [vmem:[%s755 + $0x34] sm:$0xf]
  %v5525 = vld [vmem:[%s755 + $0x38] sm:$0xf]
  %v5526 = vld [vmem:[%s755 + $0x3c] sm:$0xf]
  %v5543 = vunpack.c.l.b16 %v5511
  %v5544 = vunpack.c.l.b16 %v5512
  %v5545 = vunpack.c.l.b16 %v5513
  %v5546 = vunpack.c.l.b16 %v5514
  %v5547 = vunpack.c.l.b16 %v5515
  %v5548 = vunpack.c.l.b16 %v5516
  %v5549 = vunpack.c.l.b16 %v5517
  %v5550 = vunpack.c.l.b16 %v5518
  %v5551 = vunpack.c.l.b16 %v5519
  %v5552 = vunpack.c.l.b16 %v5520
  %v5553 = vunpack.c.l.b16 %v5521
  %v5554 = vunpack.c.l.b16 %v5522
  %v5555 = vunpack.c.l.b16 %v5523
  %v5556 = vunpack.c.l.b16 %v5524
  %v5557 = vunpack.c.l.b16 %v5525
  %v5558 = vunpack.c.l.b16 %v5526
  %v5559 = vpack.c.b16 %v5544, %v5543
  %v5560 = vpack.c.b16 %v5546, %v5545
  %v5561 = vpack.c.b16 %v5548, %v5547
  %v5562 = vpack.c.b16 %v5550, %v5549
  %v5563 = vpack.c.b16 %v5552, %v5551
  %v5564 = vpack.c.b16 %v5554, %v5553
  %v5565 = vpack.c.b16 %v5556, %v5555
  %v5566 = vpack.c.b16 %v5558, %v5557
  %5575 = vmatpush.bf16.msra.mxu0 %v5566
  %5576 = vmatpush.bf16.msra.mxu0 %v5565
  %5577 = vmatpush.bf16.msra.mxu0 %v5564
  %5578 = vmatpush.bf16.msra.mxu0 %v5563
  %5579 = vmatpush.bf16.msra.mxu0 %v5562
  %5580 = vmatpush.bf16.msra.mxu0 %v5561
  %5581 = vmatpush.bf16.msra.mxu0 %v5560
  %5582 = vmatpush.bf16.msra.mxu0 %v5559
  %5583 = vmatmul.bf16.gmra.mxu0 %v5495
  %v5584 = vpop.f32.mrf.mxu0
  %v5585 = vadd.f32 %v772, %v5584
  %v5586 = vpop.f32.mrf.mxu0
  %v5587 = vadd.f32 %v772, %v5586
  %5588 = vmatmul.bf16.gmra.mxu0 %v5496
  %v5589 = vpop.f32.mrf.mxu0
  %v5590 = vadd.f32 %v772, %v5589
  %v5591 = vpop.f32.mrf.mxu0
  %v5592 = vadd.f32 %v772, %v5591
  %5593 = vmatmul.bf16.gmra.mxu0 %v5497
  %v5594 = vpop.f32.mrf.mxu0
  %v5595 = vadd.f32 %v772, %v5594
  %v5596 = vpop.f32.mrf.mxu0
  %v5597 = vadd.f32 %v772, %v5596
  %5598 = vmatmul.bf16.gmra.mxu0 %v5498
  %v5599 = vpop.f32.mrf.mxu0
  %v5600 = vadd.f32 %v772, %v5599
  %v5601 = vpop.f32.mrf.mxu0
  %v5602 = vadd.f32 %v772, %v5601
  %5603 = vmatmul.bf16.gmra.mxu0 %v5499
  %v5604 = vpop.f32.mrf.mxu0
  %v5605 = vadd.f32 %v772, %v5604
  %v5606 = vpop.f32.mrf.mxu0
  %v5607 = vadd.f32 %v772, %v5606
  %5608 = vmatmul.bf16.gmra.mxu0 %v5500
  %v5609 = vpop.f32.mrf.mxu0
  %v5610 = vadd.f32 %v772, %v5609
  %v5611 = vpop.f32.mrf.mxu0
  %v5612 = vadd.f32 %v772, %v5611
  %5613 = vmatmul.bf16.gmra.mxu0 %v5501
  %v5614 = vpop.f32.mrf.mxu0
  %v5615 = vadd.f32 %v772, %v5614
  %v5616 = vpop.f32.mrf.mxu0
  %v5617 = vadd.f32 %v772, %v5616
  %5618 = vmatmul.bf16.gmra.mxu0 %v5502
  %v5619 = vpop.f32.mrf.mxu0
  %v5620 = vadd.f32 %v772, %v5619
  %v5621 = vpop.f32.mrf.mxu0
  %v5622 = vadd.f32 %v772, %v5621
  %5623 = vmatmul.bf16.gmra.mxu0 %v5503
  %v5624 = vpop.f32.mrf.mxu0
  %v5625 = vadd.f32 %v772, %v5624
  %v5626 = vpop.f32.mrf.mxu0
  %v5627 = vadd.f32 %v772, %v5626
  %5628 = vmatmul.bf16.gmra.mxu0 %v5504
  %v5629 = vpop.f32.mrf.mxu0
  %v5630 = vadd.f32 %v772, %v5629
  %v5631 = vpop.f32.mrf.mxu0
  %v5632 = vadd.f32 %v772, %v5631
  %5633 = vmatmul.bf16.gmra.mxu0 %v5505
  %v5634 = vpop.f32.mrf.mxu0
  %v5635 = vadd.f32 %v772, %v5634
  %v5636 = vpop.f32.mrf.mxu0
  %v5637 = vadd.f32 %v772, %v5636
  %5638 = vmatmul.bf16.gmra.mxu0 %v5506
  %v5639 = vpop.f32.mrf.mxu0
  %v5640 = vadd.f32 %v772, %v5639
  %v5641 = vpop.f32.mrf.mxu0
  %v5642 = vadd.f32 %v772, %v5641
  %5643 = vmatmul.bf16.gmra.mxu0 %v5507
  %v5644 = vpop.f32.mrf.mxu0
  %v5645 = vadd.f32 %v772, %v5644
  %v5646 = vpop.f32.mrf.mxu0
  %v5647 = vadd.f32 %v772, %v5646
  %5648 = vmatmul.bf16.gmra.mxu0 %v5508
  %v5649 = vpop.f32.mrf.mxu0
  %v5650 = vadd.f32 %v772, %v5649
  %v5651 = vpop.f32.mrf.mxu0
  %v5652 = vadd.f32 %v772, %v5651
  %5653 = vmatmul.bf16.gmra.mxu0 %v5509
  %v5654 = vpop.f32.mrf.mxu0
  %v5655 = vadd.f32 %v772, %v5654
  %v5656 = vpop.f32.mrf.mxu0
  %v5657 = vadd.f32 %v772, %v5656
  %5658 = vmatmul.bf16.gmra.mxu0 %v5510
  %v5659 = vpop.f32.mrf.mxu0
  %v5660 = vadd.f32 %v772, %v5659
  %v5661 = vpop.f32.mrf.mxu0
  %v5662 = vadd.f32 %v772, %v5661
  %5663 = vdwg.mxu0
  %v5664 = vtanh.pop %v5585
  %v5665 = vtanh.pop %v5587
  %v5666 = vtanh.pop %v5590
  %v5667 = vtanh.pop %v5592
  %v5668 = vtanh.pop %v5595
  %v5669 = vtanh.pop %v5597
  %v5670 = vtanh.pop %v5600
  %v5671 = vtanh.pop %v5602
  %v5672 = vtanh.pop %v5605
  %v5673 = vtanh.pop %v5607
  %v5674 = vtanh.pop %v5610
  %v5675 = vtanh.pop %v5612
  %v5676 = vtanh.pop %v5615
  %v5677 = vtanh.pop %v5617
  %v5678 = vtanh.pop %v5620
  %v5679 = vtanh.pop %v5622
  %v5680 = vtanh.pop %v5625
  %v5681 = vtanh.pop %v5627
  %v5682 = vtanh.pop %v5630
  %v5683 = vtanh.pop %v5632
  %v5684 = vtanh.pop %v5635
  %v5685 = vtanh.pop %v5637
  %v5686 = vtanh.pop %v5640
  %v5687 = vtanh.pop %v5642
  %v5688 = vtanh.pop %v5645
  %v5689 = vtanh.pop %v5647
  %v5690 = vtanh.pop %v5650
  %v5691 = vtanh.pop %v5652
  %v5692 = vtanh.pop %v5655
  %v5693 = vtanh.pop %v5657
  %v5694 = vtanh.pop %v5660
  %v5695 = vtanh.pop %v5662
  %v5696 = vadd.f32 %v5664, %v5463
  %v5697 = vadd.f32 %v5665, %v5464
  %v5698 = vadd.f32 %v5666, %v5465
  %v5699 = vadd.f32 %v5667, %v5466
  %v5700 = vadd.f32 %v5668, %v5467
  %v5701 = vadd.f32 %v5669, %v5468
  %v5702 = vadd.f32 %v5670, %v5469
  %v5703 = vadd.f32 %v5671, %v5470
  %v5704 = vadd.f32 %v5672, %v5471
  %v5705 = vadd.f32 %v5673, %v5472
  %v5706 = vadd.f32 %v5674, %v5473
  %v5707 = vadd.f32 %v5675, %v5474
  %v5708 = vadd.f32 %v5676, %v5475
  %v5709 = vadd.f32 %v5677, %v5476
  %v5710 = vadd.f32 %v5678, %v5477
  %v5711 = vadd.f32 %v5679, %v5478
  %v5712 = vadd.f32 %v5680, %v5479
  %v5713 = vadd.f32 %v5681, %v5480
  %v5714 = vadd.f32 %v5682, %v5481
  %v5715 = vadd.f32 %v5683, %v5482
  %v5716 = vadd.f32 %v5684, %v5483
  %v5717 = vadd.f32 %v5685, %v5484
  %v5718 = vadd.f32 %v5686, %v5485
  %v5719 = vadd.f32 %v5687, %v5486
  %v5720 = vadd.f32 %v5688, %v5487
  %v5721 = vadd.f32 %v5689, %v5488
  %v5722 = vadd.f32 %v5690, %v5489
  %v5723 = vadd.f32 %v5691, %v5490
  %v5724 = vadd.f32 %v5692, %v5491
  %v5725 = vadd.f32 %v5693, %v5492
  %v5726 = vadd.f32 %v5694, %v5493
  %v5727 = vadd.f32 %v5695, %v5494
  %v5728 = vpack.c.bf16 %v5697, %v5696
  %v5729 = vpack.c.bf16 %v5699, %v5698
  %v5730 = vpack.c.bf16 %v5701, %v5700
  %v5731 = vpack.c.bf16 %v5703, %v5702
  %v5732 = vpack.c.bf16 %v5705, %v5704
  %v5733 = vpack.c.bf16 %v5707, %v5706
  %v5734 = vpack.c.bf16 %v5709, %v5708
  %v5735 = vpack.c.bf16 %v5711, %v5710
  %v5736 = vpack.c.bf16 %v5713, %v5712
  %v5737 = vpack.c.bf16 %v5715, %v5714
  %v5738 = vpack.c.bf16 %v5717, %v5716
  %v5739 = vpack.c.bf16 %v5719, %v5718
  %v5740 = vpack.c.bf16 %v5721, %v5720
  %v5741 = vpack.c.bf16 %v5723, %v5722
  %v5742 = vpack.c.bf16 %v5725, %v5724
  %v5743 = vpack.c.bf16 %v5727, %v5726
  %v5744 = vld [vmem:[%s990] sm:$0xf]
  %v5745 = vld [vmem:[%s990 + $0x4] sm:$0xf]
  %v5746 = vld [vmem:[%s990 + $0x8] sm:$0xf]
  %v5747 = vld [vmem:[%s990 + $0xc] sm:$0xf]
  %v5748 = vld [vmem:[%s990 + $0x10] sm:$0xf]
  %v5749 = vld [vmem:[%s990 + $0x14] sm:$0xf]
  %v5750 = vld [vmem:[%s990 + $0x18] sm:$0xf]
  %v5751 = vld [vmem:[%s990 + $0x1c] sm:$0xf]
  %v5752 = vld [vmem:[%s990 + $0x20] sm:$0xf]
  %v5753 = vld [vmem:[%s990 + $0x24] sm:$0xf]
  %v5754 = vld [vmem:[%s990 + $0x28] sm:$0xf]
  %v5755 = vld [vmem:[%s990 + $0x2c] sm:$0xf]
  %v5756 = vld [vmem:[%s990 + $0x30] sm:$0xf]
  %v5757 = vld [vmem:[%s990 + $0x34] sm:$0xf]
  %v5758 = vld [vmem:[%s990 + $0x38] sm:$0xf]
  %v5759 = vld [vmem:[%s990 + $0x3c] sm:$0xf]
  %v5776 = vunpack.c.l.b16 %v5744
  %v5777 = vunpack.c.l.b16 %v5745
  %v5778 = vunpack.c.l.b16 %v5746
  %v5779 = vunpack.c.l.b16 %v5747
  %v5780 = vunpack.c.l.b16 %v5748
  %v5781 = vunpack.c.l.b16 %v5749
  %v5782 = vunpack.c.l.b16 %v5750
  %v5783 = vunpack.c.l.b16 %v5751
  %v5784 = vunpack.c.l.b16 %v5752
  %v5785 = vunpack.c.l.b16 %v5753
  %v5786 = vunpack.c.l.b16 %v5754
  %v5787 = vunpack.c.l.b16 %v5755
  %v5788 = vunpack.c.l.b16 %v5756
  %v5789 = vunpack.c.l.b16 %v5757
  %v5790 = vunpack.c.l.b16 %v5758
  %v5791 = vunpack.c.l.b16 %v5759
  %v5792 = vpack.c.b16 %v5777, %v5776
  %v5793 = vpack.c.b16 %v5779, %v5778
  %v5794 = vpack.c.b16 %v5781, %v5780
  %v5795 = vpack.c.b16 %v5783, %v5782
  %v5796 = vpack.c.b16 %v5785, %v5784
  %v5797 = vpack.c.b16 %v5787, %v5786
  %v5798 = vpack.c.b16 %v5789, %v5788
  %v5799 = vpack.c.b16 %v5791, %v5790
  %5808 = vmatpush.bf16.msra.mxu0 %v5799
  %5809 = vmatpush.bf16.msra.mxu0 %v5798
  %5810 = vmatpush.bf16.msra.mxu0 %v5797
  %5811 = vmatpush.bf16.msra.mxu0 %v5796
  %5812 = vmatpush.bf16.msra.mxu0 %v5795
  %5813 = vmatpush.bf16.msra.mxu0 %v5794
  %5814 = vmatpush.bf16.msra.mxu0 %v5793
  %5815 = vmatpush.bf16.msra.mxu0 %v5792
  %5816 = vmatmul.bf16.gmra.mxu0 %v5728
  %v5817 = vpop.f32.mrf.mxu0
  %v5818 = vadd.f32 %v1007, %v5817
  %v5819 = vpop.f32.mrf.mxu0
  %v5820 = vadd.f32 %v1007, %v5819
  %5821 = vmatmul.bf16.gmra.mxu0 %v5729
  %v5822 = vpop.f32.mrf.mxu0
  %v5823 = vadd.f32 %v1007, %v5822
  %v5824 = vpop.f32.mrf.mxu0
  %v5825 = vadd.f32 %v1007, %v5824
  %5826 = vmatmul.bf16.gmra.mxu0 %v5730
  %v5827 = vpop.f32.mrf.mxu0
  %v5828 = vadd.f32 %v1007, %v5827
  %v5829 = vpop.f32.mrf.mxu0
  %v5830 = vadd.f32 %v1007, %v5829
  %5831 = vmatmul.bf16.gmra.mxu0 %v5731
  %v5832 = vpop.f32.mrf.mxu0
  %v5833 = vadd.f32 %v1007, %v5832
  %v5834 = vpop.f32.mrf.mxu0
  %v5835 = vadd.f32 %v1007, %v5834
  %5836 = vmatmul.bf16.gmra.mxu0 %v5732
  %v5837 = vpop.f32.mrf.mxu0
  %v5838 = vadd.f32 %v1007, %v5837
  %v5839 = vpop.f32.mrf.mxu0
  %v5840 = vadd.f32 %v1007, %v5839
  %5841 = vmatmul.bf16.gmra.mxu0 %v5733
  %v5842 = vpop.f32.mrf.mxu0
  %v5843 = vadd.f32 %v1007, %v5842
  %v5844 = vpop.f32.mrf.mxu0
  %v5845 = vadd.f32 %v1007, %v5844
  %5846 = vmatmul.bf16.gmra.mxu0 %v5734
  %v5847 = vpop.f32.mrf.mxu0
  %v5848 = vadd.f32 %v1007, %v5847
  %v5849 = vpop.f32.mrf.mxu0
  %v5850 = vadd.f32 %v1007, %v5849
  %5851 = vmatmul.bf16.gmra.mxu0 %v5735
  %v5852 = vpop.f32.mrf.mxu0
  %v5853 = vadd.f32 %v1007, %v5852
  %v5854 = vpop.f32.mrf.mxu0
  %v5855 = vadd.f32 %v1007, %v5854
  %5856 = vmatmul.bf16.gmra.mxu0 %v5736
  %v5857 = vpop.f32.mrf.mxu0
  %v5858 = vadd.f32 %v1007, %v5857
  %v5859 = vpop.f32.mrf.mxu0
  %v5860 = vadd.f32 %v1007, %v5859
  %5861 = vmatmul.bf16.gmra.mxu0 %v5737
  %v5862 = vpop.f32.mrf.mxu0
  %v5863 = vadd.f32 %v1007, %v5862
  %v5864 = vpop.f32.mrf.mxu0
  %v5865 = vadd.f32 %v1007, %v5864
  %5866 = vmatmul.bf16.gmra.mxu0 %v5738
  %v5867 = vpop.f32.mrf.mxu0
  %v5868 = vadd.f32 %v1007, %v5867
  %v5869 = vpop.f32.mrf.mxu0
  %v5870 = vadd.f32 %v1007, %v5869
  %5871 = vmatmul.bf16.gmra.mxu0 %v5739
  %v5872 = vpop.f32.mrf.mxu0
  %v5873 = vadd.f32 %v1007, %v5872
  %v5874 = vpop.f32.mrf.mxu0
  %v5875 = vadd.f32 %v1007, %v5874
  %5876 = vmatmul.bf16.gmra.mxu0 %v5740
  %v5877 = vpop.f32.mrf.mxu0
  %v5878 = vadd.f32 %v1007, %v5877
  %v5879 = vpop.f32.mrf.mxu0
  %v5880 = vadd.f32 %v1007, %v5879
  %5881 = vmatmul.bf16.gmra.mxu0 %v5741
  %v5882 = vpop.f32.mrf.mxu0
  %v5883 = vadd.f32 %v1007, %v5882
  %v5884 = vpop.f32.mrf.mxu0
  %v5885 = vadd.f32 %v1007, %v5884
  %5886 = vmatmul.bf16.gmra.mxu0 %v5742
  %v5887 = vpop.f32.mrf.mxu0
  %v5888 = vadd.f32 %v1007, %v5887
  %v5889 = vpop.f32.mrf.mxu0
  %v5890 = vadd.f32 %v1007, %v5889
  %5891 = vmatmul.bf16.gmra.mxu0 %v5743
  %v5892 = vpop.f32.mrf.mxu0
  %v5893 = vadd.f32 %v1007, %v5892
  %v5894 = vpop.f32.mrf.mxu0
  %v5895 = vadd.f32 %v1007, %v5894
  %5896 = vdwg.mxu0
  %v5897 = vtanh.pop %v5818
  %v5898 = vtanh.pop %v5820
  %v5899 = vtanh.pop %v5823
  %v5900 = vtanh.pop %v5825
  %v5901 = vtanh.pop %v5828
  %v5902 = vtanh.pop %v5830
  %v5903 = vtanh.pop %v5833
  %v5904 = vtanh.pop %v5835
  %v5905 = vtanh.pop %v5838
  %v5906 = vtanh.pop %v5840
  %v5907 = vtanh.pop %v5843
  %v5908 = vtanh.pop %v5845
  %v5909 = vtanh.pop %v5848
  %v5910 = vtanh.pop %v5850
  %v5911 = vtanh.pop %v5853
  %v5912 = vtanh.pop %v5855
  %v5913 = vtanh.pop %v5858
  %v5914 = vtanh.pop %v5860
  %v5915 = vtanh.pop %v5863
  %v5916 = vtanh.pop %v5865
  %v5917 = vtanh.pop %v5868
  %v5918 = vtanh.pop %v5870
  %v5919 = vtanh.pop %v5873
  %v5920 = vtanh.pop %v5875
  %v5921 = vtanh.pop %v5878
  %v5922 = vtanh.pop %v5880
  %v5923 = vtanh.pop %v5883
  %v5924 = vtanh.pop %v5885
  %v5925 = vtanh.pop %v5888
  %v5926 = vtanh.pop %v5890
  %v5927 = vtanh.pop %v5893
  %v5928 = vtanh.pop %v5895
  %v5929 = vadd.f32 %v5897, %v5696
  %v5930 = vadd.f32 %v5898, %v5697
  %v5931 = vadd.f32 %v5899, %v5698
  %v5932 = vadd.f32 %v5900, %v5699
  %v5933 = vadd.f32 %v5901, %v5700
  %v5934 = vadd.f32 %v5902, %v5701
  %v5935 = vadd.f32 %v5903, %v5702
  %v5936 = vadd.f32 %v5904, %v5703
  %v5937 = vadd.f32 %v5905, %v5704
  %v5938 = vadd.f32 %v5906, %v5705
  %v5939 = vadd.f32 %v5907, %v5706
  %v5940 = vadd.f32 %v5908, %v5707
  %v5941 = vadd.f32 %v5909, %v5708
  %v5942 = vadd.f32 %v5910, %v5709
  %v5943 = vadd.f32 %v5911, %v5710
  %v5944 = vadd.f32 %v5912, %v5711
  %v5945 = vadd.f32 %v5913, %v5712
  %v5946 = vadd.f32 %v5914, %v5713
  %v5947 = vadd.f32 %v5915, %v5714
  %v5948 = vadd.f32 %v5916, %v5715
  %v5949 = vadd.f32 %v5917, %v5716
  %v5950 = vadd.f32 %v5918, %v5717
  %v5951 = vadd.f32 %v5919, %v5718
  %v5952 = vadd.f32 %v5920, %v5719
  %v5953 = vadd.f32 %v5921, %v5720
  %v5954 = vadd.f32 %v5922, %v5721
  %v5955 = vadd.f32 %v5923, %v5722
  %v5956 = vadd.f32 %v5924, %v5723
  %v5957 = vadd.f32 %v5925, %v5724
  %v5958 = vadd.f32 %v5926, %v5725
  %v5959 = vadd.f32 %v5927, %v5726
  %v5960 = vadd.f32 %v5928, %v5727
  %v5961 = vpack.c.bf16 %v5930, %v5929
  %v5962 = vpack.c.bf16 %v5932, %v5931
  %v5963 = vpack.c.bf16 %v5934, %v5933
  %v5964 = vpack.c.bf16 %v5936, %v5935
  %v5965 = vpack.c.bf16 %v5938, %v5937
  %v5966 = vpack.c.bf16 %v5940, %v5939
  %v5967 = vpack.c.bf16 %v5942, %v5941
  %v5968 = vpack.c.bf16 %v5944, %v5943
  %v5969 = vpack.c.bf16 %v5946, %v5945
  %v5970 = vpack.c.bf16 %v5948, %v5947
  %v5971 = vpack.c.bf16 %v5950, %v5949
  %v5972 = vpack.c.bf16 %v5952, %v5951
  %v5973 = vpack.c.bf16 %v5954, %v5953
  %v5974 = vpack.c.bf16 %v5956, %v5955
  %v5975 = vpack.c.bf16 %v5958, %v5957
  %v5976 = vpack.c.bf16 %v5960, %v5959
  %v5977 = vld [vmem:[%s1225] sm:$0xf]
  %v5978 = vld [vmem:[%s1225 + $0x4] sm:$0xf]
  %v5979 = vld [vmem:[%s1225 + $0x8] sm:$0xf]
  %v5980 = vld [vmem:[%s1225 + $0xc] sm:$0xf]
  %v5981 = vld [vmem:[%s1225 + $0x10] sm:$0xf]
  %v5982 = vld [vmem:[%s1225 + $0x14] sm:$0xf]
  %v5983 = vld [vmem:[%s1225 + $0x18] sm:$0xf]
  %v5984 = vld [vmem:[%s1225 + $0x1c] sm:$0xf]
  %v5985 = vld [vmem:[%s1225 + $0x20] sm:$0xf]
  %v5986 = vld [vmem:[%s1225 + $0x24] sm:$0xf]
  %v5987 = vld [vmem:[%s1225 + $0x28] sm:$0xf]
  %v5988 = vld [vmem:[%s1225 + $0x2c] sm:$0xf]
  %v5989 = vld [vmem:[%s1225 + $0x30] sm:$0xf]
  %v5990 = vld [vmem:[%s1225 + $0x34] sm:$0xf]
  %v5991 = vld [vmem:[%s1225 + $0x38] sm:$0xf]
  %v5992 = vld [vmem:[%s1225 + $0x3c] sm:$0xf]
  %v6009 = vunpack.c.l.b16 %v5977
  %v6010 = vunpack.c.l.b16 %v5978
  %v6011 = vunpack.c.l.b16 %v5979
  %v6012 = vunpack.c.l.b16 %v5980
  %v6013 = vunpack.c.l.b16 %v5981
  %v6014 = vunpack.c.l.b16 %v5982
  %v6015 = vunpack.c.l.b16 %v5983
  %v6016 = vunpack.c.l.b16 %v5984
  %v6017 = vunpack.c.l.b16 %v5985
  %v6018 = vunpack.c.l.b16 %v5986
  %v6019 = vunpack.c.l.b16 %v5987
  %v6020 = vunpack.c.l.b16 %v5988
  %v6021 = vunpack.c.l.b16 %v5989
  %v6022 = vunpack.c.l.b16 %v5990
  %v6023 = vunpack.c.l.b16 %v5991
  %v6024 = vunpack.c.l.b16 %v5992
  %v6025 = vpack.c.b16 %v6010, %v6009
  %v6026 = vpack.c.b16 %v6012, %v6011
  %v6027 = vpack.c.b16 %v6014, %v6013
  %v6028 = vpack.c.b16 %v6016, %v6015
  %v6029 = vpack.c.b16 %v6018, %v6017
  %v6030 = vpack.c.b16 %v6020, %v6019
  %v6031 = vpack.c.b16 %v6022, %v6021
  %v6032 = vpack.c.b16 %v6024, %v6023
  %6041 = vmatpush.bf16.msra.mxu0 %v6032
  %6042 = vmatpush.bf16.msra.mxu0 %v6031
  %6043 = vmatpush.bf16.msra.mxu0 %v6030
  %6044 = vmatpush.bf16.msra.mxu0 %v6029
  %6045 = vmatpush.bf16.msra.mxu0 %v6028
  %6046 = vmatpush.bf16.msra.mxu0 %v6027
  %6047 = vmatpush.bf16.msra.mxu0 %v6026
  %6048 = vmatpush.bf16.msra.mxu0 %v6025
  %6049 = vmatmul.bf16.gmra.mxu0 %v5961
  %v6050 = vpop.f32.mrf.mxu0
  %v6051 = vadd.f32 %v1242, %v6050
  %v6052 = vpop.f32.mrf.mxu0
  %v6053 = vadd.f32 %v1242, %v6052
  %6054 = vmatmul.bf16.gmra.mxu0 %v5962
  %v6055 = vpop.f32.mrf.mxu0
  %v6056 = vadd.f32 %v1242, %v6055
  %v6057 = vpop.f32.mrf.mxu0
  %v6058 = vadd.f32 %v1242, %v6057
  %6059 = vmatmul.bf16.gmra.mxu0 %v5963
  %v6060 = vpop.f32.mrf.mxu0
  %v6061 = vadd.f32 %v1242, %v6060
  %v6062 = vpop.f32.mrf.mxu0
  %v6063 = vadd.f32 %v1242, %v6062
  %6064 = vmatmul.bf16.gmra.mxu0 %v5964
  %v6065 = vpop.f32.mrf.mxu0
  %v6066 = vadd.f32 %v1242, %v6065
  %v6067 = vpop.f32.mrf.mxu0
  %v6068 = vadd.f32 %v1242, %v6067
  %6069 = vmatmul.bf16.gmra.mxu0 %v5965
  %v6070 = vpop.f32.mrf.mxu0
  %v6071 = vadd.f32 %v1242, %v6070
  %v6072 = vpop.f32.mrf.mxu0
  %v6073 = vadd.f32 %v1242, %v6072
  %6074 = vmatmul.bf16.gmra.mxu0 %v5966
  %v6075 = vpop.f32.mrf.mxu0
  %v6076 = vadd.f32 %v1242, %v6075
  %v6077 = vpop.f32.mrf.mxu0
  %v6078 = vadd.f32 %v1242, %v6077
  %6079 = vmatmul.bf16.gmra.mxu0 %v5967
  %v6080 = vpop.f32.mrf.mxu0
  %v6081 = vadd.f32 %v1242, %v6080
  %v6082 = vpop.f32.mrf.mxu0
  %v6083 = vadd.f32 %v1242, %v6082
  %6084 = vmatmul.bf16.gmra.mxu0 %v5968
  %v6085 = vpop.f32.mrf.mxu0
  %v6086 = vadd.f32 %v1242, %v6085
  %v6087 = vpop.f32.mrf.mxu0
  %v6088 = vadd.f32 %v1242, %v6087
  %6089 = vmatmul.bf16.gmra.mxu0 %v5969
  %v6090 = vpop.f32.mrf.mxu0
  %v6091 = vadd.f32 %v1242, %v6090
  %v6092 = vpop.f32.mrf.mxu0
  %v6093 = vadd.f32 %v1242, %v6092
  %6094 = vmatmul.bf16.gmra.mxu0 %v5970
  %v6095 = vpop.f32.mrf.mxu0
  %v6096 = vadd.f32 %v1242, %v6095
  %v6097 = vpop.f32.mrf.mxu0
  %v6098 = vadd.f32 %v1242, %v6097
  %6099 = vmatmul.bf16.gmra.mxu0 %v5971
  %v6100 = vpop.f32.mrf.mxu0
  %v6101 = vadd.f32 %v1242, %v6100
  %v6102 = vpop.f32.mrf.mxu0
  %v6103 = vadd.f32 %v1242, %v6102
  %6104 = vmatmul.bf16.gmra.mxu0 %v5972
  %v6105 = vpop.f32.mrf.mxu0
  %v6106 = vadd.f32 %v1242, %v6105
  %v6107 = vpop.f32.mrf.mxu0
  %v6108 = vadd.f32 %v1242, %v6107
  %6109 = vmatmul.bf16.gmra.mxu0 %v5973
  %v6110 = vpop.f32.mrf.mxu0
  %v6111 = vadd.f32 %v1242, %v6110
  %v6112 = vpop.f32.mrf.mxu0
  %v6113 = vadd.f32 %v1242, %v6112
  %6114 = vmatmul.bf16.gmra.mxu0 %v5974
  %v6115 = vpop.f32.mrf.mxu0
  %v6116 = vadd.f32 %v1242, %v6115
  %v6117 = vpop.f32.mrf.mxu0
  %v6118 = vadd.f32 %v1242, %v6117
  %6119 = vmatmul.bf16.gmra.mxu0 %v5975
  %v6120 = vpop.f32.mrf.mxu0
  %v6121 = vadd.f32 %v1242, %v6120
  %v6122 = vpop.f32.mrf.mxu0
  %v6123 = vadd.f32 %v1242, %v6122
  %6124 = vmatmul.bf16.gmra.mxu0 %v5976
  %v6125 = vpop.f32.mrf.mxu0
  %v6126 = vadd.f32 %v1242, %v6125
  %v6127 = vpop.f32.mrf.mxu0
  %v6128 = vadd.f32 %v1242, %v6127
  %6129 = vdwg.mxu0
  %v6130 = vtanh.pop %v6051
  %v6131 = vtanh.pop %v6053
  %v6132 = vtanh.pop %v6056
  %v6133 = vtanh.pop %v6058
  %v6134 = vtanh.pop %v6061
  %v6135 = vtanh.pop %v6063
  %v6136 = vtanh.pop %v6066
  %v6137 = vtanh.pop %v6068
  %v6138 = vtanh.pop %v6071
  %v6139 = vtanh.pop %v6073
  %v6140 = vtanh.pop %v6076
  %v6141 = vtanh.pop %v6078
  %v6142 = vtanh.pop %v6081
  %v6143 = vtanh.pop %v6083
  %v6144 = vtanh.pop %v6086
  %v6145 = vtanh.pop %v6088
  %v6146 = vtanh.pop %v6091
  %v6147 = vtanh.pop %v6093
  %v6148 = vtanh.pop %v6096
  %v6149 = vtanh.pop %v6098
  %v6150 = vtanh.pop %v6101
  %v6151 = vtanh.pop %v6103
  %v6152 = vtanh.pop %v6106
  %v6153 = vtanh.pop %v6108
  %v6154 = vtanh.pop %v6111
  %v6155 = vtanh.pop %v6113
  %v6156 = vtanh.pop %v6116
  %v6157 = vtanh.pop %v6118
  %v6158 = vtanh.pop %v6121
  %v6159 = vtanh.pop %v6123
  %v6160 = vtanh.pop %v6126
  %v6161 = vtanh.pop %v6128
  %v6162 = vpack.c.bf16 %v6131, %v6130
  %v6163 = vpack.c.bf16 %v6133, %v6132
  %v6164 = vpack.c.bf16 %v6135, %v6134
  %v6165 = vpack.c.bf16 %v6137, %v6136
  %v6166 = vpack.c.bf16 %v6139, %v6138
  %v6167 = vpack.c.bf16 %v6141, %v6140
  %v6168 = vpack.c.bf16 %v6143, %v6142
  %v6169 = vpack.c.bf16 %v6145, %v6144
  %v6170 = vpack.c.bf16 %v6147, %v6146
  %v6171 = vpack.c.bf16 %v6149, %v6148
  %v6172 = vpack.c.bf16 %v6151, %v6150
  %v6173 = vpack.c.bf16 %v6153, %v6152
  %v6174 = vpack.c.bf16 %v6155, %v6154
  %v6175 = vpack.c.bf16 %v6157, %v6156
  %v6176 = vpack.c.bf16 %v6159, %v6158
  %v6177 = vpack.c.bf16 %v6161, %v6160
  %v6178 = vld [vmem:[%s4] sm:$0xf]
  %v6179 = vld [vmem:[%s4 + $0x4] sm:$0xf]
  %v6180 = vld [vmem:[%s4 + $0x8] sm:$0xf]
  %v6181 = vld [vmem:[%s4 + $0xc] sm:$0xf]
  %v6182 = vld [vmem:[%s4 + $0x10] sm:$0xf]
  %v6183 = vld [vmem:[%s4 + $0x14] sm:$0xf]
  %v6184 = vld [vmem:[%s4 + $0x18] sm:$0xf]
  %v6185 = vld [vmem:[%s4 + $0x1c] sm:$0xf]
  %v6186 = vld [vmem:[%s4 + $0x20] sm:$0xf]
  %v6187 = vld [vmem:[%s4 + $0x24] sm:$0xf]
  %v6188 = vld [vmem:[%s4 + $0x28] sm:$0xf]
  %v6189 = vld [vmem:[%s4 + $0x2c] sm:$0xf]
  %v6190 = vld [vmem:[%s4 + $0x30] sm:$0xf]
  %v6191 = vld [vmem:[%s4 + $0x34] sm:$0xf]
  %v6192 = vld [vmem:[%s4 + $0x38] sm:$0xf]
  %v6193 = vld [vmem:[%s4 + $0x3c] sm:$0xf]
  %v6210 = vunpack.c.l.b16 %v6178
  %v6211 = vunpack.c.l.b16 %v6179
  %v6212 = vunpack.c.l.b16 %v6180
  %v6213 = vunpack.c.l.b16 %v6181
  %v6214 = vunpack.c.l.b16 %v6182
  %v6215 = vunpack.c.l.b16 %v6183
  %v6216 = vunpack.c.l.b16 %v6184
  %v6217 = vunpack.c.l.b16 %v6185
  %v6218 = vunpack.c.l.b16 %v6186
  %v6219 = vunpack.c.l.b16 %v6187
  %v6220 = vunpack.c.l.b16 %v6188
  %v6221 = vunpack.c.l.b16 %v6189
  %v6222 = vunpack.c.l.b16 %v6190
  %v6223 = vunpack.c.l.b16 %v6191
  %v6224 = vunpack.c.l.b16 %v6192
  %v6225 = vunpack.c.l.b16 %v6193
  %v6226 = vpack.c.b16 %v6211, %v6210
  %v6227 = vpack.c.b16 %v6213, %v6212
  %v6228 = vpack.c.b16 %v6215, %v6214
  %v6229 = vpack.c.b16 %v6217, %v6216
  %v6230 = vpack.c.b16 %v6219, %v6218
  %v6231 = vpack.c.b16 %v6221, %v6220
  %v6232 = vpack.c.b16 %v6223, %v6222
  %v6233 = vpack.c.b16 %v6225, %v6224
  %6242 = vmatpush.bf16.msra.mxu0 %v6233
  %6243 = vmatpush.bf16.msra.mxu0 %v6232
  %6244 = vmatpush.bf16.msra.mxu0 %v6231
  %6245 = vmatpush.bf16.msra.mxu0 %v6230
  %6246 = vmatpush.bf16.msra.mxu0 %v6229
  %6247 = vmatpush.bf16.msra.mxu0 %v6228
  %6248 = vmatpush.bf16.msra.mxu0 %v6227
  %6249 = vmatpush.bf16.msra.mxu0 %v6226
  %6250 = vmatmul.bf16.gmra.mxu0 %v6162
  %v6251 = vpop.f32.mrf.mxu0
  %v6252 = vadd.f32 %v1444, %v6251
  %v6253 = vpop.f32.mrf.mxu0
  %v6254 = vadd.f32 %v1444, %v6253
  %6255 = vmatmul.bf16.gmra.mxu0 %v6163
  %v6256 = vpop.f32.mrf.mxu0
  %v6257 = vadd.f32 %v1444, %v6256
  %v6258 = vpop.f32.mrf.mxu0
  %v6259 = vadd.f32 %v1444, %v6258
  %6260 = vmatmul.bf16.gmra.mxu0 %v6164
  %v6261 = vpop.f32.mrf.mxu0
  %v6262 = vadd.f32 %v1444, %v6261
  %v6263 = vpop.f32.mrf.mxu0
  %v6264 = vadd.f32 %v1444, %v6263
  %6265 = vmatmul.bf16.gmra.mxu0 %v6165
  %v6266 = vpop.f32.mrf.mxu0
  %v6267 = vadd.f32 %v1444, %v6266
  %v6268 = vpop.f32.mrf.mxu0
  %v6269 = vadd.f32 %v1444, %v6268
  %6270 = vmatmul.bf16.gmra.mxu0 %v6166
  %v6271 = vpop.f32.mrf.mxu0
  %v6272 = vadd.f32 %v1444, %v6271
  %v6273 = vpop.f32.mrf.mxu0
  %v6274 = vadd.f32 %v1444, %v6273
  %6275 = vmatmul.bf16.gmra.mxu0 %v6167
  %v6276 = vpop.f32.mrf.mxu0
  %v6277 = vadd.f32 %v1444, %v6276
  %v6278 = vpop.f32.mrf.mxu0
  %v6279 = vadd.f32 %v1444, %v6278
  %6280 = vmatmul.bf16.gmra.mxu0 %v6168
  %v6281 = vpop.f32.mrf.mxu0
  %v6282 = vadd.f32 %v1444, %v6281
  %v6283 = vpop.f32.mrf.mxu0
  %v6284 = vadd.f32 %v1444, %v6283
  %6285 = vmatmul.bf16.gmra.mxu0 %v6169
  %v6286 = vpop.f32.mrf.mxu0
  %v6287 = vadd.f32 %v1444, %v6286
  %v6288 = vpop.f32.mrf.mxu0
  %v6289 = vadd.f32 %v1444, %v6288
  %6290 = vmatmul.bf16.gmra.mxu0 %v6170
  %v6291 = vpop.f32.mrf.mxu0
  %v6292 = vadd.f32 %v1444, %v6291
  %v6293 = vpop.f32.mrf.mxu0
  %v6294 = vadd.f32 %v1444, %v6293
  %6295 = vmatmul.bf16.gmra.mxu0 %v6171
  %v6296 = vpop.f32.mrf.mxu0
  %v6297 = vadd.f32 %v1444, %v6296
  %v6298 = vpop.f32.mrf.mxu0
  %v6299 = vadd.f32 %v1444, %v6298
  %6300 = vmatmul.bf16.gmra.mxu0 %v6172
  %v6301 = vpop.f32.mrf.mxu0
  %v6302 = vadd.f32 %v1444, %v6301
  %v6303 = vpop.f32.mrf.mxu0
  %v6304 = vadd.f32 %v1444, %v6303
  %6305 = vmatmul.bf16.gmra.mxu0 %v6173
  %v6306 = vpop.f32.mrf.mxu0
  %v6307 = vadd.f32 %v1444, %v6306
  %v6308 = vpop.f32.mrf.mxu0
  %v6309 = vadd.f32 %v1444, %v6308
  %6310 = vmatmul.bf16.gmra.mxu0 %v6174
  %v6311 = vpop.f32.mrf.mxu0
  %v6312 = vadd.f32 %v1444, %v6311
  %v6313 = vpop.f32.mrf.mxu0
  %v6314 = vadd.f32 %v1444, %v6313
  %6315 = vmatmul.bf16.gmra.mxu0 %v6175
  %v6316 = vpop.f32.mrf.mxu0
  %v6317 = vadd.f32 %v1444, %v6316
  %v6318 = vpop.f32.mrf.mxu0
  %v6319 = vadd.f32 %v1444, %v6318
  %6320 = vmatmul.bf16.gmra.mxu0 %v6176
  %v6321 = vpop.f32.mrf.mxu0
  %v6322 = vadd.f32 %v1444, %v6321
  %v6323 = vpop.f32.mrf.mxu0
  %v6324 = vadd.f32 %v1444, %v6323
  %6325 = vmatmul.bf16.gmra.mxu0 %v6177
  %v6326 = vpop.f32.mrf.mxu0
  %v6327 = vadd.f32 %v1444, %v6326
  %v6328 = vpop.f32.mrf.mxu0
  %v6329 = vadd.f32 %v1444, %v6328
  %6330 = vdwg.mxu0
  %s6331 = scalar_lea.vmem %s5, 768
  %6332 = vst.msk [vmem:[%s6331] sm:$0xff] %vm1582, %v6252
  %6333 = vst.msk [vmem:[%s6331 + $0x8] sm:$0xff] %vm1582, %v6254
  %6334 = vst.msk [vmem:[%s6331 + $0x10] sm:$0xff] %vm1582, %v6257
  %6335 = vst.msk [vmem:[%s6331 + $0x18] sm:$0xff] %vm1582, %v6259
  %6336 = vst.msk [vmem:[%s6331 + $0x20] sm:$0xff] %vm1582, %v6262
  %6337 = vst.msk [vmem:[%s6331 + $0x28] sm:$0xff] %vm1582, %v6264
  %6338 = vst.msk [vmem:[%s6331 + $0x30] sm:$0xff] %vm1582, %v6267
  %6339 = vst.msk [vmem:[%s6331 + $0x38] sm:$0xff] %vm1582, %v6269
  %6340 = vst.msk [vmem:[%s6331 + $0x40] sm:$0xff] %vm1582, %v6272
  %6341 = vst.msk [vmem:[%s6331 + $0x48] sm:$0xff] %vm1582, %v6274
  %6342 = vst.msk [vmem:[%s6331 + $0x50] sm:$0xff] %vm1582, %v6277
  %6343 = vst.msk [vmem:[%s6331 + $0x58] sm:$0xff] %vm1582, %v6279
  %6344 = vst.msk [vmem:[%s6331 + $0x60] sm:$0xff] %vm1582, %v6282
  %6345 = vst.msk [vmem:[%s6331 + $0x68] sm:$0xff] %vm1582, %v6284
  %6346 = vst.msk [vmem:[%s6331 + $0x70] sm:$0xff] %vm1582, %v6287
  %6347 = vst.msk [vmem:[%s6331 + $0x78] sm:$0xff] %vm1582, %v6289
  %6348 = vst.msk [vmem:[%s6331 + $0x80] sm:$0xff] %vm1582, %v6292
  %6349 = vst.msk [vmem:[%s6331 + $0x88] sm:$0xff] %vm1582, %v6294
  %6350 = vst.msk [vmem:[%s6331 + $0x90] sm:$0xff] %vm1582, %v6297
  %6351 = vst.msk [vmem:[%s6331 + $0x98] sm:$0xff] %vm1582, %v6299
  %6352 = vst.msk [vmem:[%s6331 + $0xa0] sm:$0xff] %vm1582, %v6302
  %6353 = vst.msk [vmem:[%s6331 + $0xa8] sm:$0xff] %vm1582, %v6304
  %6354 = vst.msk [vmem:[%s6331 + $0xb0] sm:$0xff] %vm1582, %v6307
  %6355 = vst.msk [vmem:[%s6331 + $0xb8] sm:$0xff] %vm1582, %v6309
  %6356 = vst.msk [vmem:[%s6331 + $0xc0] sm:$0xff] %vm1582, %v6312
  %6357 = vst.msk [vmem:[%s6331 + $0xc8] sm:$0xff] %vm1582, %v6314
  %6358 = vst.msk [vmem:[%s6331 + $0xd0] sm:$0xff] %vm1582, %v6317
  %6359 = vst.msk [vmem:[%s6331 + $0xd8] sm:$0xff] %vm1582, %v6319
  %6360 = vst.msk [vmem:[%s6331 + $0xe0] sm:$0xff] %vm1582, %v6322
  %6361 = vst.msk [vmem:[%s6331 + $0xe8] sm:$0xff] %vm1582, %v6324
  %6362 = vst.msk [vmem:[%s6331 + $0xf0] sm:$0xff] %vm1582, %v6327
  %6363 = vst.msk [vmem:[%s6331 + $0xf8] sm:$0xff] %vm1582, %v6329
  // Predicated region
  $region22: #{tpu_custom_call.1} parent=0 // pred_check
    _
  $region23: #{tpu_custom_call.1} parent=0 // pred_check_branch
    %6365 = sbr.rel (0) target = $region25
  $region24: #{tpu_custom_call.1} parent=0 // pred_region
    _
  $region25: #{tpu_custom_call.1} parent=0 // pred_fallthru
    _
  // Predicated region
  $region26: #{tpu_custom_call.1} parent=0 // pred_check
    _
  $region27: #{tpu_custom_call.1} parent=0 // pred_check_branch
    %6367 = sbr.rel (0) target = $region29
  $region28: #{tpu_custom_call.1} parent=0 // pred_region
    _
  $region29: #{tpu_custom_call.1} parent=0 // pred_fallthru
    _

</llo_original>
